<compile_context>
chip_gen: v5e
topology: v5e:2x2
jax: 0.10.0
libtpu: 0.0.40
codegen_flags: <defaults>
</compile_context>

<pallas_src>
import numpy as np
import jax
import jax.numpy as jnp
from jax import lax
from jax.experimental import pallas as pl
from jax.experimental.pallas import tpu as pltpu

EPS = 1e-5

# For conv2 kernel offset kh (or kw) in 0..3, the layer-1 coordinate is
#   oh1 = 2*oh2 + kh - 1 = 2*(oh2 + _D_OFF[kh]) + _PARITY[kh]
_D_OFF = (-1, 0, 0, 1)
_PARITY = (1, 0, 1, 0)


# ------------------------------ Pallas kernel -------------------------------

def _batchnorm_relu(y, gamma, beta):
    """Training-mode BatchNorm over rows (biased variance) + ReLU, f32."""
    inv_n = 1.0 / y.shape[0]
    mean = jnp.sum(y, axis=0, keepdims=True) * inv_n
    d = y - mean
    var = jnp.sum(d * d, axis=0, keepdims=True) * inv_n
    return jnp.maximum(d * (gamma * lax.rsqrt(var + EPS)) + beta, 0.0)


def _discriminator_kernel(p1_ref, w1_ref, g1_ref, b1_ref, w2_ref, g2_ref,
                          b2_ref, wd_ref, bd_ref, mask_ref, o_ref):
    B = o_ref.shape[0]
    M2 = B * 49                       # rows of the conv2/dense stage (b,oh2,ow2)
    C1 = w1_ref.shape[1]              # 64
    C2 = w2_ref.shape[1]              # 128

    # ---- Layer 1: conv1 as matmul (f32) + BN(batch stats) + ReLU ----------
    # p1 rows are ordered (quadrant=(row parity, col parity), b, i, j), so the
    # stride-2 layer-2 im2col below needs only contiguous row slices.  The
    # conv bias is intentionally omitted: it cancels under batch-stat BN.
    y1 = jnp.dot(p1_ref[...], w1_ref[...], preferred_element_type=jnp.float32)
    h1 = _batchnorm_relu(y1, g1_ref[...], b1_ref[...])           # [4*M2, C1]

    # ---- Layer 2: conv2 (k=4, s=2, p=1) as 16 shifted matmuls --------------
    y2 = jnp.zeros((M2, C2), jnp.float32)
    for kh in range(4):
        for kw in range(4):
            k = kh * 4 + kw
            q = _PARITY[kh] * 2 + _PARITY[kw]
            s = 7 * _D_OFF[kh] + _D_OFF[kw]
            blk = h1[q * M2:(q + 1) * M2, :]                     # [M2, C1]
            if s > 0:
                piece = jnp.concatenate(
                    [blk[s:, :], jnp.zeros((s, C1), jnp.float32)], axis=0)
            elif s < 0:
                piece = jnp.concatenate(
                    [jnp.zeros((-s, C1), jnp.float32), blk[:M2 + s, :]], axis=0)
            else:
                piece = blk
            if s != 0:
                piece = piece * mask_ref[:, k:k + 1]             # zero pad rows
            y2 = y2 + jnp.dot(piece.astype(jnp.bfloat16),
                              w2_ref[k * C1:(k + 1) * C1, :],
                              preferred_element_type=jnp.float32)
    h2 = _batchnorm_relu(y2, g2_ref[...], b2_ref[...])           # [M2, C2]

    # ---- Dense(128*7*7 -> 1) + sigmoid: per-batch weighted reduction -------
    wd = wd_ref[...]                                             # [49, C2]
    logits = []
    for b in range(B):
        prod = h2[b * 49:(b + 1) * 49, :] * wd                   # [49, C2]
        s_lane = jnp.sum(prod, axis=1, keepdims=True)            # [49, 1]
        logits.append(jnp.sum(s_lane, axis=0, keepdims=True))    # [1, 1]
    logit = jnp.concatenate(logits, axis=0) + bd_ref[...]        # [B, 1]
    o_ref[...] = jax.nn.sigmoid(logit)


# ------------------------------- Glue (JAX) ---------------------------------
# TODO(synk): layer-1 im2col patch extraction and the one-time weight
# re-layouts below are plain-XLA glue feeding the single fused Pallas kernel.

def _full_block(shape):
    zeros = (0,) * len(shape)
    return pl.BlockSpec(shape, lambda i: zeros)


def conv_w_to_2d(w):
    """PyTorch conv weight (O, Cin, kh, kw) -> (kh*kw*Cin, O), row order
    (kh, kw, cin) to match the kernel's patch-element layout."""
    o, cin, kh, kw = w.shape
    return w.transpose(2, 3, 1, 0).reshape(kh * kw * cin, o)


def _build_p1_quadrants(x_nhwc):
    """Layer-1 im2col (k=4, s=2, p=1, Cin=1) with rows ordered
    (row-parity pr, col-parity pc, b, i, j), i.e. oh1 = 2*i+pr, ow1 = 2*j+pc.
    x_nhwc: [B, 28, 28, 1] -> [4*B*49, 16] (columns ordered (kh, kw))."""
    B = x_nhwc.shape[0]
    xp = jnp.pad(x_nhwc, ((0, 0), (1, 1), (1, 1), (0, 0)))       # [B, 30, 30, 1]
    quads = []
    for pr in range(2):
        for pc in range(2):
            cols = []
            for kh in range(4):
                for kw in range(4):
                    r0 = 2 * pr + kh
                    c0 = 2 * pc + kw
                    cols.append(xp[:, r0:r0 + 25:4, c0:c0 + 25:4, 0])  # [B,7,7]
            quads.append(jnp.stack(cols, axis=-1))               # [B, 7, 7, 16]
    return jnp.stack(quads, axis=0).reshape(4 * B * 49, 16)


def _build_pad_masks(B):
    """mask[t, kh*4+kw] = 1 iff conv2 patch element (kh, kw) at output row
    t = b*49 + oh2*7 + ow2 falls inside the 14x14 layer-1 map (not padding)."""
    m = np.zeros((B * 49, 16), np.float32)
    for b in range(B):
        for i in range(7):
            for j in range(7):
                t = b * 49 + i * 7 + j
                for kh in range(4):
                    for kw in range(4):
                        ii = i + _D_OFF[kh]
                        jj = j + _D_OFF[kw]
                        if 0 <= ii < 7 and 0 <= jj < 7:
                            m[t, kh * 4 + kw] = 1.0
    return jnp.asarray(m)


def discriminator_forward(x, params):
    """x: [B, 1, 28, 28] (NCHW, like the PyTorch module) -> [B, 1]."""
    B, _, H, W = x.shape
    assert (H, W) == (28, 28), "dense layer requires 28x28 inputs (128*7*7)"
    xh = jnp.transpose(x, (0, 2, 3, 1))                          # NHWC, once

    p1 = _build_p1_quadrants(xh).astype(jnp.float32)             # [4*B*49, 16]
    w1 = conv_w_to_2d(params["conv1_w"]).astype(jnp.float32)     # [16, 64]
    w2 = conv_w_to_2d(params["conv2_w"]).astype(jnp.bfloat16)    # [1024, 128]
    c1 = params["conv1_w"].shape[0]
    c2 = params["conv2_w"].shape[0]
    g1 = params["bn1_gamma"].reshape(1, c1).astype(jnp.float32)
    b1 = params["bn1_beta"].reshape(1, c1).astype(jnp.float32)
    g2 = params["bn2_gamma"].reshape(1, c2).astype(jnp.float32)
    b2 = params["bn2_beta"].reshape(1, c2).astype(jnp.float32)
    # Dense weight re-ordered from PyTorch's (c, h, w) flatten to the kernel's
    # (oh2*7+ow2, c) layout: ONE [49, 128] block, no per-batch tiling, no seg.
    wd = params["dense_w"].reshape(c2, 7, 7).transpose(1, 2, 0).reshape(49, c2)
    wd = wd.astype(jnp.float32)
    bd = params["dense_b"].reshape(1, 1).astype(jnp.float32)
    masks = _build_pad_masks(B)                                  # [B*49, 16]

    args = (p1, w1, g1, b1, w2, g2, b2, wd, bd, masks)
    return pl.pallas_call(
        _discriminator_kernel,
        out_shape=jax.ShapeDtypeStruct((B, 1), jnp.float32),
        grid=(1,),
        in_specs=[_full_block(a.shape) for a in args],
        out_specs=_full_block((B, 1)),
        compiler_params=pltpu.CompilerParams(
            dimension_semantics=("arbitrary",)),
    )(*args)


# ---------------------------- Pure-JAX reference ----------------------------

def reference_forward(x, params):
    def bn_relu_ref(y, gamma, beta):
        mu = jnp.mean(y, axis=(0, 2, 3), keepdims=True)
        var = jnp.var(y, axis=(0, 2, 3), keepdims=True)
        yn = (y - mu) / jnp.sqrt(var + EPS)
        return jax.nn.relu(yn * gamma[None, :, None, None]
                           + beta[None, :, None, None])

    dn = ("NCHW", "OIHW", "NCHW")
    y1 = lax.conv_general_dilated(x, params["conv1_w"], (2, 2), ((1, 1), (1, 1)),
                                  dimension_numbers=dn,
                                  precision=lax.Precision.HIGHEST)
    y1 = y1 + params["conv1_b"][None, :, None, None]
    h1 = bn_relu_ref(y1, params["bn1_gamma"], params["bn1_beta"])
    y2 = lax.conv_general_dilated(h1, params["conv2_w"], (2, 2), ((1, 1), (1, 1)),
                                  dimension_numbers=dn,
                                  precision=lax.Precision.HIGHEST)
    y2 = y2 + params["conv2_b"][None, :, None, None]
    h2 = bn_relu_ref(y2, params["bn2_gamma"], params["bn2_beta"])
    flat = h2.reshape(h2.shape[0], -1)
    logits = jnp.dot(flat, params["dense_w"].T,
                     precision=lax.Precision.HIGHEST) + params["dense_b"]
    return jax.nn.sigmoid(logits)


# ----------------------------------- Main ------------------------------------

if __name__ == "__main__":
    key = jax.random.PRNGKey(0)
    ks = jax.random.split(key, 10)
    B = 2
    # Input spatial size must be 28 so that the dense layer sees 128*7*7.
    x = jax.random.normal(ks[0], (B, 1, 28, 28), dtype=jnp.float32)

    params = {
        "conv1_w": 0.1 * jax.random.normal(ks[1], (64, 1, 4, 4), jnp.float32),
        "conv1_b": 0.1 * jax.random.normal(ks[2], (64,), jnp.float32),
        "conv2_w": 0.05 * jax.random.normal(ks[3], (128, 64, 4, 4), jnp.float32),
        "conv2_b": 0.1 * jax.random.normal(ks[4], (128,), jnp.float32),
        "bn1_gamma": 1.0 + 0.1 * jax.random.normal(ks[5], (64,), jnp.float32),
        "bn1_beta": 0.1 * jax.random.normal(ks[6], (64,), jnp.float32),
        "bn2_gamma": 1.0 + 0.1 * jax.random.normal(ks[7], (128,), jnp.float32),
        "bn2_beta": 0.1 * jax.random.normal(ks[8], (128,), jnp.float32),
        "dense_w": 0.02 * jax.random.normal(ks[9], (1, 128 * 7 * 7), jnp.float32),
        "dense_b": jnp.zeros((1,), jnp.float32),
    }

    out = jax.jit(discriminator_forward)(x, params)
    out = jax.block_until_ready(out)

    ref = reference_forward(x, params)
    assert out.shape == (B, 1), out.shape
    # Tolerance covers bf16 MXU operands (f32 accumulation) in layer 2 vs. the
    # full-f32 reference; layer-1, BN stats, dense and sigmoid are f32.
    max_diff = float(jnp.max(jnp.abs(out - ref)))
    assert max_diff < 2e-2, f"mismatch vs reference: {max_diff}"

    print("KERNEL_OK")
</pallas_src>

<mosaic_0001>
module attributes {stable_mosaic.version = 11 : i64} {
  func.func @_discriminator_kernel(%arg0: i32, %arg1: memref<392x16xf32, #tpu.memory_space<vmem>>, %arg2: memref<16x64xf32, #tpu.memory_space<vmem>>, %arg3: memref<1x64xf32, #tpu.memory_space<vmem>>, %arg4: memref<1x64xf32, #tpu.memory_space<vmem>>, %arg5: memref<1024x128xbf16, #tpu.memory_space<vmem>>, %arg6: memref<1x128xf32, #tpu.memory_space<vmem>>, %arg7: memref<1x128xf32, #tpu.memory_space<vmem>>, %arg8: memref<49x128xf32, #tpu.memory_space<vmem>>, %arg9: memref<1x1xf32, #tpu.memory_space<vmem>>, %arg10: memref<98x16xf32, #tpu.memory_space<vmem>>, %arg11: memref<2x1xf32, #tpu.memory_space<vmem>>) attributes {dimension_semantics = [#tpu.dimension_semantics<arbitrary>], iteration_bounds = array<i64: 1>, scalar_prefetch = 0 : i64, scratch_operands = 0 : i64, tpu.core_type = #tpu.core_type<tc>, window_params = [{pipeline_mode = #tpu.pipeline_mode<synchronous>, transform_indices = @transform_0, window_bounds = array<i64: 392, 16>}, {pipeline_mode = #tpu.pipeline_mode<synchronous>, transform_indices = @transform_1, window_bounds = array<i64: 16, 64>}, {pipeline_mode = #tpu.pipeline_mode<synchronous>, transform_indices = @transform_2, window_bounds = array<i64: 1, 64>}, {pipeline_mode = #tpu.pipeline_mode<synchronous>, transform_indices = @transform_3, window_bounds = array<i64: 1, 64>}, {pipeline_mode = #tpu.pipeline_mode<synchronous>, transform_indices = @transform_4, window_bounds = array<i64: 1024, 128>}, {pipeline_mode = #tpu.pipeline_mode<synchronous>, transform_indices = @transform_5, window_bounds = array<i64: 1, 128>}, {pipeline_mode = #tpu.pipeline_mode<synchronous>, transform_indices = @transform_6, window_bounds = array<i64: 1, 128>}, {pipeline_mode = #tpu.pipeline_mode<synchronous>, transform_indices = @transform_7, window_bounds = array<i64: 49, 128>}, {pipeline_mode = #tpu.pipeline_mode<synchronous>, transform_indices = @transform_8, window_bounds = array<i64: 1, 1>}, {pipeline_mode = #tpu.pipeline_mode<synchronous>, transform_indices = @transform_9, window_bounds = array<i64: 98, 16>}, {pipeline_mode = #tpu.pipeline_mode<synchronous>, transform_indices = @transform_10, window_bounds = array<i64: 2, 1>}]} {
    %c0 = arith.constant 0 : index
    %c0_0 = arith.constant 0 : index
    %0 = vector.load %arg1[%c0, %c0_0] : memref<392x16xf32, #tpu.memory_space<vmem>>, vector<392x16xf32>
    %c0_1 = arith.constant 0 : index
    %c0_2 = arith.constant 0 : index
    %1 = vector.load %arg2[%c0_1, %c0_2] : memref<16x64xf32, #tpu.memory_space<vmem>>, vector<16x64xf32>
    %cst = arith.constant dense<0.000000e+00> : vector<392x64xf32>
    %2 = tpu.matmul %0, %1, %cst {dimension_numbers = #tpu.dot_dimension_numbers<[1], [0], [0], [1], [0, 0, 1, 1], [], []>} : vector<392x16xf32>, vector<16x64xf32>, vector<392x64xf32> -> vector<392x64xf32>
    %c0_3 = arith.constant 0 : index
    %c0_4 = arith.constant 0 : index
    %3 = vector.load %arg3[%c0_3, %c0_4] : memref<1x64xf32, #tpu.memory_space<vmem>>, vector<1x64xf32>
    %c0_5 = arith.constant 0 : index
    %c0_6 = arith.constant 0 : index
    %4 = vector.load %arg4[%c0_5, %c0_6] : memref<1x64xf32, #tpu.memory_space<vmem>>, vector<1x64xf32>
    %cst_7 = arith.constant dense<0.000000e+00> : vector<64xf32>
    %5 = vector.multi_reduction <add>, %2, %cst_7 [0] : vector<392x64xf32> to vector<64xf32>
    %6 = vector.shape_cast %5 : vector<64xf32> to vector<1x64xf32>
    %cst_8 = arith.constant 0.00255102036 : f32
    %7 = vector.broadcast %cst_8 : f32 to vector<1x64xf32>
    %8 = arith.mulf %6, %7 : vector<1x64xf32>
    %9 = vector.broadcast %8 : vector<1x64xf32> to vector<392x64xf32>
    %10 = arith.subf %2, %9 : vector<392x64xf32>
    %11 = arith.mulf %10, %10 : vector<392x64xf32>
    %cst_9 = arith.constant dense<0.000000e+00> : vector<64xf32>
    %12 = vector.multi_reduction <add>, %11, %cst_9 [0] : vector<392x64xf32> to vector<64xf32>
    %13 = vector.shape_cast %12 : vector<64xf32> to vector<1x64xf32>
    %cst_10 = arith.constant 0.00255102036 : f32
    %14 = vector.broadcast %cst_10 : f32 to vector<1x64xf32>
    %15 = arith.mulf %13, %14 : vector<1x64xf32>
    %cst_11 = arith.constant 9.99999974E-6 : f32
    %16 = vector.broadcast %cst_11 : f32 to vector<1x64xf32>
    %17 = arith.addf %15, %16 : vector<1x64xf32>
    %18 = math.rsqrt %17 : vector<1x64xf32>
    %19 = arith.mulf %3, %18 : vector<1x64xf32>
    %20 = vector.broadcast %19 : vector<1x64xf32> to vector<392x64xf32>
    %21 = arith.mulf %10, %20 : vector<392x64xf32>
    %22 = vector.broadcast %4 : vector<1x64xf32> to vector<392x64xf32>
    %23 = arith.addf %21, %22 : vector<392x64xf32>
    %cst_12 = arith.constant 0.000000e+00 : f32
    %24 = vector.broadcast %cst_12 : f32 to vector<392x64xf32>
    %25 = arith.maximumf %23, %24 : vector<392x64xf32>
    %cst_13 = arith.constant 0.000000e+00 : f32
    %26 = vector.broadcast %cst_13 : f32 to vector<98x128xf32>
    %27 = vector.extract_strided_slice %25 {offsets = [294, 0], sizes = [98, 64], strides = [1, 1]} : vector<392x64xf32> to vector<98x64xf32>
    %cst_14 = arith.constant 0.000000e+00 : f32
    %28 = vector.broadcast %cst_14 : f32 to vector<8x64xf32>
    %29 = vector.extract_strided_slice %27 {offsets = [0, 0], sizes = [90, 64], strides = [1, 1]} : vector<98x64xf32> to vector<90x64xf32>
    %30 = tpu.concatenate %28, %29 in 0 : vector<8x64xf32>, vector<90x64xf32> -> vector<98x64xf32>
    %c0_15 = arith.constant 0 : index
    %c0_16 = arith.constant 0 : index
    %31 = vector.load %arg10[%c0_15, %c0_16] : memref<98x16xf32, #tpu.memory_space<vmem>>, vector<98x1xf32>
    %32 = vector.broadcast %31 : vector<98x1xf32> to vector<98x64xf32>
    %33 = arith.mulf %30, %32 : vector<98x64xf32>
    %34 = arith.truncf %33 : vector<98x64xf32> to vector<98x64xbf16>
    %c0_17 = arith.constant 0 : index
    %c0_18 = arith.constant 0 : index
    %35 = vector.load %arg5[%c0_17, %c0_18] : memref<1024x128xbf16, #tpu.memory_space<vmem>>, vector<64x128xbf16>
    %cst_19 = arith.constant dense<0.000000e+00> : vector<98x128xf32>
    %36 = tpu.matmul %34, %35, %cst_19 {dimension_numbers = #tpu.dot_dimension_numbers<[1], [0], [0], [1], [0, 0, 1, 1], [], []>} : vector<98x64xbf16>, vector<64x128xbf16>, vector<98x128xf32> -> vector<98x128xf32>
    %37 = arith.addf %26, %36 : vector<98x128xf32>
    %38 = vector.extract_strided_slice %25 {offsets = [196, 0], sizes = [98, 64], strides = [1, 1]} : vector<392x64xf32> to vector<98x64xf32>
    %cst_20 = arith.constant 0.000000e+00 : f32
    %39 = vector.broadcast %cst_20 : f32 to vector<7x64xf32>
    %40 = vector.extract_strided_slice %38 {offsets = [0, 0], sizes = [91, 64], strides = [1, 1]} : vector<98x64xf32> to vector<91x64xf32>
    %41 = tpu.concatenate %39, %40 in 0 : vector<7x64xf32>, vector<91x64xf32> -> vector<98x64xf32>
    %c0_21 = arith.constant 0 : index
    %c1 = arith.constant 1 : index
    %42 = vector.load %arg10[%c0_21, %c1] : memref<98x16xf32, #tpu.memory_space<vmem>>, vector<98x1xf32>
    %43 = vector.broadcast %42 : vector<98x1xf32> to vector<98x64xf32>
    %44 = arith.mulf %41, %43 : vector<98x64xf32>
    %45 = arith.truncf %44 : vector<98x64xf32> to vector<98x64xbf16>
    %c64 = arith.constant 64 : index
    %c0_22 = arith.constant 0 : index
    %46 = vector.load %arg5[%c64, %c0_22] : memref<1024x128xbf16, #tpu.memory_space<vmem>>, vector<64x128xbf16>
    %cst_23 = arith.constant dense<0.000000e+00> : vector<98x128xf32>
    %47 = tpu.matmul %45, %46, %cst_23 {dimension_numbers = #tpu.dot_dimension_numbers<[1], [0], [0], [1], [0, 0, 1, 1], [], []>} : vector<98x64xbf16>, vector<64x128xbf16>, vector<98x128xf32> -> vector<98x128xf32>
    %48 = arith.addf %37, %47 : vector<98x128xf32>
    %49 = vector.extract_strided_slice %25 {offsets = [294, 0], sizes = [98, 64], strides = [1, 1]} : vector<392x64xf32> to vector<98x64xf32>
    %cst_24 = arith.constant 0.000000e+00 : f32
    %50 = vector.broadcast %cst_24 : f32 to vector<7x64xf32>
    %51 = vector.extract_strided_slice %49 {offsets = [0, 0], sizes = [91, 64], strides = [1, 1]} : vector<98x64xf32> to vector<91x64xf32>
    %52 = tpu.concatenate %50, %51 in 0 : vector<7x64xf32>, vector<91x64xf32> -> vector<98x64xf32>
    %c0_25 = arith.constant 0 : index
    %c2 = arith.constant 2 : index
    %53 = vector.load %arg10[%c0_25, %c2] : memref<98x16xf32, #tpu.memory_space<vmem>>, vector<98x1xf32>
    %54 = vector.broadcast %53 : vector<98x1xf32> to vector<98x64xf32>
    %55 = arith.mulf %52, %54 : vector<98x64xf32>
    %56 = arith.truncf %55 : vector<98x64xf32> to vector<98x64xbf16>
    %c128 = arith.constant 128 : index
    %c0_26 = arith.constant 0 : index
    %57 = vector.load %arg5[%c128, %c0_26] : memref<1024x128xbf16, #tpu.memory_space<vmem>>, vector<64x128xbf16>
    %cst_27 = arith.constant dense<0.000000e+00> : vector<98x128xf32>
    %58 = tpu.matmul %56, %57, %cst_27 {dimension_numbers = #tpu.dot_dimension_numbers<[1], [0], [0], [1], [0, 0, 1, 1], [], []>} : vector<98x64xbf16>, vector<64x128xbf16>, vector<98x128xf32> -> vector<98x128xf32>
    %59 = arith.addf %48, %58 : vector<98x128xf32>
    %60 = vector.extract_strided_slice %25 {offsets = [196, 0], sizes = [98, 64], strides = [1, 1]} : vector<392x64xf32> to vector<98x64xf32>
    %cst_28 = arith.constant 0.000000e+00 : f32
    %61 = vector.broadcast %cst_28 : f32 to vector<6x64xf32>
    %62 = vector.extract_strided_slice %60 {offsets = [0, 0], sizes = [92, 64], strides = [1, 1]} : vector<98x64xf32> to vector<92x64xf32>
    %63 = tpu.concatenate %61, %62 in 0 : vector<6x64xf32>, vector<92x64xf32> -> vector<98x64xf32>
    %c0_29 = arith.constant 0 : index
    %c3 = arith.constant 3 : index
    %64 = vector.load %arg10[%c0_29, %c3] : memref<98x16xf32, #tpu.memory_space<vmem>>, vector<98x1xf32>
    %65 = vector.broadcast %64 : vector<98x1xf32> to vector<98x64xf32>
    %66 = arith.mulf %63, %65 : vector<98x64xf32>
    %67 = arith.truncf %66 : vector<98x64xf32> to vector<98x64xbf16>
    %c192 = arith.constant 192 : index
    %c0_30 = arith.constant 0 : index
    %68 = vector.load %arg5[%c192, %c0_30] : memref<1024x128xbf16, #tpu.memory_space<vmem>>, vector<64x128xbf16>
    %cst_31 = arith.constant dense<0.000000e+00> : vector<98x128xf32>
    %69 = tpu.matmul %67, %68, %cst_31 {dimension_numbers = #tpu.dot_dimension_numbers<[1], [0], [0], [1], [0, 0, 1, 1], [], []>} : vector<98x64xbf16>, vector<64x128xbf16>, vector<98x128xf32> -> vector<98x128xf32>
    %70 = arith.addf %59, %69 : vector<98x128xf32>
    %71 = vector.extract_strided_slice %25 {offsets = [98, 0], sizes = [98, 64], strides = [1, 1]} : vector<392x64xf32> to vector<98x64xf32>
    %cst_32 = arith.constant 0.000000e+00 : f32
    %72 = vector.broadcast %cst_32 : f32 to vector<1x64xf32>
    %73 = vector.extract_strided_slice %71 {offsets = [0, 0], sizes = [97, 64], strides = [1, 1]} : vector<98x64xf32> to vector<97x64xf32>
    %74 = tpu.concatenate %72, %73 in 0 : vector<1x64xf32>, vector<97x64xf32> -> vector<98x64xf32>
    %c0_33 = arith.constant 0 : index
    %c4 = arith.constant 4 : index
    %75 = vector.load %arg10[%c0_33, %c4] : memref<98x16xf32, #tpu.memory_space<vmem>>, vector<98x1xf32>
    %76 = vector.broadcast %75 : vector<98x1xf32> to vector<98x64xf32>
    %77 = arith.mulf %74, %76 : vector<98x64xf32>
    %78 = arith.truncf %77 : vector<98x64xf32> to vector<98x64xbf16>
    %c256 = arith.constant 256 : index
    %c0_34 = arith.constant 0 : index
    %79 = vector.load %arg5[%c256, %c0_34] : memref<1024x128xbf16, #tpu.memory_space<vmem>>, vector<64x128xbf16>
    %cst_35 = arith.constant dense<0.000000e+00> : vector<98x128xf32>
    %80 = tpu.matmul %78, %79, %cst_35 {dimension_numbers = #tpu.dot_dimension_numbers<[1], [0], [0], [1], [0, 0, 1, 1], [], []>} : vector<98x64xbf16>, vector<64x128xbf16>, vector<98x128xf32> -> vector<98x128xf32>
    %81 = arith.addf %70, %80 : vector<98x128xf32>
    %82 = vector.extract_strided_slice %25 {offsets = [0, 0], sizes = [98, 64], strides = [1, 1]} : vector<392x64xf32> to vector<98x64xf32>
    %83 = arith.truncf %82 : vector<98x64xf32> to vector<98x64xbf16>
    %c320 = arith.constant 320 : index
    %c0_36 = arith.constant 0 : index
    %84 = vector.load %arg5[%c320, %c0_36] : memref<1024x128xbf16, #tpu.memory_space<vmem>>, vector<64x128xbf16>
    %cst_37 = arith.constant dense<0.000000e+00> : vector<98x128xf32>
    %85 = tpu.matmul %83, %84, %cst_37 {dimension_numbers = #tpu.dot_dimension_numbers<[1], [0], [0], [1], [0, 0, 1, 1], [], []>} : vector<98x64xbf16>, vector<64x128xbf16>, vector<98x128xf32> -> vector<98x128xf32>
    %86 = arith.addf %81, %85 : vector<98x128xf32>
    %87 = vector.extract_strided_slice %25 {offsets = [98, 0], sizes = [98, 64], strides = [1, 1]} : vector<392x64xf32> to vector<98x64xf32>
    %88 = arith.truncf %87 : vector<98x64xf32> to vector<98x64xbf16>
    %c384 = arith.constant 384 : index
    %c0_38 = arith.constant 0 : index
    %89 = vector.load %arg5[%c384, %c0_38] : memref<1024x128xbf16, #tpu.memory_space<vmem>>, vector<64x128xbf16>
    %cst_39 = arith.constant dense<0.000000e+00> : vector<98x128xf32>
    %90 = tpu.matmul %88, %89, %cst_39 {dimension_numbers = #tpu.dot_dimension_numbers<[1], [0], [0], [1], [0, 0, 1, 1], [], []>} : vector<98x64xbf16>, vector<64x128xbf16>, vector<98x128xf32> -> vector<98x128xf32>
    %91 = arith.addf %86, %90 : vector<98x128xf32>
    %92 = vector.extract_strided_slice %25 {offsets = [0, 0], sizes = [98, 64], strides = [1, 1]} : vector<392x64xf32> to vector<98x64xf32>
    %93 = vector.extract_strided_slice %92 {offsets = [1, 0], sizes = [97, 64], strides = [1, 1]} : vector<98x64xf32> to vector<97x64xf32>
    %cst_40 = arith.constant 0.000000e+00 : f32
    %94 = vector.broadcast %cst_40 : f32 to vector<1x64xf32>
    %95 = tpu.concatenate %93, %94 in 0 : vector<97x64xf32>, vector<1x64xf32> -> vector<98x64xf32>
    %c0_41 = arith.constant 0 : index
    %c7 = arith.constant 7 : index
    %96 = vector.load %arg10[%c0_41, %c7] : memref<98x16xf32, #tpu.memory_space<vmem>>, vector<98x1xf32>
    %97 = vector.broadcast %96 : vector<98x1xf32> to vector<98x64xf32>
    %98 = arith.mulf %95, %97 : vector<98x64xf32>
    %99 = arith.truncf %98 : vector<98x64xf32> to vector<98x64xbf16>
    %c448 = arith.constant 448 : index
    %c0_42 = arith.constant 0 : index
    %100 = vector.load %arg5[%c448, %c0_42] : memref<1024x128xbf16, #tpu.memory_space<vmem>>, vector<64x128xbf16>
    %cst_43 = arith.constant dense<0.000000e+00> : vector<98x128xf32>
    %101 = tpu.matmul %99, %100, %cst_43 {dimension_numbers = #tpu.dot_dimension_numbers<[1], [0], [0], [1], [0, 0, 1, 1], [], []>} : vector<98x64xbf16>, vector<64x128xbf16>, vector<98x128xf32> -> vector<98x128xf32>
    %102 = arith.addf %91, %101 : vector<98x128xf32>
    %103 = vector.extract_strided_slice %25 {offsets = [294, 0], sizes = [98, 64], strides = [1, 1]} : vector<392x64xf32> to vector<98x64xf32>
    %cst_44 = arith.constant 0.000000e+00 : f32
    %104 = vector.broadcast %cst_44 : f32 to vector<1x64xf32>
    %105 = vector.extract_strided_slice %103 {offsets = [0, 0], sizes = [97, 64], strides = [1, 1]} : vector<98x64xf32> to vector<97x64xf32>
    %106 = tpu.concatenate %104, %105 in 0 : vector<1x64xf32>, vector<97x64xf32> -> vector<98x64xf32>
    %c0_45 = arith.constant 0 : index
    %c8 = arith.constant 8 : index
    %107 = vector.load %arg10[%c0_45, %c8] : memref<98x16xf32, #tpu.memory_space<vmem>>, vector<98x1xf32>
    %108 = vector.broadcast %107 : vector<98x1xf32> to vector<98x64xf32>
    %109 = arith.mulf %106, %108 : vector<98x64xf32>
    %110 = arith.truncf %109 : vector<98x64xf32> to vector<98x64xbf16>
    %c512 = arith.constant 512 : index
    %c0_46 = arith.constant 0 : index
    %111 = vector.load %arg5[%c512, %c0_46] : memref<1024x128xbf16, #tpu.memory_space<vmem>>, vector<64x128xbf16>
    %cst_47 = arith.constant dense<0.000000e+00> : vector<98x128xf32>
    %112 = tpu.matmul %110, %111, %cst_47 {dimension_numbers = #tpu.dot_dimension_numbers<[1], [0], [0], [1], [0, 0, 1, 1], [], []>} : vector<98x64xbf16>, vector<64x128xbf16>, vector<98x128xf32> -> vector<98x128xf32>
    %113 = arith.addf %102, %112 : vector<98x128xf32>
    %114 = vector.extract_strided_slice %25 {offsets = [196, 0], sizes = [98, 64], strides = [1, 1]} : vector<392x64xf32> to vector<98x64xf32>
    %115 = arith.truncf %114 : vector<98x64xf32> to vector<98x64xbf16>
    %c576 = arith.constant 576 : index
    %c0_48 = arith.constant 0 : index
    %116 = vector.load %arg5[%c576, %c0_48] : memref<1024x128xbf16, #tpu.memory_space<vmem>>, vector<64x128xbf16>
    %cst_49 = arith.constant dense<0.000000e+00> : vector<98x128xf32>
    %117 = tpu.matmul %115, %116, %cst_49 {dimension_numbers = #tpu.dot_dimension_numbers<[1], [0], [0], [1], [0, 0, 1, 1], [], []>} : vector<98x64xbf16>, vector<64x128xbf16>, vector<98x128xf32> -> vector<98x128xf32>
    %118 = arith.addf %113, %117 : vector<98x128xf32>
    %119 = vector.extract_strided_slice %25 {offsets = [294, 0], sizes = [98, 64], strides = [1, 1]} : vector<392x64xf32> to vector<98x64xf32>
    %120 = arith.truncf %119 : vector<98x64xf32> to vector<98x64xbf16>
    %c640 = arith.constant 640 : index
    %c0_50 = arith.constant 0 : index
    %121 = vector.load %arg5[%c640, %c0_50] : memref<1024x128xbf16, #tpu.memory_space<vmem>>, vector<64x128xbf16>
    %cst_51 = arith.constant dense<0.000000e+00> : vector<98x128xf32>
    %122 = tpu.matmul %120, %121, %cst_51 {dimension_numbers = #tpu.dot_dimension_numbers<[1], [0], [0], [1], [0, 0, 1, 1], [], []>} : vector<98x64xbf16>, vector<64x128xbf16>, vector<98x128xf32> -> vector<98x128xf32>
    %123 = arith.addf %118, %122 : vector<98x128xf32>
    %124 = vector.extract_strided_slice %25 {offsets = [196, 0], sizes = [98, 64], strides = [1, 1]} : vector<392x64xf32> to vector<98x64xf32>
    %125 = vector.extract_strided_slice %124 {offsets = [1, 0], sizes = [97, 64], strides = [1, 1]} : vector<98x64xf32> to vector<97x64xf32>
    %cst_52 = arith.constant 0.000000e+00 : f32
    %126 = vector.broadcast %cst_52 : f32 to vector<1x64xf32>
    %127 = tpu.concatenate %125, %126 in 0 : vector<97x64xf32>, vector<1x64xf32> -> vector<98x64xf32>
    %c0_53 = arith.constant 0 : index
    %c11 = arith.constant 11 : index
    %128 = vector.load %arg10[%c0_53, %c11] : memref<98x16xf32, #tpu.memory_space<vmem>>, vector<98x1xf32>
    %129 = vector.broadcast %128 : vector<98x1xf32> to vector<98x64xf32>
    %130 = arith.mulf %127, %129 : vector<98x64xf32>
    %131 = arith.truncf %130 : vector<98x64xf32> to vector<98x64xbf16>
    %c704 = arith.constant 704 : index
    %c0_54 = arith.constant 0 : index
    %132 = vector.load %arg5[%c704, %c0_54] : memref<1024x128xbf16, #tpu.memory_space<vmem>>, vector<64x128xbf16>
    %cst_55 = arith.constant dense<0.000000e+00> : vector<98x128xf32>
    %133 = tpu.matmul %131, %132, %cst_55 {dimension_numbers = #tpu.dot_dimension_numbers<[1], [0], [0], [1], [0, 0, 1, 1], [], []>} : vector<98x64xbf16>, vector<64x128xbf16>, vector<98x128xf32> -> vector<98x128xf32>
    %134 = arith.addf %123, %133 : vector<98x128xf32>
    %135 = vector.extract_strided_slice %25 {offsets = [98, 0], sizes = [98, 64], strides = [1, 1]} : vector<392x64xf32> to vector<98x64xf32>
    %136 = vector.extract_strided_slice %135 {offsets = [6, 0], sizes = [92, 64], strides = [1, 1]} : vector<98x64xf32> to vector<92x64xf32>
    %cst_56 = arith.constant 0.000000e+00 : f32
    %137 = vector.broadcast %cst_56 : f32 to vector<6x64xf32>
    %138 = tpu.concatenate %136, %137 in 0 : vector<92x64xf32>, vector<6x64xf32> -> vector<98x64xf32>
    %c0_57 = arith.constant 0 : index
    %c12 = arith.constant 12 : index
    %139 = vector.load %arg10[%c0_57, %c12] : memref<98x16xf32, #tpu.memory_space<vmem>>, vector<98x1xf32>
    %140 = vector.broadcast %139 : vector<98x1xf32> to vector<98x64xf32>
    %141 = arith.mulf %138, %140 : vector<98x64xf32>
    %142 = arith.truncf %141 : vector<98x64xf32> to vector<98x64xbf16>
    %c768 = arith.constant 768 : index
    %c0_58 = arith.constant 0 : index
    %143 = vector.load %arg5[%c768, %c0_58] : memref<1024x128xbf16, #tpu.memory_space<vmem>>, vector<64x128xbf16>
    %cst_59 = arith.constant dense<0.000000e+00> : vector<98x128xf32>
    %144 = tpu.matmul %142, %143, %cst_59 {dimension_numbers = #tpu.dot_dimension_numbers<[1], [0], [0], [1], [0, 0, 1, 1], [], []>} : vector<98x64xbf16>, vector<64x128xbf16>, vector<98x128xf32> -> vector<98x128xf32>
    %145 = arith.addf %134, %144 : vector<98x128xf32>
    %146 = vector.extract_strided_slice %25 {offsets = [0, 0], sizes = [98, 64], strides = [1, 1]} : vector<392x64xf32> to vector<98x64xf32>
    %147 = vector.extract_strided_slice %146 {offsets = [7, 0], sizes = [91, 64], strides = [1, 1]} : vector<98x64xf32> to vector<91x64xf32>
    %cst_60 = arith.constant 0.000000e+00 : f32
    %148 = vector.broadcast %cst_60 : f32 to vector<7x64xf32>
    %149 = tpu.concatenate %147, %148 in 0 : vector<91x64xf32>, vector<7x64xf32> -> vector<98x64xf32>
    %c0_61 = arith.constant 0 : index
    %c13 = arith.constant 13 : index
    %150 = vector.load %arg10[%c0_61, %c13] : memref<98x16xf32, #tpu.memory_space<vmem>>, vector<98x1xf32>
    %151 = vector.broadcast %150 : vector<98x1xf32> to vector<98x64xf32>
    %152 = arith.mulf %149, %151 : vector<98x64xf32>
    %153 = arith.truncf %152 : vector<98x64xf32> to vector<98x64xbf16>
    %c832 = arith.constant 832 : index
    %c0_62 = arith.constant 0 : index
    %154 = vector.load %arg5[%c832, %c0_62] : memref<1024x128xbf16, #tpu.memory_space<vmem>>, vector<64x128xbf16>
    %cst_63 = arith.constant dense<0.000000e+00> : vector<98x128xf32>
    %155 = tpu.matmul %153, %154, %cst_63 {dimension_numbers = #tpu.dot_dimension_numbers<[1], [0], [0], [1], [0, 0, 1, 1], [], []>} : vector<98x64xbf16>, vector<64x128xbf16>, vector<98x128xf32> -> vector<98x128xf32>
    %156 = arith.addf %145, %155 : vector<98x128xf32>
    %157 = vector.extract_strided_slice %25 {offsets = [98, 0], sizes = [98, 64], strides = [1, 1]} : vector<392x64xf32> to vector<98x64xf32>
    %158 = vector.extract_strided_slice %157 {offsets = [7, 0], sizes = [91, 64], strides = [1, 1]} : vector<98x64xf32> to vector<91x64xf32>
    %cst_64 = arith.constant 0.000000e+00 : f32
    %159 = vector.broadcast %cst_64 : f32 to vector<7x64xf32>
    %160 = tpu.concatenate %158, %159 in 0 : vector<91x64xf32>, vector<7x64xf32> -> vector<98x64xf32>
    %c0_65 = arith.constant 0 : index
    %c14 = arith.constant 14 : index
    %161 = vector.load %arg10[%c0_65, %c14] : memref<98x16xf32, #tpu.memory_space<vmem>>, vector<98x1xf32>
    %162 = vector.broadcast %161 : vector<98x1xf32> to vector<98x64xf32>
    %163 = arith.mulf %160, %162 : vector<98x64xf32>
    %164 = arith.truncf %163 : vector<98x64xf32> to vector<98x64xbf16>
    %c896 = arith.constant 896 : index
    %c0_66 = arith.constant 0 : index
    %165 = vector.load %arg5[%c896, %c0_66] : memref<1024x128xbf16, #tpu.memory_space<vmem>>, vector<64x128xbf16>
    %cst_67 = arith.constant dense<0.000000e+00> : vector<98x128xf32>
    %166 = tpu.matmul %164, %165, %cst_67 {dimension_numbers = #tpu.dot_dimension_numbers<[1], [0], [0], [1], [0, 0, 1, 1], [], []>} : vector<98x64xbf16>, vector<64x128xbf16>, vector<98x128xf32> -> vector<98x128xf32>
    %167 = arith.addf %156, %166 : vector<98x128xf32>
    %168 = vector.extract_strided_slice %25 {offsets = [0, 0], sizes = [98, 64], strides = [1, 1]} : vector<392x64xf32> to vector<98x64xf32>
    %169 = vector.extract_strided_slice %168 {offsets = [8, 0], sizes = [90, 64], strides = [1, 1]} : vector<98x64xf32> to vector<90x64xf32>
    %cst_68 = arith.constant 0.000000e+00 : f32
    %170 = vector.broadcast %cst_68 : f32 to vector<8x64xf32>
    %171 = tpu.concatenate %169, %170 in 0 : vector<90x64xf32>, vector<8x64xf32> -> vector<98x64xf32>
    %c0_69 = arith.constant 0 : index
    %c15 = arith.constant 15 : index
    %172 = vector.load %arg10[%c0_69, %c15] : memref<98x16xf32, #tpu.memory_space<vmem>>, vector<98x1xf32>
    %173 = vector.broadcast %172 : vector<98x1xf32> to vector<98x64xf32>
    %174 = arith.mulf %171, %173 : vector<98x64xf32>
    %175 = arith.truncf %174 : vector<98x64xf32> to vector<98x64xbf16>
    %c960 = arith.constant 960 : index
    %c0_70 = arith.constant 0 : index
    %176 = vector.load %arg5[%c960, %c0_70] : memref<1024x128xbf16, #tpu.memory_space<vmem>>, vector<64x128xbf16>
    %cst_71 = arith.constant dense<0.000000e+00> : vector<98x128xf32>
    %177 = tpu.matmul %175, %176, %cst_71 {dimension_numbers = #tpu.dot_dimension_numbers<[1], [0], [0], [1], [0, 0, 1, 1], [], []>} : vector<98x64xbf16>, vector<64x128xbf16>, vector<98x128xf32> -> vector<98x128xf32>
    %178 = arith.addf %167, %177 : vector<98x128xf32>
    %c0_72 = arith.constant 0 : index
    %c0_73 = arith.constant 0 : index
    %179 = vector.load %arg6[%c0_72, %c0_73] : memref<1x128xf32, #tpu.memory_space<vmem>>, vector<1x128xf32>
    %c0_74 = arith.constant 0 : index
    %c0_75 = arith.constant 0 : index
    %180 = vector.load %arg7[%c0_74, %c0_75] : memref<1x128xf32, #tpu.memory_space<vmem>>, vector<1x128xf32>
    %cst_76 = arith.constant dense<0.000000e+00> : vector<128xf32>
    %181 = vector.multi_reduction <add>, %178, %cst_76 [0] : vector<98x128xf32> to vector<128xf32>
    %182 = vector.shape_cast %181 : vector<128xf32> to vector<1x128xf32>
    %cst_77 = arith.constant 0.0102040814 : f32
    %183 = vector.broadcast %cst_77 : f32 to vector<1x128xf32>
    %184 = arith.mulf %182, %183 : vector<1x128xf32>
    %185 = vector.broadcast %184 : vector<1x128xf32> to vector<98x128xf32>
    %186 = arith.subf %178, %185 : vector<98x128xf32>
    %187 = arith.mulf %186, %186 : vector<98x128xf32>
    %cst_78 = arith.constant dense<0.000000e+00> : vector<128xf32>
    %188 = vector.multi_reduction <add>, %187, %cst_78 [0] : vector<98x128xf32> to vector<128xf32>
    %189 = vector.shape_cast %188 : vector<128xf32> to vector<1x128xf32>
    %cst_79 = arith.constant 0.0102040814 : f32
    %190 = vector.broadcast %cst_79 : f32 to vector<1x128xf32>
    %191 = arith.mulf %189, %190 : vector<1x128xf32>
    %cst_80 = arith.constant 9.99999974E-6 : f32
    %192 = vector.broadcast %cst_80 : f32 to vector<1x128xf32>
    %193 = arith.addf %191, %192 : vector<1x128xf32>
    %194 = math.rsqrt %193 : vector<1x128xf32>
    %195 = arith.mulf %179, %194 : vector<1x128xf32>
    %196 = vector.broadcast %195 : vector<1x128xf32> to vector<98x128xf32>
    %197 = arith.mulf %186, %196 : vector<98x128xf32>
    %198 = vector.broadcast %180 : vector<1x128xf32> to vector<98x128xf32>
    %199 = arith.addf %197, %198 : vector<98x128xf32>
    %cst_81 = arith.constant 0.000000e+00 : f32
    %200 = vector.broadcast %cst_81 : f32 to vector<98x128xf32>
    %201 = arith.maximumf %199, %200 : vector<98x128xf32>
    %c0_82 = arith.constant 0 : index
    %c0_83 = arith.constant 0 : index
    %202 = vector.load %arg8[%c0_82, %c0_83] : memref<49x128xf32, #tpu.memory_space<vmem>>, vector<49x128xf32>
    %203 = vector.extract_strided_slice %201 {offsets = [0, 0], sizes = [49, 128], strides = [1, 1]} : vector<98x128xf32> to vector<49x128xf32>
    %204 = arith.mulf %203, %202 : vector<49x128xf32>
    %cst_84 = arith.constant dense<0.000000e+00> : vector<49xf32>
    %205 = vector.multi_reduction <add>, %204, %cst_84 [1] : vector<49x128xf32> to vector<49xf32>
    %206 = vector.shape_cast %205 : vector<49xf32> to vector<49x1xf32>
    %cst_85 = arith.constant dense<0.000000e+00> : vector<1xf32>
    %207 = vector.multi_reduction <add>, %206, %cst_85 [0] : vector<49x1xf32> to vector<1xf32>
    %208 = vector.shape_cast %207 : vector<1xf32> to vector<1x1xf32>
    %209 = vector.extract_strided_slice %201 {offsets = [49, 0], sizes = [49, 128], strides = [1, 1]} : vector<98x128xf32> to vector<49x128xf32>
    %210 = arith.mulf %209, %202 : vector<49x128xf32>
    %cst_86 = arith.constant dense<0.000000e+00> : vector<49xf32>
    %211 = vector.multi_reduction <add>, %210, %cst_86 [1] : vector<49x128xf32> to vector<49xf32>
    %212 = vector.shape_cast %211 : vector<49xf32> to vector<49x1xf32>
    %cst_87 = arith.constant dense<0.000000e+00> : vector<1xf32>
    %213 = vector.multi_reduction <add>, %212, %cst_87 [0] : vector<49x1xf32> to vector<1xf32>
    %214 = vector.shape_cast %213 : vector<1xf32> to vector<1x1xf32>
    %215 = tpu.concatenate %208, %214 in 0 : vector<1x1xf32>, vector<1x1xf32> -> vector<2x1xf32>
    %c0_88 = arith.constant 0 : index
    %c0_89 = arith.constant 0 : index
    %216 = vector.load %arg9[%c0_88, %c0_89] : memref<1x1xf32, #tpu.memory_space<vmem>>, vector<1x1xf32>
    %217 = vector.broadcast %216 : vector<1x1xf32> to vector<2x1xf32>
    %218 = arith.addf %215, %217 : vector<2x1xf32>
    %219 = arith.negf %218 : vector<2x1xf32>
    %220 = math.exp %219 : vector<2x1xf32>
    %cst_90 = arith.constant 1.000000e+00 : f32
    %221 = vector.broadcast %cst_90 : f32 to vector<2x1xf32>
    %222 = arith.addf %221, %220 : vector<2x1xf32>
    %223 = arith.divf %221, %222 : vector<2x1xf32>
    %c0_91 = arith.constant 0 : index
    %c0_92 = arith.constant 0 : index
    %224 = vector.load %arg11[%c0_91, %c0_92] : memref<2x1xf32, #tpu.memory_space<vmem>>, vector<2x1xf32>
    tpu.vector_store %arg11[%c0_91, %c0_92], %223 {strides = array<i32>} : memref<2x1xf32, #tpu.memory_space<vmem>>, vector<2x1xf32>,
    return
  }
  func.func @transform_0(%arg0: i32) -> (i32, i32) {
    %c0_i32 = arith.constant 0 : i32
    %c0_i32_0 = arith.constant 0 : i32
    %c0_i32_1 = arith.constant 0 : i32
    return %c0_i32, %c0_i32_0 : i32, i32
  }
  func.func @transform_1(%arg0: i32) -> (i32, i32) {
    %c0_i32 = arith.constant 0 : i32
    %c0_i32_0 = arith.constant 0 : i32
    %c0_i32_1 = arith.constant 0 : i32
    return %c0_i32, %c0_i32_0 : i32, i32
  }
  func.func @transform_2(%arg0: i32) -> (i32, i32) {
    %c0_i32 = arith.constant 0 : i32
    %c0_i32_0 = arith.constant 0 : i32
    %c0_i32_1 = arith.constant 0 : i32
    return %c0_i32, %c0_i32_0 : i32, i32
  }
  func.func @transform_3(%arg0: i32) -> (i32, i32) {
    %c0_i32 = arith.constant 0 : i32
    %c0_i32_0 = arith.constant 0 : i32
    %c0_i32_1 = arith.constant 0 : i32
    return %c0_i32, %c0_i32_0 : i32, i32
  }
  func.func @transform_4(%arg0: i32) -> (i32, i32) {
    %c0_i32 = arith.constant 0 : i32
    %c0_i32_0 = arith.constant 0 : i32
    %c0_i32_1 = arith.constant 0 : i32
    return %c0_i32, %c0_i32_0 : i32, i32
  }
  func.func @transform_5(%arg0: i32) -> (i32, i32) {
    %c0_i32 = arith.constant 0 : i32
    %c0_i32_0 = arith.constant 0 : i32
    %c0_i32_1 = arith.constant 0 : i32
    return %c0_i32, %c0_i32_0 : i32, i32
  }
  func.func @transform_6(%arg0: i32) -> (i32, i32) {
    %c0_i32 = arith.constant 0 : i32
    %c0_i32_0 = arith.constant 0 : i32
    %c0_i32_1 = arith.constant 0 : i32
    return %c0_i32, %c0_i32_0 : i32, i32
  }
  func.func @transform_7(%arg0: i32) -> (i32, i32) {
    %c0_i32 = arith.constant 0 : i32
    %c0_i32_0 = arith.constant 0 : i32
    %c0_i32_1 = arith.constant 0 : i32
    return %c0_i32, %c0_i32_0 : i32, i32
  }
  func.func @transform_8(%arg0: i32) -> (i32, i32) {
    %c0_i32 = arith.constant 0 : i32
    %c0_i32_0 = arith.constant 0 : i32
    %c0_i32_1 = arith.constant 0 : i32
    return %c0_i32, %c0_i32_0 : i32, i32
  }
  func.func @transform_9(%arg0: i32) -> (i32, i32) {
    %c0_i32 = arith.constant 0 : i32
    %c0_i32_0 = arith.constant 0 : i32
    %c0_i32_1 = arith.constant 0 : i32
    return %c0_i32, %c0_i32_0 : i32, i32
  }
  func.func @transform_10(%arg0: i32) -> (i32, i32) {
    %c0_i32 = arith.constant 0 : i32
    %c0_i32_0 = arith.constant 0 : i32
    %c0_i32_1 = arith.constant 0 : i32
    return %c0_i32, %c0_i32_0 : i32, i32
  }
}

</mosaic_0001>

<llo_original>
// kernel: discriminator_forward.1
$region0: #{discriminator_forward.1}
  #allocation0 [shape = 'u32[]', space=smem, size = 0x4, offset = 0x4, fixed_abs, tag = 'smem constant byte address 0x4 - core index']
  #allocation1 [shape = 'u32[72,128]{1,0:T(1,128)}', space=vmem, size = 0x9000, scoped, tag = 'internal scratch']
  #allocation2 [shape = 'f32[1,1]{1,0:T(1,128)S(1)}', space=vmem, size = 0x200, scoped, tag = 'scoped memory for discriminator_forward.1']
  %s0 = inlined_call_operand.vmem [shape: f32[392,16], index: 0, kind: input, shape index: {}]
  %s1 = inlined_call_operand.vmem [shape: f32[16,64], index: 1, kind: input, shape index: {}]
  %s2 = inlined_call_operand.vmem [shape: f32[1,64], index: 2, kind: input, shape index: {}]
  %s3 = inlined_call_operand.vmem [shape: f32[1,64], index: 3, kind: input, shape index: {}]
  %s4 = inlined_call_operand.vmem [shape: bf16[1024,128], index: 4, kind: input, shape index: {}]
  %s5 = inlined_call_operand.vmem [shape: f32[1,128], index: 5, kind: input, shape index: {}]
  %s6 = inlined_call_operand.vmem [shape: f32[1,128], index: 6, kind: input, shape index: {}]
  %s7 = inlined_call_operand.vmem [shape: f32[49,128], index: 7, kind: input, shape index: {}]
  %s8 = inlined_call_operand.<no memory space> [shape: f32[1,1], index: 8, kind: input, shape index: {}]
  %s9 = inlined_call_operand.vmem [shape: f32[98,16], index: 9, kind: input, shape index: {}]
  %s10 = inlined_call_operand.vmem [shape: f32[2,1], index: 10, kind: output, shape index: {}]
  %s11 = sld [smem:[#allocation0]]
  $region50: #{discriminator_forward.1} parent=0
    _
  %s13 = ssub.s32 1, %s11
  %s14 = scalar_select 0, %s13, %s11
  %v15 = vstv %s8
  %16 = vst [vmem:[#allocation2] sm:$0x1] %v15
  // Predicated region
  $region2: #{discriminator_forward.1} parent=0 // pred_check
    _
  $region3: #{discriminator_forward.1} parent=0 // pred_check_branch
    %18 = sbr.rel (0) target = $region5
  $region4: #{discriminator_forward.1} parent=0 // pred_region
    _
  $region5: #{discriminator_forward.1} parent=0 // pred_fallthru
    _
  // Predicated region
  $region6: #{discriminator_forward.1} parent=0 // pred_check
    _
  $region7: #{discriminator_forward.1} parent=0 // pred_check_branch
    %20 = sbr.rel (0) target = $region9
  $region8: #{discriminator_forward.1} parent=0 // pred_region
    _
  $region9: #{discriminator_forward.1} parent=0 // pred_fallthru
    _
  // Predicated region
  $region10: #{discriminator_forward.1} parent=0 // pred_check
    _
  $region11: #{discriminator_forward.1} parent=0 // pred_check_branch
    %22 = sbr.rel (0) target = $region13
  $region12: #{discriminator_forward.1} parent=0 // pred_region
    _
  $region13: #{discriminator_forward.1} parent=0 // pred_fallthru
    _
  // Predicated region
  $region14: #{discriminator_forward.1} parent=0 // pred_check
    _
  $region15: #{discriminator_forward.1} parent=0 // pred_check_branch
    %24 = sbr.rel (0) target = $region17
  $region16: #{discriminator_forward.1} parent=0 // pred_region
    _
  $region17: #{discriminator_forward.1} parent=0 // pred_fallthru
    _
  // Predicated region
  $region18: #{discriminator_forward.1} parent=0 // pred_check
    _
  $region19: #{discriminator_forward.1} parent=0 // pred_check_branch
    %26 = sbr.rel (0) target = $region21
  $region20: #{discriminator_forward.1} parent=0 // pred_region
    _
  $region21: #{discriminator_forward.1} parent=0 // pred_fallthru
    _
  // Predicated region
  $region22: #{discriminator_forward.1} parent=0 // pred_check
    _
  $region23: #{discriminator_forward.1} parent=0 // pred_check_branch
    %28 = sbr.rel (0) target = $region25
  $region24: #{discriminator_forward.1} parent=0 // pred_region
    _
  $region25: #{discriminator_forward.1} parent=0 // pred_fallthru
    _
  // Predicated region
  $region26: #{discriminator_forward.1} parent=0 // pred_check
    _
  $region27: #{discriminator_forward.1} parent=0 // pred_check_branch
    %30 = sbr.rel (0) target = $region29
  $region28: #{discriminator_forward.1} parent=0 // pred_region
    _
  $region29: #{discriminator_forward.1} parent=0 // pred_fallthru
    _
  // Predicated region
  $region30: #{discriminator_forward.1} parent=0 // pred_check
    _
  $region31: #{discriminator_forward.1} parent=0 // pred_check_branch
    %32 = sbr.rel (0) target = $region33
  $region32: #{discriminator_forward.1} parent=0 // pred_region
    _
  $region33: #{discriminator_forward.1} parent=0 // pred_fallthru
    _
  // Predicated region
  $region34: #{discriminator_forward.1} parent=0 // pred_check
    _
  $region35: #{discriminator_forward.1} parent=0 // pred_check_branch
    %34 = sbr.rel (0) target = $region37
  $region36: #{discriminator_forward.1} parent=0 // pred_region
    _
  $region37: #{discriminator_forward.1} parent=0 // pred_fallthru
    _
  // Predicated region
  $region38: #{discriminator_forward.1} parent=0 // pred_check
    _
  $region39: #{discriminator_forward.1} parent=0 // pred_check_branch
    %36 = sbr.rel (0) target = $region41
  $region40: #{discriminator_forward.1} parent=0 // pred_region
    _
  $region41: #{discriminator_forward.1} parent=0 // pred_fallthru
    _
  %v38 = vld [vmem:[%s0] sm:$0xff]
  %v39 = vld [vmem:[%s0 + $0x8] sm:$0xff]
  %v40 = vld [vmem:[%s0 + $0x10] sm:$0xff]
  %v41 = vld [vmem:[%s0 + $0x18] sm:$0xff]
  %v42 = vld [vmem:[%s0 + $0x20] sm:$0xff]
  %v43 = vld [vmem:[%s0 + $0x28] sm:$0xff]
  %v44 = vld [vmem:[%s0 + $0x30] sm:$0xff]
  %v45 = vld [vmem:[%s0 + $0x38] sm:$0xff]
  %v46 = vld [vmem:[%s0 + $0x40] sm:$0xff]
  %v47 = vld [vmem:[%s0 + $0x48] sm:$0xff]
  %v48 = vld [vmem:[%s0 + $0x50] sm:$0xff]
  %v49 = vld [vmem:[%s0 + $0x58] sm:$0xff]
  %v50 = vld [vmem:[%s0 + $0x60] sm:$0xff]
  %v51 = vld [vmem:[%s0 + $0x68] sm:$0xff]
  %v52 = vld [vmem:[%s0 + $0x70] sm:$0xff]
  %v53 = vld [vmem:[%s0 + $0x78] sm:$0xff]
  %v54 = vld [vmem:[%s0 + $0x80] sm:$0xff]
  %v55 = vld [vmem:[%s0 + $0x88] sm:$0xff]
  %v56 = vld [vmem:[%s0 + $0x90] sm:$0xff]
  %v57 = vld [vmem:[%s0 + $0x98] sm:$0xff]
  %v58 = vld [vmem:[%s0 + $0xa0] sm:$0xff]
  %v59 = vld [vmem:[%s0 + $0xa8] sm:$0xff]
  %v60 = vld [vmem:[%s0 + $0xb0] sm:$0xff]
  %v61 = vld [vmem:[%s0 + $0xb8] sm:$0xff]
  %v62 = vld [vmem:[%s0 + $0xc0] sm:$0xff]
  %v63 = vld [vmem:[%s0 + $0xc8] sm:$0xff]
  %v64 = vld [vmem:[%s0 + $0xd0] sm:$0xff]
  %v65 = vld [vmem:[%s0 + $0xd8] sm:$0xff]
  %v66 = vld [vmem:[%s0 + $0xe0] sm:$0xff]
  %v67 = vld [vmem:[%s0 + $0xe8] sm:$0xff]
  %v68 = vld [vmem:[%s0 + $0xf0] sm:$0xff]
  %v69 = vld [vmem:[%s0 + $0xf8] sm:$0xff]
  %v70 = vld [vmem:[%s0 + $0x100] sm:$0xff]
  %v71 = vld [vmem:[%s0 + $0x108] sm:$0xff]
  %v72 = vld [vmem:[%s0 + $0x110] sm:$0xff]
  %v73 = vld [vmem:[%s0 + $0x118] sm:$0xff]
  %v74 = vld [vmem:[%s0 + $0x120] sm:$0xff]
  %v75 = vld [vmem:[%s0 + $0x128] sm:$0xff]
  %v76 = vld [vmem:[%s0 + $0x130] sm:$0xff]
  %v77 = vld [vmem:[%s0 + $0x138] sm:$0xff]
  %v78 = vld [vmem:[%s0 + $0x140] sm:$0xff]
  %v79 = vld [vmem:[%s0 + $0x148] sm:$0xff]
  %v80 = vld [vmem:[%s0 + $0x150] sm:$0xff]
  %v81 = vld [vmem:[%s0 + $0x158] sm:$0xff]
  %v82 = vld [vmem:[%s0 + $0x160] sm:$0xff]
  %v83 = vld [vmem:[%s0 + $0x168] sm:$0xff]
  %v84 = vld [vmem:[%s0 + $0x170] sm:$0xff]
  %v85 = vld [vmem:[%s0 + $0x178] sm:$0xff]
  %v86 = vld [vmem:[%s0 + $0x180] sm:$0xff]
  %v87 = vld [vmem:[%s1] sm:$0xff]
  %v88 = vld [vmem:[%s1 + $0x8] sm:$0xff]
  %vm89 = vcmask 130048
  %v91 = vsel %vm89, %v38, 0
  %v94 = vsel %vm89, %v39, 0
  %v97 = vsel %vm89, %v40, 0
  %v100 = vsel %vm89, %v41, 0
  %v103 = vsel %vm89, %v42, 0
  %v106 = vsel %vm89, %v43, 0
  %v109 = vsel %vm89, %v44, 0
  %v112 = vsel %vm89, %v45, 0
  %v115 = vsel %vm89, %v46, 0
  %v118 = vsel %vm89, %v47, 0
  %v121 = vsel %vm89, %v48, 0
  %v124 = vsel %vm89, %v49, 0
  %v127 = vsel %vm89, %v50, 0
  %v130 = vsel %vm89, %v51, 0
  %v133 = vsel %vm89, %v52, 0
  %v136 = vsel %vm89, %v53, 0
  %v139 = vsel %vm89, %v54, 0
  %v142 = vsel %vm89, %v55, 0
  %v145 = vsel %vm89, %v56, 0
  %v148 = vsel %vm89, %v57, 0
  %v151 = vsel %vm89, %v58, 0
  %v154 = vsel %vm89, %v59, 0
  %v157 = vsel %vm89, %v60, 0
  %v160 = vsel %vm89, %v61, 0
  %v163 = vsel %vm89, %v62, 0
  %v166 = vsel %vm89, %v63, 0
  %v169 = vsel %vm89, %v64, 0
  %v172 = vsel %vm89, %v65, 0
  %v175 = vsel %vm89, %v66, 0
  %v178 = vsel %vm89, %v67, 0
  %v181 = vsel %vm89, %v68, 0
  %v184 = vsel %vm89, %v69, 0
  %v187 = vsel %vm89, %v70, 0
  %v190 = vsel %vm89, %v71, 0
  %v193 = vsel %vm89, %v72, 0
  %v196 = vsel %vm89, %v73, 0
  %v199 = vsel %vm89, %v74, 0
  %v202 = vsel %vm89, %v75, 0
  %v205 = vsel %vm89, %v76, 0
  %v208 = vsel %vm89, %v77, 0
  %v211 = vsel %vm89, %v78, 0
  %v214 = vsel %vm89, %v79, 0
  %v217 = vsel %vm89, %v80, 0
  %v220 = vsel %vm89, %v81, 0
  %v223 = vsel %vm89, %v82, 0
  %v226 = vsel %vm89, %v83, 0
  %v229 = vsel %vm89, %v84, 0
  %v232 = vsel %vm89, %v85, 0
  %v235 = vsel %vm89, %v86, 0
  %237 = vmatpush.msra.mxu0 0.0
  %238 = vmatpush.msra.mxu0 0.0
  %239 = vmatpush.msra.mxu0 0.0
  %240 = vmatpush.msra.mxu0 0.0
  %241 = vmatpush.msra.mxu0 0.0
  %242 = vmatpush.msra.mxu0 0.0
  %243 = vmatpush.msra.mxu0 0.0
  %244 = vmatpush.msra.mxu0 0.0
  %245 = vmatpush.msra.mxu0 0.0
  %246 = vmatpush.msra.mxu0 0.0
  %247 = vmatpush.msra.mxu0 0.0
  %248 = vmatpush.msra.mxu0 0.0
  %249 = vmatpush.msra.mxu0 0.0
  %250 = vmatpush.msra.mxu0 0.0
  %251 = vmatpush.msra.mxu0 %v88
  %252 = vmatpush.msra.mxu0 %v87
  %253 = vmatmul.f32.gmra.mxu0 %v91
  %v254 = vpop.f32.mrf.mxu0
  %v255 = vadd.f32 0.0, %v254
  %256 = vmatmul.f32.gmra.mxu0 %v94
  %v257 = vpop.f32.mrf.mxu0
  %v258 = vadd.f32 0.0, %v257
  %259 = vmatmul.f32.gmra.mxu0 %v97
  %v260 = vpop.f32.mrf.mxu0
  %v261 = vadd.f32 0.0, %v260
  %262 = vmatmul.f32.gmra.mxu0 %v100
  %v263 = vpop.f32.mrf.mxu0
  %v264 = vadd.f32 0.0, %v263
  %265 = vmatmul.f32.gmra.mxu0 %v103
  %v266 = vpop.f32.mrf.mxu0
  %v267 = vadd.f32 0.0, %v266
  %268 = vmatmul.f32.gmra.mxu0 %v106
  %v269 = vpop.f32.mrf.mxu0
  %v270 = vadd.f32 0.0, %v269
  %271 = vmatmul.f32.gmra.mxu0 %v109
  %v272 = vpop.f32.mrf.mxu0
  %v273 = vadd.f32 0.0, %v272
  %274 = vmatmul.f32.gmra.mxu0 %v112
  %v275 = vpop.f32.mrf.mxu0
  %v276 = vadd.f32 0.0, %v275
  %277 = vmatmul.f32.gmra.mxu0 %v115
  %v278 = vpop.f32.mrf.mxu0
  %v279 = vadd.f32 0.0, %v278
  %280 = vmatmul.f32.gmra.mxu0 %v118
  %v281 = vpop.f32.mrf.mxu0
  %v282 = vadd.f32 0.0, %v281
  %283 = vmatmul.f32.gmra.mxu0 %v121
  %v284 = vpop.f32.mrf.mxu0
  %v285 = vadd.f32 0.0, %v284
  %286 = vmatmul.f32.gmra.mxu0 %v124
  %v287 = vpop.f32.mrf.mxu0
  %v288 = vadd.f32 0.0, %v287
  %289 = vmatmul.f32.gmra.mxu0 %v127
  %v290 = vpop.f32.mrf.mxu0
  %v291 = vadd.f32 0.0, %v290
  %292 = vmatmul.f32.gmra.mxu0 %v130
  %v293 = vpop.f32.mrf.mxu0
  %v294 = vadd.f32 0.0, %v293
  %295 = vmatmul.f32.gmra.mxu0 %v133
  %v296 = vpop.f32.mrf.mxu0
  %v297 = vadd.f32 0.0, %v296
  %298 = vmatmul.f32.gmra.mxu0 %v136
  %v299 = vpop.f32.mrf.mxu0
  %v300 = vadd.f32 0.0, %v299
  %301 = vmatmul.f32.gmra.mxu0 %v139
  %v302 = vpop.f32.mrf.mxu0
  %v303 = vadd.f32 0.0, %v302
  %304 = vmatmul.f32.gmra.mxu0 %v142
  %v305 = vpop.f32.mrf.mxu0
  %v306 = vadd.f32 0.0, %v305
  %307 = vmatmul.f32.gmra.mxu0 %v145
  %v308 = vpop.f32.mrf.mxu0
  %v309 = vadd.f32 0.0, %v308
  %310 = vmatmul.f32.gmra.mxu0 %v148
  %v311 = vpop.f32.mrf.mxu0
  %v312 = vadd.f32 0.0, %v311
  %313 = vmatmul.f32.gmra.mxu0 %v151
  %v314 = vpop.f32.mrf.mxu0
  %v315 = vadd.f32 0.0, %v314
  %316 = vmatmul.f32.gmra.mxu0 %v154
  %v317 = vpop.f32.mrf.mxu0
  %v318 = vadd.f32 0.0, %v317
  %319 = vmatmul.f32.gmra.mxu0 %v157
  %v320 = vpop.f32.mrf.mxu0
  %v321 = vadd.f32 0.0, %v320
  %322 = vmatmul.f32.gmra.mxu0 %v160
  %v323 = vpop.f32.mrf.mxu0
  %v324 = vadd.f32 0.0, %v323
  %325 = vmatmul.f32.gmra.mxu0 %v163
  %v326 = vpop.f32.mrf.mxu0
  %v327 = vadd.f32 0.0, %v326
  %328 = vmatmul.f32.gmra.mxu0 %v166
  %v329 = vpop.f32.mrf.mxu0
  %v330 = vadd.f32 0.0, %v329
  %331 = vmatmul.f32.gmra.mxu0 %v169
  %v332 = vpop.f32.mrf.mxu0
  %v333 = vadd.f32 0.0, %v332
  %334 = vmatmul.f32.gmra.mxu0 %v172
  %v335 = vpop.f32.mrf.mxu0
  %v336 = vadd.f32 0.0, %v335
  %337 = vmatmul.f32.gmra.mxu0 %v175
  %v338 = vpop.f32.mrf.mxu0
  %v339 = vadd.f32 0.0, %v338
  %340 = vmatmul.f32.gmra.mxu0 %v178
  %v341 = vpop.f32.mrf.mxu0
  %v342 = vadd.f32 0.0, %v341
  %343 = vmatmul.f32.gmra.mxu0 %v181
  %v344 = vpop.f32.mrf.mxu0
  %v345 = vadd.f32 0.0, %v344
  %346 = vmatmul.f32.gmra.mxu0 %v184
  %v347 = vpop.f32.mrf.mxu0
  %v348 = vadd.f32 0.0, %v347
  %349 = vmatmul.f32.gmra.mxu0 %v187
  %v350 = vpop.f32.mrf.mxu0
  %v351 = vadd.f32 0.0, %v350
  %352 = vmatmul.f32.gmra.mxu0 %v190
  %v353 = vpop.f32.mrf.mxu0
  %v354 = vadd.f32 0.0, %v353
  %355 = vmatmul.f32.gmra.mxu0 %v193
  %v356 = vpop.f32.mrf.mxu0
  %v357 = vadd.f32 0.0, %v356
  %358 = vmatmul.f32.gmra.mxu0 %v196
  %v359 = vpop.f32.mrf.mxu0
  %v360 = vadd.f32 0.0, %v359
  %361 = vmatmul.f32.gmra.mxu0 %v199
  %v362 = vpop.f32.mrf.mxu0
  %v363 = vadd.f32 0.0, %v362
  %364 = vmatmul.f32.gmra.mxu0 %v202
  %v365 = vpop.f32.mrf.mxu0
  %v366 = vadd.f32 0.0, %v365
  %367 = vmatmul.f32.gmra.mxu0 %v205
  %v368 = vpop.f32.mrf.mxu0
  %v369 = vadd.f32 0.0, %v368
  %370 = vmatmul.f32.gmra.mxu0 %v208
  %v371 = vpop.f32.mrf.mxu0
  %v372 = vadd.f32 0.0, %v371
  %373 = vmatmul.f32.gmra.mxu0 %v211
  %v374 = vpop.f32.mrf.mxu0
  %v375 = vadd.f32 0.0, %v374
  %376 = vmatmul.f32.gmra.mxu0 %v214
  %v377 = vpop.f32.mrf.mxu0
  %v378 = vadd.f32 0.0, %v377
  %379 = vmatmul.f32.gmra.mxu0 %v217
  %v380 = vpop.f32.mrf.mxu0
  %v381 = vadd.f32 0.0, %v380
  %382 = vmatmul.f32.gmra.mxu0 %v220
  %v383 = vpop.f32.mrf.mxu0
  %v384 = vadd.f32 0.0, %v383
  %385 = vmatmul.f32.gmra.mxu0 %v223
  %v386 = vpop.f32.mrf.mxu0
  %v387 = vadd.f32 0.0, %v386
  %388 = vmatmul.f32.gmra.mxu0 %v226
  %v389 = vpop.f32.mrf.mxu0
  %v390 = vadd.f32 0.0, %v389
  %391 = vmatmul.f32.gmra.mxu0 %v229
  %v392 = vpop.f32.mrf.mxu0
  %v393 = vadd.f32 0.0, %v392
  %394 = vmatmul.f32.gmra.mxu0 %v232
  %v395 = vpop.f32.mrf.mxu0
  %v396 = vadd.f32 0.0, %v395
  %397 = vmatmul.f32.gmra.mxu0 %v235
  %v398 = vpop.f32.mrf.mxu0
  %v399 = vadd.f32 0.0, %v398
  %400 = vdwg.mxu0
  %v401 = vld [vmem:[%s2] sm:$0x1]
  %v402 = vld [vmem:[%s3] sm:$0x1]
  %vm403 = vcmask 523264
  %v404 = vsel %vm403, %v255, 0.0
  %v405 = vsel %vm403, %v258, 0.0
  %v406 = vadd.f32 %v404, %v405
  %v407 = vsel %vm403, %v261, 0.0
  %v408 = vadd.f32 %v406, %v407
  %v409 = vsel %vm403, %v264, 0.0
  %v410 = vadd.f32 %v408, %v409
  %v411 = vsel %vm403, %v267, 0.0
  %v412 = vadd.f32 %v410, %v411
  %v413 = vsel %vm403, %v270, 0.0
  %v414 = vadd.f32 %v412, %v413
  %v415 = vsel %vm403, %v273, 0.0
  %v416 = vadd.f32 %v414, %v415
  %v417 = vsel %vm403, %v276, 0.0
  %v418 = vadd.f32 %v416, %v417
  %v419 = vsel %vm403, %v279, 0.0
  %v420 = vadd.f32 %v418, %v419
  %v421 = vsel %vm403, %v282, 0.0
  %v422 = vadd.f32 %v420, %v421
  %v423 = vsel %vm403, %v285, 0.0
  %v424 = vadd.f32 %v422, %v423
  %v425 = vsel %vm403, %v288, 0.0
  %v426 = vadd.f32 %v424, %v425
  %v427 = vsel %vm403, %v291, 0.0
  %v428 = vadd.f32 %v426, %v427
  %v429 = vsel %vm403, %v294, 0.0
  %v430 = vadd.f32 %v428, %v429
  %v431 = vsel %vm403, %v297, 0.0
  %v432 = vadd.f32 %v430, %v431
  %v433 = vsel %vm403, %v300, 0.0
  %v434 = vadd.f32 %v432, %v433
  %v435 = vsel %vm403, %v303, 0.0
  %v436 = vadd.f32 %v434, %v435
  %v437 = vsel %vm403, %v306, 0.0
  %v438 = vadd.f32 %v436, %v437
  %v439 = vsel %vm403, %v309, 0.0
  %v440 = vadd.f32 %v438, %v439
  %v441 = vsel %vm403, %v312, 0.0
  %v442 = vadd.f32 %v440, %v441
  %v443 = vsel %vm403, %v315, 0.0
  %v444 = vadd.f32 %v442, %v443
  %v445 = vsel %vm403, %v318, 0.0
  %v446 = vadd.f32 %v444, %v445
  %v447 = vsel %vm403, %v321, 0.0
  %v448 = vadd.f32 %v446, %v447
  %v449 = vsel %vm403, %v324, 0.0
  %v450 = vadd.f32 %v448, %v449
  %v451 = vsel %vm403, %v327, 0.0
  %v452 = vadd.f32 %v450, %v451
  %v453 = vsel %vm403, %v330, 0.0
  %v454 = vadd.f32 %v452, %v453
  %v455 = vsel %vm403, %v333, 0.0
  %v456 = vadd.f32 %v454, %v455
  %v457 = vsel %vm403, %v336, 0.0
  %v458 = vadd.f32 %v456, %v457
  %v459 = vsel %vm403, %v339, 0.0
  %v460 = vadd.f32 %v458, %v459
  %v461 = vsel %vm403, %v342, 0.0
  %v462 = vadd.f32 %v460, %v461
  %v463 = vsel %vm403, %v345, 0.0
  %v464 = vadd.f32 %v462, %v463
  %v465 = vsel %vm403, %v348, 0.0
  %v466 = vadd.f32 %v464, %v465
  %v467 = vsel %vm403, %v351, 0.0
  %v468 = vadd.f32 %v466, %v467
  %v469 = vsel %vm403, %v354, 0.0
  %v470 = vadd.f32 %v468, %v469
  %v471 = vsel %vm403, %v357, 0.0
  %v472 = vadd.f32 %v470, %v471
  %v473 = vsel %vm403, %v360, 0.0
  %v474 = vadd.f32 %v472, %v473
  %v475 = vsel %vm403, %v363, 0.0
  %v476 = vadd.f32 %v474, %v475
  %v477 = vsel %vm403, %v366, 0.0
  %v478 = vadd.f32 %v476, %v477
  %v479 = vsel %vm403, %v369, 0.0
  %v480 = vadd.f32 %v478, %v479
  %v481 = vsel %vm403, %v372, 0.0
  %v482 = vadd.f32 %v480, %v481
  %v483 = vsel %vm403, %v375, 0.0
  %v484 = vadd.f32 %v482, %v483
  %v485 = vsel %vm403, %v378, 0.0
  %v486 = vadd.f32 %v484, %v485
  %v487 = vsel %vm403, %v381, 0.0
  %v488 = vadd.f32 %v486, %v487
  %v489 = vsel %vm403, %v384, 0.0
  %v490 = vadd.f32 %v488, %v489
  %v491 = vsel %vm403, %v387, 0.0
  %v492 = vadd.f32 %v490, %v491
  %v493 = vsel %vm403, %v390, 0.0
  %v494 = vadd.f32 %v492, %v493
  %v495 = vsel %vm403, %v393, 0.0
  %v496 = vadd.f32 %v494, %v495
  %v497 = vsel %vm403, %v396, 0.0
  %v498 = vadd.f32 %v496, %v497
  %v499 = vsel %vm403, %v399, 0.0
  %v500 = vadd.f32 %v498, %v499
  %v501 = vrot.slane %v500, 4
  %v502 = vadd.f32 %v500, %v501
  %v503 = vrot.slane %v502, 2
  %v504 = vadd.f32 %v502, %v503
  %v505 = vrot.slane %v504, 1
  %v506 = vadd.f32 %v504, %v505
  %v507 = vmul.f32 %v506, 0.0025510204
  %v508 = vsub.f32 %v255, %v507
  %v509 = vsub.f32 %v258, %v507
  %v510 = vsub.f32 %v261, %v507
  %v511 = vsub.f32 %v264, %v507
  %v512 = vsub.f32 %v267, %v507
  %v513 = vsub.f32 %v270, %v507
  %v514 = vsub.f32 %v273, %v507
  %v515 = vsub.f32 %v276, %v507
  %v516 = vsub.f32 %v279, %v507
  %v517 = vsub.f32 %v282, %v507
  %v518 = vsub.f32 %v285, %v507
  %v519 = vsub.f32 %v288, %v507
  %v520 = vsub.f32 %v291, %v507
  %v521 = vsub.f32 %v294, %v507
  %v522 = vsub.f32 %v297, %v507
  %v523 = vsub.f32 %v300, %v507
  %v524 = vsub.f32 %v303, %v507
  %v525 = vsub.f32 %v306, %v507
  %v526 = vsub.f32 %v309, %v507
  %v527 = vsub.f32 %v312, %v507
  %v528 = vsub.f32 %v315, %v507
  %v529 = vsub.f32 %v318, %v507
  %v530 = vsub.f32 %v321, %v507
  %v531 = vsub.f32 %v324, %v507
  %v532 = vsub.f32 %v327, %v507
  %v533 = vsub.f32 %v330, %v507
  %v534 = vsub.f32 %v333, %v507
  %v535 = vsub.f32 %v336, %v507
  %v536 = vsub.f32 %v339, %v507
  %v537 = vsub.f32 %v342, %v507
  %v538 = vsub.f32 %v345, %v507
  %v539 = vsub.f32 %v348, %v507
  %v540 = vsub.f32 %v351, %v507
  %v541 = vsub.f32 %v354, %v507
  %v542 = vsub.f32 %v357, %v507
  %v543 = vsub.f32 %v360, %v507
  %v544 = vsub.f32 %v363, %v507
  %v545 = vsub.f32 %v366, %v507
  %v546 = vsub.f32 %v369, %v507
  %v547 = vsub.f32 %v372, %v507
  %v548 = vsub.f32 %v375, %v507
  %v549 = vsub.f32 %v378, %v507
  %v550 = vsub.f32 %v381, %v507
  %v551 = vsub.f32 %v384, %v507
  %v552 = vsub.f32 %v387, %v507
  %v553 = vsub.f32 %v390, %v507
  %v554 = vsub.f32 %v393, %v507
  %v555 = vsub.f32 %v396, %v507
  %v556 = vsub.f32 %v399, %v507
  %v557 = vmul.f32 %v508, %v508
  %v558 = vmul.f32 %v509, %v509
  %v559 = vmul.f32 %v510, %v510
  %v560 = vmul.f32 %v511, %v511
  %v561 = vmul.f32 %v512, %v512
  %v562 = vmul.f32 %v513, %v513
  %v563 = vmul.f32 %v514, %v514
  %v564 = vmul.f32 %v515, %v515
  %v565 = vmul.f32 %v516, %v516
  %v566 = vmul.f32 %v517, %v517
  %v567 = vmul.f32 %v518, %v518
  %v568 = vmul.f32 %v519, %v519
  %v569 = vmul.f32 %v520, %v520
  %v570 = vmul.f32 %v521, %v521
  %v571 = vmul.f32 %v522, %v522
  %v572 = vmul.f32 %v523, %v523
  %v573 = vmul.f32 %v524, %v524
  %v574 = vmul.f32 %v525, %v525
  %v575 = vmul.f32 %v526, %v526
  %v576 = vmul.f32 %v527, %v527
  %v577 = vmul.f32 %v528, %v528
  %v578 = vmul.f32 %v529, %v529
  %v579 = vmul.f32 %v530, %v530
  %v580 = vmul.f32 %v531, %v531
  %v581 = vmul.f32 %v532, %v532
  %v582 = vmul.f32 %v533, %v533
  %v583 = vmul.f32 %v534, %v534
  %v584 = vmul.f32 %v535, %v535
  %v585 = vmul.f32 %v536, %v536
  %v586 = vmul.f32 %v537, %v537
  %v587 = vmul.f32 %v538, %v538
  %v588 = vmul.f32 %v539, %v539
  %v589 = vmul.f32 %v540, %v540
  %v590 = vmul.f32 %v541, %v541
  %v591 = vmul.f32 %v542, %v542
  %v592 = vmul.f32 %v543, %v543
  %v593 = vmul.f32 %v544, %v544
  %v594 = vmul.f32 %v545, %v545
  %v595 = vmul.f32 %v546, %v546
  %v596 = vmul.f32 %v547, %v547
  %v597 = vmul.f32 %v548, %v548
  %v598 = vmul.f32 %v549, %v549
  %v599 = vmul.f32 %v550, %v550
  %v600 = vmul.f32 %v551, %v551
  %v601 = vmul.f32 %v552, %v552
  %v602 = vmul.f32 %v553, %v553
  %v603 = vmul.f32 %v554, %v554
  %v604 = vmul.f32 %v555, %v555
  %v605 = vmul.f32 %v556, %v556
  %v606 = vsel %vm403, %v557, 0.0
  %v607 = vsel %vm403, %v558, 0.0
  %v608 = vadd.f32 %v606, %v607
  %v609 = vsel %vm403, %v559, 0.0
  %v610 = vadd.f32 %v608, %v609
  %v611 = vsel %vm403, %v560, 0.0
  %v612 = vadd.f32 %v610, %v611
  %v613 = vsel %vm403, %v561, 0.0
  %v614 = vadd.f32 %v612, %v613
  %v615 = vsel %vm403, %v562, 0.0
  %v616 = vadd.f32 %v614, %v615
  %v617 = vsel %vm403, %v563, 0.0
  %v618 = vadd.f32 %v616, %v617
  %v619 = vsel %vm403, %v564, 0.0
  %v620 = vadd.f32 %v618, %v619
  %v621 = vsel %vm403, %v565, 0.0
  %v622 = vadd.f32 %v620, %v621
  %v623 = vsel %vm403, %v566, 0.0
  %v624 = vadd.f32 %v622, %v623
  %v625 = vsel %vm403, %v567, 0.0
  %v626 = vadd.f32 %v624, %v625
  %v627 = vsel %vm403, %v568, 0.0
  %v628 = vadd.f32 %v626, %v627
  %v629 = vsel %vm403, %v569, 0.0
  %v630 = vadd.f32 %v628, %v629
  %v631 = vsel %vm403, %v570, 0.0
  %v632 = vadd.f32 %v630, %v631
  %v633 = vsel %vm403, %v571, 0.0
  %v634 = vadd.f32 %v632, %v633
  %v635 = vsel %vm403, %v572, 0.0
  %v636 = vadd.f32 %v634, %v635
  %v637 = vsel %vm403, %v573, 0.0
  %v638 = vadd.f32 %v636, %v637
  %v639 = vsel %vm403, %v574, 0.0
  %v640 = vadd.f32 %v638, %v639
  %v641 = vsel %vm403, %v575, 0.0
  %v642 = vadd.f32 %v640, %v641
  %v643 = vsel %vm403, %v576, 0.0
  %v644 = vadd.f32 %v642, %v643
  %v645 = vsel %vm403, %v577, 0.0
  %v646 = vadd.f32 %v644, %v645
  %v647 = vsel %vm403, %v578, 0.0
  %v648 = vadd.f32 %v646, %v647
  %v649 = vsel %vm403, %v579, 0.0
  %v650 = vadd.f32 %v648, %v649
  %v651 = vsel %vm403, %v580, 0.0
  %v652 = vadd.f32 %v650, %v651
  %v653 = vsel %vm403, %v581, 0.0
  %v654 = vadd.f32 %v652, %v653
  %v655 = vsel %vm403, %v582, 0.0
  %v656 = vadd.f32 %v654, %v655
  %v657 = vsel %vm403, %v583, 0.0
  %v658 = vadd.f32 %v656, %v657
  %v659 = vsel %vm403, %v584, 0.0
  %v660 = vadd.f32 %v658, %v659
  %v661 = vsel %vm403, %v585, 0.0
  %v662 = vadd.f32 %v660, %v661
  %v663 = vsel %vm403, %v586, 0.0
  %v664 = vadd.f32 %v662, %v663
  %v665 = vsel %vm403, %v587, 0.0
  %v666 = vadd.f32 %v664, %v665
  %v667 = vsel %vm403, %v588, 0.0
  %v668 = vadd.f32 %v666, %v667
  %v669 = vsel %vm403, %v589, 0.0
  %v670 = vadd.f32 %v668, %v669
  %v671 = vsel %vm403, %v590, 0.0
  %v672 = vadd.f32 %v670, %v671
  %v673 = vsel %vm403, %v591, 0.0
  %v674 = vadd.f32 %v672, %v673
  %v675 = vsel %vm403, %v592, 0.0
  %v676 = vadd.f32 %v674, %v675
  %v677 = vsel %vm403, %v593, 0.0
  %v678 = vadd.f32 %v676, %v677
  %v679 = vsel %vm403, %v594, 0.0
  %v680 = vadd.f32 %v678, %v679
  %v681 = vsel %vm403, %v595, 0.0
  %v682 = vadd.f32 %v680, %v681
  %v683 = vsel %vm403, %v596, 0.0
  %v684 = vadd.f32 %v682, %v683
  %v685 = vsel %vm403, %v597, 0.0
  %v686 = vadd.f32 %v684, %v685
  %v687 = vsel %vm403, %v598, 0.0
  %v688 = vadd.f32 %v686, %v687
  %v689 = vsel %vm403, %v599, 0.0
  %v690 = vadd.f32 %v688, %v689
  %v691 = vsel %vm403, %v600, 0.0
  %v692 = vadd.f32 %v690, %v691
  %v693 = vsel %vm403, %v601, 0.0
  %v694 = vadd.f32 %v692, %v693
  %v695 = vsel %vm403, %v602, 0.0
  %v696 = vadd.f32 %v694, %v695
  %v697 = vsel %vm403, %v603, 0.0
  %v698 = vadd.f32 %v696, %v697
  %v699 = vsel %vm403, %v604, 0.0
  %v700 = vadd.f32 %v698, %v699
  %v701 = vsel %vm403, %v605, 0.0
  %v702 = vadd.f32 %v700, %v701
  %v703 = vrot.slane %v702, 4
  %v704 = vadd.f32 %v702, %v703
  %v705 = vrot.slane %v704, 2
  %v706 = vadd.f32 %v704, %v705
  %v707 = vrot.slane %v706, 1
  %v708 = vadd.f32 %v706, %v707
  %v709 = vmul.f32 %v708, 0.0025510204
  %v710 = vadd.f32 %v709, 1e-05
  %v711 = vrsqrt.pop %v710
  %v712 = vmul.f32 %v711, %v710
  %v713 = vmul.f32 %v712, %v711
  %v714 = vmul.f32 0.5, %v713
  %v715 = vsub.f32 1.5, %v714
  %v716 = vmul.f32 %v711, %v715
  %vm717 = vweird.f32 %v710
  %vm718 = vweird.f32 %v711
  %vm719 = vmor %vm717, %vm718
  %v720 = vsel %vm719, %v711, %v716
  %v721 = vmul.f32 %v401, %v720
  %v723 = vperm.slane %v721, 0
  %v725 = vmul.f32 %v508, %v723
  %v726 = vmul.f32 %v509, %v723
  %v727 = vmul.f32 %v510, %v723
  %v728 = vmul.f32 %v511, %v723
  %v729 = vmul.f32 %v512, %v723
  %v730 = vmul.f32 %v513, %v723
  %v731 = vmul.f32 %v514, %v723
  %v732 = vmul.f32 %v515, %v723
  %v733 = vmul.f32 %v516, %v723
  %v734 = vmul.f32 %v517, %v723
  %v735 = vmul.f32 %v518, %v723
  %v736 = vmul.f32 %v519, %v723
  %v737 = vmul.f32 %v520, %v723
  %v738 = vmul.f32 %v521, %v723
  %v739 = vmul.f32 %v522, %v723
  %v740 = vmul.f32 %v523, %v723
  %v741 = vmul.f32 %v524, %v723
  %v742 = vmul.f32 %v525, %v723
  %v743 = vmul.f32 %v526, %v723
  %v744 = vmul.f32 %v527, %v723
  %v745 = vmul.f32 %v528, %v723
  %v746 = vmul.f32 %v529, %v723
  %v747 = vmul.f32 %v530, %v723
  %v748 = vmul.f32 %v531, %v723
  %v749 = vmul.f32 %v532, %v723
  %v750 = vmul.f32 %v533, %v723
  %v751 = vmul.f32 %v534, %v723
  %v752 = vmul.f32 %v535, %v723
  %v753 = vmul.f32 %v536, %v723
  %v754 = vmul.f32 %v537, %v723
  %v755 = vmul.f32 %v538, %v723
  %v756 = vmul.f32 %v539, %v723
  %v757 = vmul.f32 %v540, %v723
  %v758 = vmul.f32 %v541, %v723
  %v759 = vmul.f32 %v542, %v723
  %v760 = vmul.f32 %v543, %v723
  %v761 = vmul.f32 %v544, %v723
  %v762 = vmul.f32 %v545, %v723
  %v763 = vmul.f32 %v546, %v723
  %v764 = vmul.f32 %v547, %v723
  %v765 = vmul.f32 %v548, %v723
  %v766 = vmul.f32 %v549, %v723
  %v767 = vmul.f32 %v550, %v723
  %v768 = vmul.f32 %v551, %v723
  %v769 = vmul.f32 %v552, %v723
  %v770 = vmul.f32 %v553, %v723
  %v771 = vmul.f32 %v554, %v723
  %v772 = vmul.f32 %v555, %v723
  %v773 = vmul.f32 %v556, %v723
  %v775 = vperm.slane %v402, 0
  %v777 = vadd.f32 %v725, %v775
  %v778 = vadd.f32 %v726, %v775
  %v779 = vadd.f32 %v727, %v775
  %v780 = vadd.f32 %v728, %v775
  %v781 = vadd.f32 %v729, %v775
  %v782 = vadd.f32 %v730, %v775
  %v783 = vadd.f32 %v731, %v775
  %v784 = vadd.f32 %v732, %v775
  %v785 = vadd.f32 %v733, %v775
  %v786 = vadd.f32 %v734, %v775
  %v787 = vadd.f32 %v735, %v775
  %v788 = vadd.f32 %v736, %v775
  %v789 = vadd.f32 %v737, %v775
  %v790 = vadd.f32 %v738, %v775
  %v791 = vadd.f32 %v739, %v775
  %v792 = vadd.f32 %v740, %v775
  %v793 = vadd.f32 %v741, %v775
  %v794 = vadd.f32 %v742, %v775
  %v795 = vadd.f32 %v743, %v775
  %v796 = vadd.f32 %v744, %v775
  %v797 = vadd.f32 %v745, %v775
  %v798 = vadd.f32 %v746, %v775
  %v799 = vadd.f32 %v747, %v775
  %v800 = vadd.f32 %v748, %v775
  %v801 = vadd.f32 %v749, %v775
  %v802 = vadd.f32 %v750, %v775
  %v803 = vadd.f32 %v751, %v775
  %v804 = vadd.f32 %v752, %v775
  %v805 = vadd.f32 %v753, %v775
  %v806 = vadd.f32 %v754, %v775
  %v807 = vadd.f32 %v755, %v775
  %v808 = vadd.f32 %v756, %v775
  %v809 = vadd.f32 %v757, %v775
  %v810 = vadd.f32 %v758, %v775
  %v811 = vadd.f32 %v759, %v775
  %v812 = vadd.f32 %v760, %v775
  %v813 = vadd.f32 %v761, %v775
  %v814 = vadd.f32 %v762, %v775
  %v815 = vadd.f32 %v763, %v775
  %v816 = vadd.f32 %v764, %v775
  %v817 = vadd.f32 %v765, %v775
  %v818 = vadd.f32 %v766, %v775
  %v819 = vadd.f32 %v767, %v775
  %v820 = vadd.f32 %v768, %v775
  %v821 = vadd.f32 %v769, %v775
  %v822 = vadd.f32 %v770, %v775
  %v823 = vadd.f32 %v771, %v775
  %v824 = vadd.f32 %v772, %v775
  %v825 = vadd.f32 %v773, %v775
  %v826 = vmax.f32 %v777, 0.0
  %v827 = vmax.f32 %v778, 0.0
  %v828 = vmax.f32 %v779, 0.0
  %v829 = vmax.f32 %v780, 0.0
  %v830 = vmax.f32 %v781, 0.0
  %v831 = vmax.f32 %v782, 0.0
  %v832 = vmax.f32 %v783, 0.0
  %v833 = vmax.f32 %v784, 0.0
  %v834 = vmax.f32 %v785, 0.0
  %v835 = vmax.f32 %v786, 0.0
  %v836 = vmax.f32 %v787, 0.0
  %v837 = vmax.f32 %v788, 0.0
  %v838 = vmax.f32 %v789, 0.0
  %v839 = vmax.f32 %v790, 0.0
  %v840 = vmax.f32 %v791, 0.0
  %v841 = vmax.f32 %v792, 0.0
  %v842 = vmax.f32 %v793, 0.0
  %v843 = vmax.f32 %v794, 0.0
  %v844 = vmax.f32 %v795, 0.0
  %v845 = vmax.f32 %v796, 0.0
  %v846 = vmax.f32 %v797, 0.0
  %v847 = vmax.f32 %v798, 0.0
  %v848 = vmax.f32 %v799, 0.0
  %v849 = vmax.f32 %v800, 0.0
  %v850 = vmax.f32 %v801, 0.0
  %v851 = vmax.f32 %v802, 0.0
  %v852 = vmax.f32 %v803, 0.0
  %v853 = vmax.f32 %v804, 0.0
  %v854 = vmax.f32 %v805, 0.0
  %v855 = vmax.f32 %v806, 0.0
  %v856 = vmax.f32 %v807, 0.0
  %v857 = vmax.f32 %v808, 0.0
  %v858 = vmax.f32 %v809, 0.0
  %v859 = vmax.f32 %v810, 0.0
  %v860 = vmax.f32 %v811, 0.0
  %v861 = vmax.f32 %v812, 0.0
  %v862 = vmax.f32 %v813, 0.0
  %v863 = vmax.f32 %v814, 0.0
  %v864 = vmax.f32 %v815, 0.0
  %v865 = vmax.f32 %v816, 0.0
  %v866 = vmax.f32 %v817, 0.0
  %v867 = vmax.f32 %v818, 0.0
  %v868 = vmax.f32 %v819, 0.0
  %v869 = vmax.f32 %v820, 0.0
  %v870 = vmax.f32 %v821, 0.0
  %v871 = vmax.f32 %v822, 0.0
  %v872 = vmax.f32 %v823, 0.0
  %v873 = vmax.f32 %v824, 0.0
  %v874 = vmax.f32 %v825, 0.0
  %vm887 = vcmask 1041408
  %v888 = vrot.slane %v862, 6
  %v889 = vrot.slane %v863, 6
  %v890 = vsel %vm887, %v888, %v889
  %v891 = vrot.slane %v864, 6
  %v892 = vsel %vm887, %v889, %v891
  %v893 = vrot.slane %v865, 6
  %v894 = vsel %vm887, %v891, %v893
  %v895 = vrot.slane %v866, 6
  %v896 = vsel %vm887, %v893, %v895
  %v897 = vrot.slane %v867, 6
  %v898 = vsel %vm887, %v895, %v897
  %v899 = vrot.slane %v868, 6
  %v900 = vsel %vm887, %v897, %v899
  %v901 = vrot.slane %v869, 6
  %v902 = vsel %vm887, %v899, %v901
  %v903 = vrot.slane %v870, 6
  %v904 = vsel %vm887, %v901, %v903
  %v905 = vrot.slane %v871, 6
  %v906 = vsel %vm887, %v903, %v905
  %v907 = vrot.slane %v872, 6
  %v908 = vsel %vm887, %v905, %v907
  %v909 = vrot.slane %v873, 6
  %v910 = vsel %vm887, %v907, %v909
  %v923 = vld [vmem:[%s9] sm:$0xff]
  %v924 = vld [vmem:[%s9 + $0x8] sm:$0xff]
  %v925 = vld [vmem:[%s9 + $0x10] sm:$0xff]
  %v926 = vld [vmem:[%s9 + $0x18] sm:$0xff]
  %v927 = vld [vmem:[%s9 + $0x20] sm:$0xff]
  %v928 = vld [vmem:[%s9 + $0x28] sm:$0xff]
  %v929 = vld [vmem:[%s9 + $0x30] sm:$0xff]
  %v930 = vld [vmem:[%s9 + $0x38] sm:$0xff]
  %v931 = vld [vmem:[%s9 + $0x40] sm:$0xff]
  %v932 = vld [vmem:[%s9 + $0x48] sm:$0xff]
  %v933 = vld [vmem:[%s9 + $0x50] sm:$0xff]
  %v934 = vld [vmem:[%s9 + $0x58] sm:$0xff]
  %v935 = vld [vmem:[%s9 + $0x60] sm:$0x3]
  %937 = vset.pattern.permute.xlu0 0
  %938 = vperm.xlu0 %937, %v923
  %v939 = vpop.permute.xlu0 %938
  %942 = vset.pattern.permute.xlu0 0
  %943 = vperm.xlu0 %942, %v924
  %v944 = vpop.permute.xlu0 %943
  %947 = vset.pattern.permute.xlu0 0
  %948 = vperm.xlu0 %947, %v925
  %v949 = vpop.permute.xlu0 %948
  %952 = vset.pattern.permute.xlu0 0
  %953 = vperm.xlu0 %952, %v926
  %v954 = vpop.permute.xlu0 %953
  %957 = vset.pattern.permute.xlu0 0
  %958 = vperm.xlu0 %957, %v927
  %v959 = vpop.permute.xlu0 %958
  %962 = vset.pattern.permute.xlu0 0
  %963 = vperm.xlu0 %962, %v928
  %v964 = vpop.permute.xlu0 %963
  %967 = vset.pattern.permute.xlu0 0
  %968 = vperm.xlu0 %967, %v929
  %v969 = vpop.permute.xlu0 %968
  %972 = vset.pattern.permute.xlu0 0
  %973 = vperm.xlu0 %972, %v930
  %v974 = vpop.permute.xlu0 %973
  %977 = vset.pattern.permute.xlu0 0
  %978 = vperm.xlu0 %977, %v931
  %v979 = vpop.permute.xlu0 %978
  %982 = vset.pattern.permute.xlu0 0
  %983 = vperm.xlu0 %982, %v932
  %v984 = vpop.permute.xlu0 %983
  %987 = vset.pattern.permute.xlu0 0
  %988 = vperm.xlu0 %987, %v933
  %v989 = vpop.permute.xlu0 %988
  %992 = vset.pattern.permute.xlu0 0
  %993 = vperm.xlu0 %992, %v934
  %v994 = vpop.permute.xlu0 %993
  %997 = vset.pattern.permute.xlu0 0
  %998 = vperm.xlu0 %997, %v935
  %v999 = vpop.permute.xlu0 %998
  %v1001 = vmul.f32 %v939, 0.0
  %v1002 = vmul.f32 %v890, %v944
  %v1003 = vmul.f32 %v892, %v949
  %v1004 = vmul.f32 %v894, %v954
  %v1005 = vmul.f32 %v896, %v959
  %v1006 = vmul.f32 %v898, %v964
  %v1007 = vmul.f32 %v900, %v969
  %v1008 = vmul.f32 %v902, %v974
  %v1009 = vmul.f32 %v904, %v979
  %v1010 = vmul.f32 %v906, %v984
  %v1011 = vmul.f32 %v908, %v989
  %v1012 = vmul.f32 %v910, %v994
  %v1013 = vmul.f32 %v909, %v999
  %v1014 = vpack.c.bf16 %v1002, %v1001
  %v1015 = vpack.c.bf16 %v1004, %v1003
  %v1016 = vpack.c.bf16 %v1006, %v1005
  %v1017 = vpack.c.bf16 %v1008, %v1007
  %v1018 = vpack.c.bf16 %v1010, %v1009
  %v1019 = vpack.c.bf16 %v1012, %v1011
  %v1020 = vpack.c.bf16 %v1013, %v1013
  %v1021 = vld [vmem:[%s4] sm:$0xf]
  %v1022 = vld [vmem:[%s4 + $0x4] sm:$0xf]
  %v1023 = vld [vmem:[%s4 + $0x8] sm:$0xf]
  %v1024 = vld [vmem:[%s4 + $0xc] sm:$0xf]
  %v1025 = vld [vmem:[%s4 + $0x10] sm:$0xf]
  %v1026 = vld [vmem:[%s4 + $0x14] sm:$0xf]
  %v1027 = vld [vmem:[%s4 + $0x18] sm:$0xf]
  %v1028 = vld [vmem:[%s4 + $0x1c] sm:$0xf]
  %vm1041 = vcmask 1042432
  %v1042 = vrot.slane %v850, 5
  %v1043 = vrot.slane %v851, 5
  %v1044 = vsel %vm1041, %v1042, %v1043
  %v1045 = vrot.slane %v852, 5
  %v1046 = vsel %vm1041, %v1043, %v1045
  %v1047 = vrot.slane %v853, 5
  %v1048 = vsel %vm1041, %v1045, %v1047
  %v1049 = vrot.slane %v854, 5
  %v1050 = vsel %vm1041, %v1047, %v1049
  %v1051 = vrot.slane %v855, 5
  %v1052 = vsel %vm1041, %v1049, %v1051
  %v1053 = vrot.slane %v856, 5
  %v1054 = vsel %vm1041, %v1051, %v1053
  %v1055 = vrot.slane %v857, 5
  %v1056 = vsel %vm1041, %v1053, %v1055
  %v1057 = vrot.slane %v858, 5
  %v1058 = vsel %vm1041, %v1055, %v1057
  %v1059 = vrot.slane %v859, 5
  %v1060 = vsel %vm1041, %v1057, %v1059
  %v1061 = vrot.slane %v860, 5
  %v1062 = vsel %vm1041, %v1059, %v1061
  %v1063 = vrot.slane %v861, 5
  %v1064 = vsel %vm1041, %v1061, %v1063
  %vm1078 = vcmask 1046528
  %v1079 = vsel %vm1078, 0.0, %v1042
  %1080 = vset.pattern.permute.xlu0 1
  %1081 = vperm.xlu0 %1080, %v923
  %v1082 = vpop.permute.xlu0 %1081
  %1084 = vset.pattern.permute.xlu0 1
  %1085 = vperm.xlu0 %1084, %v924
  %v1086 = vpop.permute.xlu0 %1085
  %1088 = vset.pattern.permute.xlu0 1
  %1089 = vperm.xlu0 %1088, %v925
  %v1090 = vpop.permute.xlu0 %1089
  %1092 = vset.pattern.permute.xlu0 1
  %1093 = vperm.xlu0 %1092, %v926
  %v1094 = vpop.permute.xlu0 %1093
  %1096 = vset.pattern.permute.xlu0 1
  %1097 = vperm.xlu0 %1096, %v927
  %v1098 = vpop.permute.xlu0 %1097
  %1100 = vset.pattern.permute.xlu0 1
  %1101 = vperm.xlu0 %1100, %v928
  %v1102 = vpop.permute.xlu0 %1101
  %1104 = vset.pattern.permute.xlu0 1
  %1105 = vperm.xlu0 %1104, %v929
  %v1106 = vpop.permute.xlu0 %1105
  %1108 = vset.pattern.permute.xlu0 1
  %1109 = vperm.xlu0 %1108, %v930
  %v1110 = vpop.permute.xlu0 %1109
  %1112 = vset.pattern.permute.xlu0 1
  %1113 = vperm.xlu0 %1112, %v931
  %v1114 = vpop.permute.xlu0 %1113
  %1116 = vset.pattern.permute.xlu0 1
  %1117 = vperm.xlu0 %1116, %v932
  %v1118 = vpop.permute.xlu0 %1117
  %1120 = vset.pattern.permute.xlu0 1
  %1121 = vperm.xlu0 %1120, %v933
  %v1122 = vpop.permute.xlu0 %1121
  %1124 = vset.pattern.permute.xlu0 1
  %1125 = vperm.xlu0 %1124, %v934
  %v1126 = vpop.permute.xlu0 %1125
  %1128 = vset.pattern.permute.xlu0 1
  %1129 = vperm.xlu0 %1128, %v935
  %v1130 = vpop.permute.xlu0 %1129
  %v1132 = vmul.f32 %v1079, %v1082
  %v1133 = vmul.f32 %v1044, %v1086
  %v1134 = vmul.f32 %v1046, %v1090
  %v1135 = vmul.f32 %v1048, %v1094
  %v1136 = vmul.f32 %v1050, %v1098
  %v1137 = vmul.f32 %v1052, %v1102
  %v1138 = vmul.f32 %v1054, %v1106
  %v1139 = vmul.f32 %v1056, %v1110
  %v1140 = vmul.f32 %v1058, %v1114
  %v1141 = vmul.f32 %v1060, %v1118
  %v1142 = vmul.f32 %v1062, %v1122
  %v1143 = vmul.f32 %v1064, %v1126
  %v1144 = vmul.f32 %v1063, %v1130
  %v1145 = vpack.c.bf16 %v1133, %v1132
  %v1146 = vpack.c.bf16 %v1135, %v1134
  %v1147 = vpack.c.bf16 %v1137, %v1136
  %v1148 = vpack.c.bf16 %v1139, %v1138
  %v1149 = vpack.c.bf16 %v1141, %v1140
  %v1150 = vpack.c.bf16 %v1143, %v1142
  %v1151 = vpack.c.bf16 %v1144, %v1144
  %v1152 = vld [vmem:[%s4 + $0x20] sm:$0xf]
  %v1153 = vld [vmem:[%s4 + $0x24] sm:$0xf]
  %v1154 = vld [vmem:[%s4 + $0x28] sm:$0xf]
  %v1155 = vld [vmem:[%s4 + $0x2c] sm:$0xf]
  %v1156 = vld [vmem:[%s4 + $0x30] sm:$0xf]
  %v1157 = vld [vmem:[%s4 + $0x34] sm:$0xf]
  %v1158 = vld [vmem:[%s4 + $0x38] sm:$0xf]
  %v1159 = vld [vmem:[%s4 + $0x3c] sm:$0xf]
  %v1168 = vunpack.c.l.b16 %v1152
  %v1169 = vunpack.c.l.b16 %v1153
  %v1170 = vunpack.c.l.b16 %v1154
  %v1171 = vunpack.c.l.b16 %v1155
  %v1172 = vunpack.c.l.b16 %v1156
  %v1173 = vunpack.c.l.b16 %v1157
  %v1174 = vunpack.c.l.b16 %v1158
  %v1175 = vunpack.c.l.b16 %v1159
  %v1176 = vpack.c.b16 %v1169, %v1168
  %v1177 = vpack.c.b16 %v1171, %v1170
  %v1178 = vpack.c.b16 %v1173, %v1172
  %v1179 = vpack.c.b16 %v1175, %v1174
  %v1185 = vsel %vm403, %v1145, 0
  %v1188 = vsel %vm403, %v1146, 0
  %v1191 = vsel %vm403, %v1147, 0
  %v1194 = vsel %vm403, %v1148, 0
  %v1197 = vsel %vm403, %v1149, 0
  %v1200 = vsel %vm403, %v1150, 0
  %v1203 = vsel %vm403, %v1151, 0
  %1205 = vmatpush.bf16.msra.mxu0 0
  %1206 = vmatpush.bf16.msra.mxu0 0
  %1207 = vmatpush.bf16.msra.mxu0 0
  %1208 = vmatpush.bf16.msra.mxu0 0
  %1209 = vmatpush.bf16.msra.mxu0 %v1179
  %1210 = vmatpush.bf16.msra.mxu0 %v1178
  %1211 = vmatpush.bf16.msra.mxu0 %v1177
  %1212 = vmatpush.bf16.msra.mxu0 %v1176
  %1213 = vmatmul.bf16.gmra.mxu0 %v1185
  %v1214 = vpop.f32.mrf.mxu0
  %v1215 = vadd.f32 0.0, %v1214
  %v1216 = vpop.f32.mrf.mxu0
  %v1217 = vadd.f32 0.0, %v1216
  %1218 = vmatmul.bf16.gmra.mxu0 %v1188
  %v1219 = vpop.f32.mrf.mxu0
  %v1220 = vadd.f32 0.0, %v1219
  %v1221 = vpop.f32.mrf.mxu0
  %v1222 = vadd.f32 0.0, %v1221
  %1223 = vmatmul.bf16.gmra.mxu0 %v1191
  %v1224 = vpop.f32.mrf.mxu0
  %v1225 = vadd.f32 0.0, %v1224
  %v1226 = vpop.f32.mrf.mxu0
  %v1227 = vadd.f32 0.0, %v1226
  %1228 = vmatmul.bf16.gmra.mxu0 %v1194
  %v1229 = vpop.f32.mrf.mxu0
  %v1230 = vadd.f32 0.0, %v1229
  %v1231 = vpop.f32.mrf.mxu0
  %v1232 = vadd.f32 0.0, %v1231
  %1233 = vmatmul.bf16.gmra.mxu0 %v1197
  %v1234 = vpop.f32.mrf.mxu0
  %v1235 = vadd.f32 0.0, %v1234
  %v1236 = vpop.f32.mrf.mxu0
  %v1237 = vadd.f32 0.0, %v1236
  %1238 = vmatmul.bf16.gmra.mxu0 %v1200
  %v1239 = vpop.f32.mrf.mxu0
  %v1240 = vadd.f32 0.0, %v1239
  %v1241 = vpop.f32.mrf.mxu0
  %v1242 = vadd.f32 0.0, %v1241
  %1243 = vmatmul.bf16.gmra.mxu0 %v1203
  %v1244 = vpop.f32.mrf.mxu0
  %v1245 = vadd.f32 0.0, %v1244
  %v1246 = vpop.f32.mrf.mxu0
  %1247 = vdwg.mxu0
  %v1256 = vunpack.c.l.b16 %v1021
  %v1257 = vunpack.c.l.b16 %v1022
  %v1258 = vunpack.c.l.b16 %v1023
  %v1259 = vunpack.c.l.b16 %v1024
  %v1260 = vunpack.c.l.b16 %v1025
  %v1261 = vunpack.c.l.b16 %v1026
  %v1262 = vunpack.c.l.b16 %v1027
  %v1263 = vunpack.c.l.b16 %v1028
  %v1264 = vpack.c.b16 %v1257, %v1256
  %v1265 = vpack.c.b16 %v1259, %v1258
  %v1266 = vpack.c.b16 %v1261, %v1260
  %v1267 = vpack.c.b16 %v1263, %v1262
  %v1273 = vsel %vm403, %v1014, 0
  %v1276 = vsel %vm403, %v1015, 0
  %v1279 = vsel %vm403, %v1016, 0
  %v1282 = vsel %vm403, %v1017, 0
  %v1285 = vsel %vm403, %v1018, 0
  %v1288 = vsel %vm403, %v1019, 0
  %v1291 = vsel %vm403, %v1020, 0
  %1293 = vmatpush.bf16.msra.mxu0 0
  %1294 = vmatpush.bf16.msra.mxu0 0
  %1295 = vmatpush.bf16.msra.mxu0 0
  %1296 = vmatpush.bf16.msra.mxu0 0
  %1297 = vmatpush.bf16.msra.mxu0 %v1267
  %1298 = vmatpush.bf16.msra.mxu0 %v1266
  %1299 = vmatpush.bf16.msra.mxu0 %v1265
  %1300 = vmatpush.bf16.msra.mxu0 %v1264
  %1301 = vmatmul.bf16.gmra.mxu0 %v1273
  %v1302 = vpop.f32.mrf.mxu0
  %v1303 = vadd.f32 %v1215, %v1302
  %v1304 = vpop.f32.mrf.mxu0
  %v1305 = vadd.f32 %v1217, %v1304
  %1306 = vmatmul.bf16.gmra.mxu0 %v1276
  %v1307 = vpop.f32.mrf.mxu0
  %v1308 = vadd.f32 %v1220, %v1307
  %v1309 = vpop.f32.mrf.mxu0
  %v1310 = vadd.f32 %v1222, %v1309
  %1311 = vmatmul.bf16.gmra.mxu0 %v1279
  %v1312 = vpop.f32.mrf.mxu0
  %v1313 = vadd.f32 %v1225, %v1312
  %v1314 = vpop.f32.mrf.mxu0
  %v1315 = vadd.f32 %v1227, %v1314
  %1316 = vmatmul.bf16.gmra.mxu0 %v1282
  %v1317 = vpop.f32.mrf.mxu0
  %v1318 = vadd.f32 %v1230, %v1317
  %v1319 = vpop.f32.mrf.mxu0
  %v1320 = vadd.f32 %v1232, %v1319
  %1321 = vmatmul.bf16.gmra.mxu0 %v1285
  %v1322 = vpop.f32.mrf.mxu0
  %v1323 = vadd.f32 %v1235, %v1322
  %v1324 = vpop.f32.mrf.mxu0
  %v1325 = vadd.f32 %v1237, %v1324
  %1326 = vmatmul.bf16.gmra.mxu0 %v1288
  %v1327 = vpop.f32.mrf.mxu0
  %v1328 = vadd.f32 %v1240, %v1327
  %v1329 = vpop.f32.mrf.mxu0
  %v1330 = vadd.f32 %v1242, %v1329
  %1331 = vmatmul.bf16.gmra.mxu0 %v1291
  %v1332 = vpop.f32.mrf.mxu0
  %v1333 = vadd.f32 %v1245, %v1332
  %v1334 = vpop.f32.mrf.mxu0
  %1335 = vdwg.mxu0
  %vm1337 = vcmask 1040384
  %v1338 = vrot.slane %v862, 7
  %v1339 = vrot.slane %v863, 7
  %v1340 = vsel %vm1337, %v1338, %v1339
  %v1341 = vrot.slane %v864, 7
  %v1342 = vsel %vm1337, %v1339, %v1341
  %v1343 = vrot.slane %v865, 7
  %v1344 = vsel %vm1337, %v1341, %v1343
  %v1345 = vrot.slane %v866, 7
  %v1346 = vsel %vm1337, %v1343, %v1345
  %v1347 = vrot.slane %v867, 7
  %v1348 = vsel %vm1337, %v1345, %v1347
  %v1349 = vrot.slane %v868, 7
  %v1350 = vsel %vm1337, %v1347, %v1349
  %v1351 = vrot.slane %v869, 7
  %v1352 = vsel %vm1337, %v1349, %v1351
  %v1353 = vrot.slane %v870, 7
  %v1354 = vsel %vm1337, %v1351, %v1353
  %v1355 = vrot.slane %v871, 7
  %v1356 = vsel %vm1337, %v1353, %v1355
  %v1357 = vrot.slane %v872, 7
  %v1358 = vsel %vm1337, %v1355, %v1357
  %v1359 = vrot.slane %v873, 7
  %v1360 = vsel %vm1337, %v1357, %v1359
  %v1361 = vrot.slane %v874, 7
  %v1362 = vsel %vm1337, %v1359, %v1361
  %v1376 = vsel %vm1078, 0.0, %v1338
  %1377 = vset.pattern.permute.xlu0 2
  %1378 = vperm.xlu0 %1377, %v923
  %v1379 = vpop.permute.xlu0 %1378
  %1381 = vset.pattern.permute.xlu0 2
  %1382 = vperm.xlu0 %1381, %v924
  %v1383 = vpop.permute.xlu0 %1382
  %1385 = vset.pattern.permute.xlu0 2
  %1386 = vperm.xlu0 %1385, %v925
  %v1387 = vpop.permute.xlu0 %1386
  %1389 = vset.pattern.permute.xlu0 2
  %1390 = vperm.xlu0 %1389, %v926
  %v1391 = vpop.permute.xlu0 %1390
  %1393 = vset.pattern.permute.xlu0 2
  %1394 = vperm.xlu0 %1393, %v927
  %v1395 = vpop.permute.xlu0 %1394
  %1397 = vset.pattern.permute.xlu0 2
  %1398 = vperm.xlu0 %1397, %v928
  %v1399 = vpop.permute.xlu0 %1398
  %1401 = vset.pattern.permute.xlu0 2
  %1402 = vperm.xlu0 %1401, %v929
  %v1403 = vpop.permute.xlu0 %1402
  %1405 = vset.pattern.permute.xlu0 2
  %1406 = vperm.xlu0 %1405, %v930
  %v1407 = vpop.permute.xlu0 %1406
  %1409 = vset.pattern.permute.xlu0 2
  %1410 = vperm.xlu0 %1409, %v931
  %v1411 = vpop.permute.xlu0 %1410
  %1413 = vset.pattern.permute.xlu0 2
  %1414 = vperm.xlu0 %1413, %v932
  %v1415 = vpop.permute.xlu0 %1414
  %1417 = vset.pattern.permute.xlu0 2
  %1418 = vperm.xlu0 %1417, %v933
  %v1419 = vpop.permute.xlu0 %1418
  %1421 = vset.pattern.permute.xlu0 2
  %1422 = vperm.xlu0 %1421, %v934
  %v1423 = vpop.permute.xlu0 %1422
  %1425 = vset.pattern.permute.xlu0 2
  %1426 = vperm.xlu0 %1425, %v935
  %v1427 = vpop.permute.xlu0 %1426
  %v1429 = vmul.f32 %v1376, %v1379
  %v1430 = vmul.f32 %v1340, %v1383
  %v1431 = vmul.f32 %v1342, %v1387
  %v1432 = vmul.f32 %v1344, %v1391
  %v1433 = vmul.f32 %v1346, %v1395
  %v1434 = vmul.f32 %v1348, %v1399
  %v1435 = vmul.f32 %v1350, %v1403
  %v1436 = vmul.f32 %v1352, %v1407
  %v1437 = vmul.f32 %v1354, %v1411
  %v1438 = vmul.f32 %v1356, %v1415
  %v1439 = vmul.f32 %v1358, %v1419
  %v1440 = vmul.f32 %v1360, %v1423
  %v1441 = vmul.f32 %v1362, %v1427
  %v1442 = vpack.c.bf16 %v1430, %v1429
  %v1443 = vpack.c.bf16 %v1432, %v1431
  %v1444 = vpack.c.bf16 %v1434, %v1433
  %v1445 = vpack.c.bf16 %v1436, %v1435
  %v1446 = vpack.c.bf16 %v1438, %v1437
  %v1447 = vpack.c.bf16 %v1440, %v1439
  %v1448 = vpack.c.bf16 %v1441, %v1441
  %v1449 = vld [vmem:[%s4 + $0x40] sm:$0xf]
  %v1450 = vld [vmem:[%s4 + $0x44] sm:$0xf]
  %v1451 = vld [vmem:[%s4 + $0x48] sm:$0xf]
  %v1452 = vld [vmem:[%s4 + $0x4c] sm:$0xf]
  %v1453 = vld [vmem:[%s4 + $0x50] sm:$0xf]
  %v1454 = vld [vmem:[%s4 + $0x54] sm:$0xf]
  %v1455 = vld [vmem:[%s4 + $0x58] sm:$0xf]
  %v1456 = vld [vmem:[%s4 + $0x5c] sm:$0xf]
  %v1465 = vunpack.c.l.b16 %v1449
  %v1466 = vunpack.c.l.b16 %v1450
  %v1467 = vunpack.c.l.b16 %v1451
  %v1468 = vunpack.c.l.b16 %v1452
  %v1469 = vunpack.c.l.b16 %v1453
  %v1470 = vunpack.c.l.b16 %v1454
  %v1471 = vunpack.c.l.b16 %v1455
  %v1472 = vunpack.c.l.b16 %v1456
  %v1473 = vpack.c.b16 %v1466, %v1465
  %v1474 = vpack.c.b16 %v1468, %v1467
  %v1475 = vpack.c.b16 %v1470, %v1469
  %v1476 = vpack.c.b16 %v1472, %v1471
  %v1482 = vsel %vm403, %v1442, 0
  %v1485 = vsel %vm403, %v1443, 0
  %v1488 = vsel %vm403, %v1444, 0
  %v1491 = vsel %vm403, %v1445, 0
  %v1494 = vsel %vm403, %v1446, 0
  %v1497 = vsel %vm403, %v1447, 0
  %v1500 = vsel %vm403, %v1448, 0
  %1502 = vmatpush.bf16.msra.mxu0 0
  %1503 = vmatpush.bf16.msra.mxu0 0
  %1504 = vmatpush.bf16.msra.mxu0 0
  %1505 = vmatpush.bf16.msra.mxu0 0
  %1506 = vmatpush.bf16.msra.mxu0 %v1476
  %1507 = vmatpush.bf16.msra.mxu0 %v1475
  %1508 = vmatpush.bf16.msra.mxu0 %v1474
  %1509 = vmatpush.bf16.msra.mxu0 %v1473
  %1510 = vmatmul.bf16.gmra.mxu0 %v1482
  %v1511 = vpop.f32.mrf.mxu0
  %v1512 = vadd.f32 0.0, %v1511
  %v1513 = vpop.f32.mrf.mxu0
  %v1514 = vadd.f32 0.0, %v1513
  %1515 = vmatmul.bf16.gmra.mxu0 %v1485
  %v1516 = vpop.f32.mrf.mxu0
  %v1517 = vadd.f32 0.0, %v1516
  %v1518 = vpop.f32.mrf.mxu0
  %v1519 = vadd.f32 0.0, %v1518
  %1520 = vmatmul.bf16.gmra.mxu0 %v1488
  %v1521 = vpop.f32.mrf.mxu0
  %v1522 = vadd.f32 0.0, %v1521
  %v1523 = vpop.f32.mrf.mxu0
  %v1524 = vadd.f32 0.0, %v1523
  %1525 = vmatmul.bf16.gmra.mxu0 %v1491
  %v1526 = vpop.f32.mrf.mxu0
  %v1527 = vadd.f32 0.0, %v1526
  %v1528 = vpop.f32.mrf.mxu0
  %v1529 = vadd.f32 0.0, %v1528
  %1530 = vmatmul.bf16.gmra.mxu0 %v1494
  %v1531 = vpop.f32.mrf.mxu0
  %v1532 = vadd.f32 0.0, %v1531
  %v1533 = vpop.f32.mrf.mxu0
  %v1534 = vadd.f32 0.0, %v1533
  %1535 = vmatmul.bf16.gmra.mxu0 %v1497
  %v1536 = vpop.f32.mrf.mxu0
  %v1537 = vadd.f32 0.0, %v1536
  %v1538 = vpop.f32.mrf.mxu0
  %v1539 = vadd.f32 0.0, %v1538
  %1540 = vmatmul.bf16.gmra.mxu0 %v1500
  %v1541 = vpop.f32.mrf.mxu0
  %v1542 = vadd.f32 0.0, %v1541
  %v1543 = vpop.f32.mrf.mxu0
  %1544 = vdwg.mxu0
  %v1545 = vadd.f32 %v1303, %v1512
  %v1546 = vadd.f32 %v1305, %v1514
  %v1547 = vadd.f32 %v1308, %v1517
  %v1548 = vadd.f32 %v1310, %v1519
  %v1549 = vadd.f32 %v1313, %v1522
  %v1550 = vadd.f32 %v1315, %v1524
  %v1551 = vadd.f32 %v1318, %v1527
  %v1552 = vadd.f32 %v1320, %v1529
  %v1553 = vadd.f32 %v1323, %v1532
  %v1554 = vadd.f32 %v1325, %v1534
  %v1555 = vadd.f32 %v1328, %v1537
  %v1556 = vadd.f32 %v1330, %v1539
  %v1557 = vadd.f32 %v1333, %v1542
  %v1558 = vrot.slane %v850, 6
  %v1559 = vrot.slane %v851, 6
  %v1560 = vsel %vm887, %v1558, %v1559
  %v1561 = vrot.slane %v852, 6
  %v1562 = vsel %vm887, %v1559, %v1561
  %v1563 = vrot.slane %v853, 6
  %v1564 = vsel %vm887, %v1561, %v1563
  %v1565 = vrot.slane %v854, 6
  %v1566 = vsel %vm887, %v1563, %v1565
  %v1567 = vrot.slane %v855, 6
  %v1568 = vsel %vm887, %v1565, %v1567
  %v1569 = vrot.slane %v856, 6
  %v1570 = vsel %vm887, %v1567, %v1569
  %v1571 = vrot.slane %v857, 6
  %v1572 = vsel %vm887, %v1569, %v1571
  %v1573 = vrot.slane %v858, 6
  %v1574 = vsel %vm887, %v1571, %v1573
  %v1575 = vrot.slane %v859, 6
  %v1576 = vsel %vm887, %v1573, %v1575
  %v1577 = vrot.slane %v860, 6
  %v1578 = vsel %vm887, %v1575, %v1577
  %v1579 = vrot.slane %v861, 6
  %v1580 = vsel %vm887, %v1577, %v1579
  %vm1594 = vcmask 1045504
  %v1595 = vsel %vm1594, 0.0, %v1558
  %1596 = vset.pattern.permute.xlu0 3
  %1597 = vperm.xlu0 %1596, %v923
  %v1598 = vpop.permute.xlu0 %1597
  %1600 = vset.pattern.permute.xlu0 3
  %1601 = vperm.xlu0 %1600, %v924
  %v1602 = vpop.permute.xlu0 %1601
  %1604 = vset.pattern.permute.xlu0 3
  %1605 = vperm.xlu0 %1604, %v925
  %v1606 = vpop.permute.xlu0 %1605
  %1608 = vset.pattern.permute.xlu0 3
  %1609 = vperm.xlu0 %1608, %v926
  %v1610 = vpop.permute.xlu0 %1609
  %1612 = vset.pattern.permute.xlu0 3
  %1613 = vperm.xlu0 %1612, %v927
  %v1614 = vpop.permute.xlu0 %1613
  %1616 = vset.pattern.permute.xlu0 3
  %1617 = vperm.xlu0 %1616, %v928
  %v1618 = vpop.permute.xlu0 %1617
  %1620 = vset.pattern.permute.xlu0 3
  %1621 = vperm.xlu0 %1620, %v929
  %v1622 = vpop.permute.xlu0 %1621
  %1624 = vset.pattern.permute.xlu0 3
  %1625 = vperm.xlu0 %1624, %v930
  %v1626 = vpop.permute.xlu0 %1625
  %1628 = vset.pattern.permute.xlu0 3
  %1629 = vperm.xlu0 %1628, %v931
  %v1630 = vpop.permute.xlu0 %1629
  %1632 = vset.pattern.permute.xlu0 3
  %1633 = vperm.xlu0 %1632, %v932
  %v1634 = vpop.permute.xlu0 %1633
  %1636 = vset.pattern.permute.xlu0 3
  %1637 = vperm.xlu0 %1636, %v933
  %v1638 = vpop.permute.xlu0 %1637
  %1640 = vset.pattern.permute.xlu0 3
  %1641 = vperm.xlu0 %1640, %v934
  %v1642 = vpop.permute.xlu0 %1641
  %1644 = vset.pattern.permute.xlu0 3
  %1645 = vperm.xlu0 %1644, %v935
  %v1646 = vpop.permute.xlu0 %1645
  %v1648 = vmul.f32 %v1595, %v1598
  %v1649 = vmul.f32 %v1560, %v1602
  %v1650 = vmul.f32 %v1562, %v1606
  %v1651 = vmul.f32 %v1564, %v1610
  %v1652 = vmul.f32 %v1566, %v1614
  %v1653 = vmul.f32 %v1568, %v1618
  %v1654 = vmul.f32 %v1570, %v1622
  %v1655 = vmul.f32 %v1572, %v1626
  %v1656 = vmul.f32 %v1574, %v1630
  %v1657 = vmul.f32 %v1576, %v1634
  %v1658 = vmul.f32 %v1578, %v1638
  %v1659 = vmul.f32 %v1580, %v1642
  %v1660 = vmul.f32 %v1579, %v1646
  %v1661 = vpack.c.bf16 %v1649, %v1648
  %v1662 = vpack.c.bf16 %v1651, %v1650
  %v1663 = vpack.c.bf16 %v1653, %v1652
  %v1664 = vpack.c.bf16 %v1655, %v1654
  %v1665 = vpack.c.bf16 %v1657, %v1656
  %v1666 = vpack.c.bf16 %v1659, %v1658
  %v1667 = vpack.c.bf16 %v1660, %v1660
  %v1668 = vld [vmem:[%s4 + $0x60] sm:$0xf]
  %v1669 = vld [vmem:[%s4 + $0x64] sm:$0xf]
  %v1670 = vld [vmem:[%s4 + $0x68] sm:$0xf]
  %v1671 = vld [vmem:[%s4 + $0x6c] sm:$0xf]
  %v1672 = vld [vmem:[%s4 + $0x70] sm:$0xf]
  %v1673 = vld [vmem:[%s4 + $0x74] sm:$0xf]
  %v1674 = vld [vmem:[%s4 + $0x78] sm:$0xf]
  %v1675 = vld [vmem:[%s4 + $0x7c] sm:$0xf]
  %v1684 = vunpack.c.l.b16 %v1668
  %v1685 = vunpack.c.l.b16 %v1669
  %v1686 = vunpack.c.l.b16 %v1670
  %v1687 = vunpack.c.l.b16 %v1671
  %v1688 = vunpack.c.l.b16 %v1672
  %v1689 = vunpack.c.l.b16 %v1673
  %v1690 = vunpack.c.l.b16 %v1674
  %v1691 = vunpack.c.l.b16 %v1675
  %v1692 = vpack.c.b16 %v1685, %v1684
  %v1693 = vpack.c.b16 %v1687, %v1686
  %v1694 = vpack.c.b16 %v1689, %v1688
  %v1695 = vpack.c.b16 %v1691, %v1690
  %v1701 = vsel %vm403, %v1661, 0
  %v1704 = vsel %vm403, %v1662, 0
  %v1707 = vsel %vm403, %v1663, 0
  %v1710 = vsel %vm403, %v1664, 0
  %v1713 = vsel %vm403, %v1665, 0
  %v1716 = vsel %vm403, %v1666, 0
  %v1719 = vsel %vm403, %v1667, 0
  %1721 = vmatpush.bf16.msra.mxu0 0
  %1722 = vmatpush.bf16.msra.mxu0 0
  %1723 = vmatpush.bf16.msra.mxu0 0
  %1724 = vmatpush.bf16.msra.mxu0 0
  %1725 = vmatpush.bf16.msra.mxu0 %v1695
  %1726 = vmatpush.bf16.msra.mxu0 %v1694
  %1727 = vmatpush.bf16.msra.mxu0 %v1693
  %1728 = vmatpush.bf16.msra.mxu0 %v1692
  %1729 = vmatmul.bf16.gmra.mxu0 %v1701
  %v1730 = vpop.f32.mrf.mxu0
  %v1731 = vadd.f32 0.0, %v1730
  %v1732 = vpop.f32.mrf.mxu0
  %v1733 = vadd.f32 0.0, %v1732
  %1734 = vmatmul.bf16.gmra.mxu0 %v1704
  %v1735 = vpop.f32.mrf.mxu0
  %v1736 = vadd.f32 0.0, %v1735
  %v1737 = vpop.f32.mrf.mxu0
  %v1738 = vadd.f32 0.0, %v1737
  %1739 = vmatmul.bf16.gmra.mxu0 %v1707
  %v1740 = vpop.f32.mrf.mxu0
  %v1741 = vadd.f32 0.0, %v1740
  %v1742 = vpop.f32.mrf.mxu0
  %v1743 = vadd.f32 0.0, %v1742
  %1744 = vmatmul.bf16.gmra.mxu0 %v1710
  %v1745 = vpop.f32.mrf.mxu0
  %v1746 = vadd.f32 0.0, %v1745
  %v1747 = vpop.f32.mrf.mxu0
  %v1748 = vadd.f32 0.0, %v1747
  %1749 = vmatmul.bf16.gmra.mxu0 %v1713
  %v1750 = vpop.f32.mrf.mxu0
  %v1751 = vadd.f32 0.0, %v1750
  %v1752 = vpop.f32.mrf.mxu0
  %v1753 = vadd.f32 0.0, %v1752
  %1754 = vmatmul.bf16.gmra.mxu0 %v1716
  %v1755 = vpop.f32.mrf.mxu0
  %v1756 = vadd.f32 0.0, %v1755
  %v1757 = vpop.f32.mrf.mxu0
  %v1758 = vadd.f32 0.0, %v1757
  %1759 = vmatmul.bf16.gmra.mxu0 %v1719
  %v1760 = vpop.f32.mrf.mxu0
  %v1761 = vadd.f32 0.0, %v1760
  %v1762 = vpop.f32.mrf.mxu0
  %1763 = vdwg.mxu0
  %v1764 = vadd.f32 %v1545, %v1731
  %v1765 = vadd.f32 %v1546, %v1733
  %v1766 = vadd.f32 %v1547, %v1736
  %v1767 = vadd.f32 %v1548, %v1738
  %v1768 = vadd.f32 %v1549, %v1741
  %v1769 = vadd.f32 %v1550, %v1743
  %v1770 = vadd.f32 %v1551, %v1746
  %v1771 = vadd.f32 %v1552, %v1748
  %v1772 = vadd.f32 %v1553, %v1751
  %v1773 = vadd.f32 %v1554, %v1753
  %v1774 = vadd.f32 %v1555, %v1756
  %v1775 = vadd.f32 %v1556, %v1758
  %v1776 = vadd.f32 %v1557, %v1761
  %v1789 = vrot.slane %v838, 1
  %v1790 = vrot.slane %v839, 1
  %v1791 = vsel %vm1078, %v1789, %v1790
  %v1792 = vrot.slane %v840, 1
  %v1793 = vsel %vm1078, %v1790, %v1792
  %v1794 = vrot.slane %v841, 1
  %v1795 = vsel %vm1078, %v1792, %v1794
  %v1796 = vrot.slane %v842, 1
  %v1797 = vsel %vm1078, %v1794, %v1796
  %v1798 = vrot.slane %v843, 1
  %v1799 = vsel %vm1078, %v1796, %v1798
  %v1800 = vrot.slane %v844, 1
  %v1801 = vsel %vm1078, %v1798, %v1800
  %v1802 = vrot.slane %v845, 1
  %v1803 = vsel %vm1078, %v1800, %v1802
  %v1804 = vrot.slane %v846, 1
  %v1805 = vsel %vm1078, %v1802, %v1804
  %v1806 = vrot.slane %v847, 1
  %v1807 = vsel %vm1078, %v1804, %v1806
  %v1808 = vrot.slane %v848, 1
  %v1809 = vsel %vm1078, %v1806, %v1808
  %v1810 = vrot.slane %v849, 1
  %v1811 = vsel %vm1078, %v1808, %v1810
  %v1812 = vrot.slane %v850, 1
  %v1813 = vsel %vm1078, %v1810, %v1812
  %v1827 = vsel %vm1337, 0.0, %v1791
  %1828 = vset.pattern.permute.xlu0 4
  %1829 = vperm.xlu0 %1828, %v923
  %v1830 = vpop.permute.xlu0 %1829
  %1832 = vset.pattern.permute.xlu0 4
  %1833 = vperm.xlu0 %1832, %v924
  %v1834 = vpop.permute.xlu0 %1833
  %1836 = vset.pattern.permute.xlu0 4
  %1837 = vperm.xlu0 %1836, %v925
  %v1838 = vpop.permute.xlu0 %1837
  %1840 = vset.pattern.permute.xlu0 4
  %1841 = vperm.xlu0 %1840, %v926
  %v1842 = vpop.permute.xlu0 %1841
  %1844 = vset.pattern.permute.xlu0 4
  %1845 = vperm.xlu0 %1844, %v927
  %v1846 = vpop.permute.xlu0 %1845
  %1848 = vset.pattern.permute.xlu0 4
  %1849 = vperm.xlu0 %1848, %v928
  %v1850 = vpop.permute.xlu0 %1849
  %1852 = vset.pattern.permute.xlu0 4
  %1853 = vperm.xlu0 %1852, %v929
  %v1854 = vpop.permute.xlu0 %1853
  %1856 = vset.pattern.permute.xlu0 4
  %1857 = vperm.xlu0 %1856, %v930
  %v1858 = vpop.permute.xlu0 %1857
  %1860 = vset.pattern.permute.xlu0 4
  %1861 = vperm.xlu0 %1860, %v931
  %v1862 = vpop.permute.xlu0 %1861
  %1864 = vset.pattern.permute.xlu0 4
  %1865 = vperm.xlu0 %1864, %v932
  %v1866 = vpop.permute.xlu0 %1865
  %1868 = vset.pattern.permute.xlu0 4
  %1869 = vperm.xlu0 %1868, %v933
  %v1870 = vpop.permute.xlu0 %1869
  %1872 = vset.pattern.permute.xlu0 4
  %1873 = vperm.xlu0 %1872, %v934
  %v1874 = vpop.permute.xlu0 %1873
  %1876 = vset.pattern.permute.xlu0 4
  %1877 = vperm.xlu0 %1876, %v935
  %v1878 = vpop.permute.xlu0 %1877
  %v1880 = vmul.f32 %v1827, %v1830
  %v1881 = vmul.f32 %v1793, %v1834
  %v1882 = vmul.f32 %v1795, %v1838
  %v1883 = vmul.f32 %v1797, %v1842
  %v1884 = vmul.f32 %v1799, %v1846
  %v1885 = vmul.f32 %v1801, %v1850
  %v1886 = vmul.f32 %v1803, %v1854
  %v1887 = vmul.f32 %v1805, %v1858
  %v1888 = vmul.f32 %v1807, %v1862
  %v1889 = vmul.f32 %v1809, %v1866
  %v1890 = vmul.f32 %v1811, %v1870
  %v1891 = vmul.f32 %v1813, %v1874
  %v1892 = vmul.f32 %v1812, %v1878
  %v1893 = vpack.c.bf16 %v1881, %v1880
  %v1894 = vpack.c.bf16 %v1883, %v1882
  %v1895 = vpack.c.bf16 %v1885, %v1884
  %v1896 = vpack.c.bf16 %v1887, %v1886
  %v1897 = vpack.c.bf16 %v1889, %v1888
  %v1898 = vpack.c.bf16 %v1891, %v1890
  %v1899 = vpack.c.bf16 %v1892, %v1892
  %v1900 = vld [vmem:[%s4 + $0x80] sm:$0xf]
  %v1901 = vld [vmem:[%s4 + $0x84] sm:$0xf]
  %v1902 = vld [vmem:[%s4 + $0x88] sm:$0xf]
  %v1903 = vld [vmem:[%s4 + $0x8c] sm:$0xf]
  %v1904 = vld [vmem:[%s4 + $0x90] sm:$0xf]
  %v1905 = vld [vmem:[%s4 + $0x94] sm:$0xf]
  %v1906 = vld [vmem:[%s4 + $0x98] sm:$0xf]
  %v1907 = vld [vmem:[%s4 + $0x9c] sm:$0xf]
  %v1916 = vunpack.c.l.b16 %v1900
  %v1917 = vunpack.c.l.b16 %v1901
  %v1918 = vunpack.c.l.b16 %v1902
  %v1919 = vunpack.c.l.b16 %v1903
  %v1920 = vunpack.c.l.b16 %v1904
  %v1921 = vunpack.c.l.b16 %v1905
  %v1922 = vunpack.c.l.b16 %v1906
  %v1923 = vunpack.c.l.b16 %v1907
  %v1924 = vpack.c.b16 %v1917, %v1916
  %v1925 = vpack.c.b16 %v1919, %v1918
  %v1926 = vpack.c.b16 %v1921, %v1920
  %v1927 = vpack.c.b16 %v1923, %v1922
  %v1933 = vsel %vm403, %v1893, 0
  %v1936 = vsel %vm403, %v1894, 0
  %v1939 = vsel %vm403, %v1895, 0
  %v1942 = vsel %vm403, %v1896, 0
  %v1945 = vsel %vm403, %v1897, 0
  %v1948 = vsel %vm403, %v1898, 0
  %v1951 = vsel %vm403, %v1899, 0
  %1953 = vmatpush.bf16.msra.mxu0 0
  %1954 = vmatpush.bf16.msra.mxu0 0
  %1955 = vmatpush.bf16.msra.mxu0 0
  %1956 = vmatpush.bf16.msra.mxu0 0
  %1957 = vmatpush.bf16.msra.mxu0 %v1927
  %1958 = vmatpush.bf16.msra.mxu0 %v1926
  %1959 = vmatpush.bf16.msra.mxu0 %v1925
  %1960 = vmatpush.bf16.msra.mxu0 %v1924
  %1961 = vmatmul.bf16.gmra.mxu0 %v1933
  %v1962 = vpop.f32.mrf.mxu0
  %v1963 = vadd.f32 0.0, %v1962
  %v1964 = vpop.f32.mrf.mxu0
  %v1965 = vadd.f32 0.0, %v1964
  %1966 = vmatmul.bf16.gmra.mxu0 %v1936
  %v1967 = vpop.f32.mrf.mxu0
  %v1968 = vadd.f32 0.0, %v1967
  %v1969 = vpop.f32.mrf.mxu0
  %v1970 = vadd.f32 0.0, %v1969
  %1971 = vmatmul.bf16.gmra.mxu0 %v1939
  %v1972 = vpop.f32.mrf.mxu0
  %v1973 = vadd.f32 0.0, %v1972
  %v1974 = vpop.f32.mrf.mxu0
  %v1975 = vadd.f32 0.0, %v1974
  %1976 = vmatmul.bf16.gmra.mxu0 %v1942
  %v1977 = vpop.f32.mrf.mxu0
  %v1978 = vadd.f32 0.0, %v1977
  %v1979 = vpop.f32.mrf.mxu0
  %v1980 = vadd.f32 0.0, %v1979
  %1981 = vmatmul.bf16.gmra.mxu0 %v1945
  %v1982 = vpop.f32.mrf.mxu0
  %v1983 = vadd.f32 0.0, %v1982
  %v1984 = vpop.f32.mrf.mxu0
  %v1985 = vadd.f32 0.0, %v1984
  %1986 = vmatmul.bf16.gmra.mxu0 %v1948
  %v1987 = vpop.f32.mrf.mxu0
  %v1988 = vadd.f32 0.0, %v1987
  %v1989 = vpop.f32.mrf.mxu0
  %v1990 = vadd.f32 0.0, %v1989
  %1991 = vmatmul.bf16.gmra.mxu0 %v1951
  %v1992 = vpop.f32.mrf.mxu0
  %v1993 = vadd.f32 0.0, %v1992
  %v1994 = vpop.f32.mrf.mxu0
  %1995 = vdwg.mxu0
  %v1996 = vadd.f32 %v1764, %v1963
  %v1997 = vadd.f32 %v1765, %v1965
  %v1998 = vadd.f32 %v1766, %v1968
  %v1999 = vadd.f32 %v1767, %v1970
  %v2000 = vadd.f32 %v1768, %v1973
  %v2001 = vadd.f32 %v1769, %v1975
  %v2002 = vadd.f32 %v1770, %v1978
  %v2003 = vadd.f32 %v1771, %v1980
  %v2004 = vadd.f32 %v1772, %v1983
  %v2005 = vadd.f32 %v1773, %v1985
  %v2006 = vadd.f32 %v1774, %v1988
  %v2007 = vadd.f32 %v1775, %v1990
  %v2008 = vadd.f32 %v1776, %v1993
  %v2009 = vpack.c.bf16 %v827, %v826
  %v2010 = vpack.c.bf16 %v829, %v828
  %v2011 = vpack.c.bf16 %v831, %v830
  %v2012 = vpack.c.bf16 %v833, %v832
  %v2013 = vpack.c.bf16 %v835, %v834
  %v2014 = vpack.c.bf16 %v837, %v836
  %v2015 = vpack.c.bf16 %v838, %v838
  %v2016 = vld [vmem:[%s4 + $0xa0] sm:$0xf]
  %v2017 = vld [vmem:[%s4 + $0xa4] sm:$0xf]
  %v2018 = vld [vmem:[%s4 + $0xa8] sm:$0xf]
  %v2019 = vld [vmem:[%s4 + $0xac] sm:$0xf]
  %v2020 = vld [vmem:[%s4 + $0xb0] sm:$0xf]
  %v2021 = vld [vmem:[%s4 + $0xb4] sm:$0xf]
  %v2022 = vld [vmem:[%s4 + $0xb8] sm:$0xf]
  %v2023 = vld [vmem:[%s4 + $0xbc] sm:$0xf]
  %v2032 = vunpack.c.l.b16 %v2016
  %v2033 = vunpack.c.l.b16 %v2017
  %v2034 = vunpack.c.l.b16 %v2018
  %v2035 = vunpack.c.l.b16 %v2019
  %v2036 = vunpack.c.l.b16 %v2020
  %v2037 = vunpack.c.l.b16 %v2021
  %v2038 = vunpack.c.l.b16 %v2022
  %v2039 = vunpack.c.l.b16 %v2023
  %v2040 = vpack.c.b16 %v2033, %v2032
  %v2041 = vpack.c.b16 %v2035, %v2034
  %v2042 = vpack.c.b16 %v2037, %v2036
  %v2043 = vpack.c.b16 %v2039, %v2038
  %v2049 = vsel %vm403, %v2009, 0
  %v2052 = vsel %vm403, %v2010, 0
  %v2055 = vsel %vm403, %v2011, 0
  %v2058 = vsel %vm403, %v2012, 0
  %v2061 = vsel %vm403, %v2013, 0
  %v2064 = vsel %vm403, %v2014, 0
  %v2067 = vsel %vm403, %v2015, 0
  %2069 = vmatpush.bf16.msra.mxu0 0
  %2070 = vmatpush.bf16.msra.mxu0 0
  %2071 = vmatpush.bf16.msra.mxu0 0
  %2072 = vmatpush.bf16.msra.mxu0 0
  %2073 = vmatpush.bf16.msra.mxu0 %v2043
  %2074 = vmatpush.bf16.msra.mxu0 %v2042
  %2075 = vmatpush.bf16.msra.mxu0 %v2041
  %2076 = vmatpush.bf16.msra.mxu0 %v2040
  %2077 = vmatmul.bf16.gmra.mxu0 %v2049
  %v2078 = vpop.f32.mrf.mxu0
  %v2079 = vadd.f32 0.0, %v2078
  %v2080 = vpop.f32.mrf.mxu0
  %v2081 = vadd.f32 0.0, %v2080
  %2082 = vmatmul.bf16.gmra.mxu0 %v2052
  %v2083 = vpop.f32.mrf.mxu0
  %v2084 = vadd.f32 0.0, %v2083
  %v2085 = vpop.f32.mrf.mxu0
  %v2086 = vadd.f32 0.0, %v2085
  %2087 = vmatmul.bf16.gmra.mxu0 %v2055
  %v2088 = vpop.f32.mrf.mxu0
  %v2089 = vadd.f32 0.0, %v2088
  %v2090 = vpop.f32.mrf.mxu0
  %v2091 = vadd.f32 0.0, %v2090
  %2092 = vmatmul.bf16.gmra.mxu0 %v2058
  %v2093 = vpop.f32.mrf.mxu0
  %v2094 = vadd.f32 0.0, %v2093
  %v2095 = vpop.f32.mrf.mxu0
  %v2096 = vadd.f32 0.0, %v2095
  %2097 = vmatmul.bf16.gmra.mxu0 %v2061
  %v2098 = vpop.f32.mrf.mxu0
  %v2099 = vadd.f32 0.0, %v2098
  %v2100 = vpop.f32.mrf.mxu0
  %v2101 = vadd.f32 0.0, %v2100
  %2102 = vmatmul.bf16.gmra.mxu0 %v2064
  %v2103 = vpop.f32.mrf.mxu0
  %v2104 = vadd.f32 0.0, %v2103
  %v2105 = vpop.f32.mrf.mxu0
  %v2106 = vadd.f32 0.0, %v2105
  %2107 = vmatmul.bf16.gmra.mxu0 %v2067
  %v2108 = vpop.f32.mrf.mxu0
  %v2109 = vadd.f32 0.0, %v2108
  %v2110 = vpop.f32.mrf.mxu0
  %2111 = vdwg.mxu0
  %v2112 = vadd.f32 %v1996, %v2079
  %v2113 = vadd.f32 %v1997, %v2081
  %v2114 = vadd.f32 %v1998, %v2084
  %v2115 = vadd.f32 %v1999, %v2086
  %v2116 = vadd.f32 %v2000, %v2089
  %v2117 = vadd.f32 %v2001, %v2091
  %v2118 = vadd.f32 %v2002, %v2094
  %v2119 = vadd.f32 %v2003, %v2096
  %v2120 = vadd.f32 %v2004, %v2099
  %v2121 = vadd.f32 %v2005, %v2101
  %v2122 = vadd.f32 %v2006, %v2104
  %v2123 = vadd.f32 %v2007, %v2106
  %v2124 = vadd.f32 %v2008, %v2109
  %v2125 = vpack.c.bf16 %v839, %v838
  %v2126 = vpack.c.bf16 %v841, %v840
  %v2127 = vpack.c.bf16 %v843, %v842
  %v2128 = vpack.c.bf16 %v845, %v844
  %v2129 = vpack.c.bf16 %v847, %v846
  %v2130 = vpack.c.bf16 %v849, %v848
  %v2131 = vpack.c.bf16 %v850, %v850
  %v2132 = vld [vmem:[%s4 + $0xc0] sm:$0xf]
  %v2133 = vld [vmem:[%s4 + $0xc4] sm:$0xf]
  %v2134 = vld [vmem:[%s4 + $0xc8] sm:$0xf]
  %v2135 = vld [vmem:[%s4 + $0xcc] sm:$0xf]
  %v2136 = vld [vmem:[%s4 + $0xd0] sm:$0xf]
  %v2137 = vld [vmem:[%s4 + $0xd4] sm:$0xf]
  %v2138 = vld [vmem:[%s4 + $0xd8] sm:$0xf]
  %v2139 = vld [vmem:[%s4 + $0xdc] sm:$0xf]
  %vm2147 = vcmask 1046528
  %v2148 = vrot.slane %v2125, 1
  %v2149 = vrot.slane %v2126, 1
  %v2150 = vsel %vm2147, %v2148, %v2149
  %v2151 = vrot.slane %v2127, 1
  %v2152 = vsel %vm2147, %v2149, %v2151
  %v2153 = vrot.slane %v2128, 1
  %v2154 = vsel %vm2147, %v2151, %v2153
  %v2155 = vrot.slane %v2129, 1
  %v2156 = vsel %vm2147, %v2153, %v2155
  %v2157 = vrot.slane %v2130, 1
  %v2158 = vsel %vm2147, %v2155, %v2157
  %v2159 = vrot.slane %v2131, 1
  %v2160 = vsel %vm2147, %v2157, %v2159
  %v2169 = vunpack.c.l.b16 %v2132
  %v2170 = vunpack.c.l.b16 %v2133
  %v2171 = vunpack.c.l.b16 %v2134
  %v2172 = vunpack.c.l.b16 %v2135
  %v2173 = vunpack.c.l.b16 %v2136
  %v2174 = vunpack.c.l.b16 %v2137
  %v2175 = vunpack.c.l.b16 %v2138
  %v2176 = vunpack.c.l.b16 %v2139
  %v2177 = vpack.c.b16 %v2170, %v2169
  %v2178 = vpack.c.b16 %v2172, %v2171
  %v2179 = vpack.c.b16 %v2174, %v2173
  %v2180 = vpack.c.b16 %v2176, %v2175
  %v2186 = vsel %vm403, %v2150, 0
  %v2189 = vsel %vm403, %v2152, 0
  %v2192 = vsel %vm403, %v2154, 0
  %v2195 = vsel %vm403, %v2156, 0
  %v2198 = vsel %vm403, %v2158, 0
  %v2201 = vsel %vm403, %v2160, 0
  %v2204 = vsel %vm403, %v2159, 0
  %2206 = vmatpush.bf16.msra.mxu0 0
  %2207 = vmatpush.bf16.msra.mxu0 0
  %2208 = vmatpush.bf16.msra.mxu0 0
  %2209 = vmatpush.bf16.msra.mxu0 0
  %2210 = vmatpush.bf16.msra.mxu0 %v2180
  %2211 = vmatpush.bf16.msra.mxu0 %v2179
  %2212 = vmatpush.bf16.msra.mxu0 %v2178
  %2213 = vmatpush.bf16.msra.mxu0 %v2177
  %2214 = vmatmul.bf16.gmra.mxu0 %v2186
  %v2215 = vpop.f32.mrf.mxu0
  %v2216 = vadd.f32 0.0, %v2215
  %v2217 = vpop.f32.mrf.mxu0
  %v2218 = vadd.f32 0.0, %v2217
  %2219 = vmatmul.bf16.gmra.mxu0 %v2189
  %v2220 = vpop.f32.mrf.mxu0
  %v2221 = vadd.f32 0.0, %v2220
  %v2222 = vpop.f32.mrf.mxu0
  %v2223 = vadd.f32 0.0, %v2222
  %2224 = vmatmul.bf16.gmra.mxu0 %v2192
  %v2225 = vpop.f32.mrf.mxu0
  %v2226 = vadd.f32 0.0, %v2225
  %v2227 = vpop.f32.mrf.mxu0
  %v2228 = vadd.f32 0.0, %v2227
  %2229 = vmatmul.bf16.gmra.mxu0 %v2195
  %v2230 = vpop.f32.mrf.mxu0
  %v2231 = vadd.f32 0.0, %v2230
  %v2232 = vpop.f32.mrf.mxu0
  %v2233 = vadd.f32 0.0, %v2232
  %2234 = vmatmul.bf16.gmra.mxu0 %v2198
  %v2235 = vpop.f32.mrf.mxu0
  %v2236 = vadd.f32 0.0, %v2235
  %v2237 = vpop.f32.mrf.mxu0
  %v2238 = vadd.f32 0.0, %v2237
  %2239 = vmatmul.bf16.gmra.mxu0 %v2201
  %v2240 = vpop.f32.mrf.mxu0
  %v2241 = vadd.f32 0.0, %v2240
  %v2242 = vpop.f32.mrf.mxu0
  %v2243 = vadd.f32 0.0, %v2242
  %2244 = vmatmul.bf16.gmra.mxu0 %v2204
  %v2245 = vpop.f32.mrf.mxu0
  %v2246 = vadd.f32 0.0, %v2245
  %v2247 = vpop.f32.mrf.mxu0
  %2248 = vdwg.mxu0
  %v2249 = vadd.f32 %v2112, %v2216
  %v2250 = vadd.f32 %v2113, %v2218
  %v2251 = vadd.f32 %v2114, %v2221
  %v2252 = vadd.f32 %v2115, %v2223
  %v2253 = vadd.f32 %v2116, %v2226
  %v2254 = vadd.f32 %v2117, %v2228
  %v2255 = vadd.f32 %v2118, %v2231
  %v2256 = vadd.f32 %v2119, %v2233
  %v2257 = vadd.f32 %v2120, %v2236
  %v2258 = vadd.f32 %v2121, %v2238
  %v2259 = vadd.f32 %v2122, %v2241
  %v2260 = vadd.f32 %v2123, %v2243
  %v2261 = vadd.f32 %v2124, %v2246
  %v2274 = vrot.slane %v826, 1
  %v2275 = vrot.slane %v827, 1
  %v2276 = vsel %vm1078, %v2274, %v2275
  %v2277 = vrot.slane %v828, 1
  %v2278 = vsel %vm1078, %v2275, %v2277
  %v2279 = vrot.slane %v829, 1
  %v2280 = vsel %vm1078, %v2277, %v2279
  %v2281 = vrot.slane %v830, 1
  %v2282 = vsel %vm1078, %v2279, %v2281
  %v2283 = vrot.slane %v831, 1
  %v2284 = vsel %vm1078, %v2281, %v2283
  %v2285 = vrot.slane %v832, 1
  %v2286 = vsel %vm1078, %v2283, %v2285
  %v2287 = vrot.slane %v833, 1
  %v2288 = vsel %vm1078, %v2285, %v2287
  %v2289 = vrot.slane %v834, 1
  %v2290 = vsel %vm1078, %v2287, %v2289
  %v2291 = vrot.slane %v835, 1
  %v2292 = vsel %vm1078, %v2289, %v2291
  %v2293 = vrot.slane %v836, 1
  %v2294 = vsel %vm1078, %v2291, %v2293
  %v2295 = vrot.slane %v837, 1
  %v2296 = vsel %vm1078, %v2293, %v2295
  %v2297 = vsel %vm1078, %v2295, %v1789
  %v2311 = vsel %vm1337, %v1789, 0.0
  %2312 = vset.pattern.permute.xlu0 7
  %2313 = vperm.xlu0 %2312, %v923
  %v2314 = vpop.permute.xlu0 %2313
  %2316 = vset.pattern.permute.xlu0 7
  %2317 = vperm.xlu0 %2316, %v924
  %v2318 = vpop.permute.xlu0 %2317
  %2320 = vset.pattern.permute.xlu0 7
  %2321 = vperm.xlu0 %2320, %v925
  %v2322 = vpop.permute.xlu0 %2321
  %2324 = vset.pattern.permute.xlu0 7
  %2325 = vperm.xlu0 %2324, %v926
  %v2326 = vpop.permute.xlu0 %2325
  %2328 = vset.pattern.permute.xlu0 7
  %2329 = vperm.xlu0 %2328, %v927
  %v2330 = vpop.permute.xlu0 %2329
  %2332 = vset.pattern.permute.xlu0 7
  %2333 = vperm.xlu0 %2332, %v928
  %v2334 = vpop.permute.xlu0 %2333
  %2336 = vset.pattern.permute.xlu0 7
  %2337 = vperm.xlu0 %2336, %v929
  %v2338 = vpop.permute.xlu0 %2337
  %2340 = vset.pattern.permute.xlu0 7
  %2341 = vperm.xlu0 %2340, %v930
  %v2342 = vpop.permute.xlu0 %2341
  %2344 = vset.pattern.permute.xlu0 7
  %2345 = vperm.xlu0 %2344, %v931
  %v2346 = vpop.permute.xlu0 %2345
  %2348 = vset.pattern.permute.xlu0 7
  %2349 = vperm.xlu0 %2348, %v932
  %v2350 = vpop.permute.xlu0 %2349
  %2352 = vset.pattern.permute.xlu0 7
  %2353 = vperm.xlu0 %2352, %v933
  %v2354 = vpop.permute.xlu0 %2353
  %2356 = vset.pattern.permute.xlu0 7
  %2357 = vperm.xlu0 %2356, %v934
  %v2358 = vpop.permute.xlu0 %2357
  %2360 = vset.pattern.permute.xlu0 7
  %2361 = vperm.xlu0 %2360, %v935
  %v2362 = vpop.permute.xlu0 %2361
  %v2364 = vmul.f32 %v2276, %v2314
  %v2365 = vmul.f32 %v2278, %v2318
  %v2366 = vmul.f32 %v2280, %v2322
  %v2367 = vmul.f32 %v2282, %v2326
  %v2368 = vmul.f32 %v2284, %v2330
  %v2369 = vmul.f32 %v2286, %v2334
  %v2370 = vmul.f32 %v2288, %v2338
  %v2371 = vmul.f32 %v2290, %v2342
  %v2372 = vmul.f32 %v2292, %v2346
  %v2373 = vmul.f32 %v2294, %v2350
  %v2374 = vmul.f32 %v2296, %v2354
  %v2375 = vmul.f32 %v2297, %v2358
  %v2376 = vmul.f32 %v2311, %v2362
  %v2377 = vpack.c.bf16 %v2365, %v2364
  %v2378 = vpack.c.bf16 %v2367, %v2366
  %v2379 = vpack.c.bf16 %v2369, %v2368
  %v2380 = vpack.c.bf16 %v2371, %v2370
  %v2381 = vpack.c.bf16 %v2373, %v2372
  %v2382 = vpack.c.bf16 %v2375, %v2374
  %v2383 = vpack.c.bf16 %v2376, %v2376
  %v2384 = vld [vmem:[%s4 + $0xe0] sm:$0xf]
  %v2385 = vld [vmem:[%s4 + $0xe4] sm:$0xf]
  %v2386 = vld [vmem:[%s4 + $0xe8] sm:$0xf]
  %v2387 = vld [vmem:[%s4 + $0xec] sm:$0xf]
  %v2388 = vld [vmem:[%s4 + $0xf0] sm:$0xf]
  %v2389 = vld [vmem:[%s4 + $0xf4] sm:$0xf]
  %v2390 = vld [vmem:[%s4 + $0xf8] sm:$0xf]
  %v2391 = vld [vmem:[%s4 + $0xfc] sm:$0xf]
  %v2400 = vunpack.c.l.b16 %v2384
  %v2401 = vunpack.c.l.b16 %v2385
  %v2402 = vunpack.c.l.b16 %v2386
  %v2403 = vunpack.c.l.b16 %v2387
  %v2404 = vunpack.c.l.b16 %v2388
  %v2405 = vunpack.c.l.b16 %v2389
  %v2406 = vunpack.c.l.b16 %v2390
  %v2407 = vunpack.c.l.b16 %v2391
  %v2408 = vpack.c.b16 %v2401, %v2400
  %v2409 = vpack.c.b16 %v2403, %v2402
  %v2410 = vpack.c.b16 %v2405, %v2404
  %v2411 = vpack.c.b16 %v2407, %v2406
  %v2417 = vsel %vm403, %v2377, 0
  %v2420 = vsel %vm403, %v2378, 0
  %v2423 = vsel %vm403, %v2379, 0
  %v2426 = vsel %vm403, %v2380, 0
  %v2429 = vsel %vm403, %v2381, 0
  %v2432 = vsel %vm403, %v2382, 0
  %v2435 = vsel %vm403, %v2383, 0
  %2437 = vmatpush.bf16.msra.mxu0 0
  %2438 = vmatpush.bf16.msra.mxu0 0
  %2439 = vmatpush.bf16.msra.mxu0 0
  %2440 = vmatpush.bf16.msra.mxu0 0
  %2441 = vmatpush.bf16.msra.mxu0 %v2411
  %2442 = vmatpush.bf16.msra.mxu0 %v2410
  %2443 = vmatpush.bf16.msra.mxu0 %v2409
  %2444 = vmatpush.bf16.msra.mxu0 %v2408
  %2445 = vmatmul.bf16.gmra.mxu0 %v2417
  %v2446 = vpop.f32.mrf.mxu0
  %v2447 = vadd.f32 0.0, %v2446
  %v2448 = vpop.f32.mrf.mxu0
  %v2449 = vadd.f32 0.0, %v2448
  %2450 = vmatmul.bf16.gmra.mxu0 %v2420
  %v2451 = vpop.f32.mrf.mxu0
  %v2452 = vadd.f32 0.0, %v2451
  %v2453 = vpop.f32.mrf.mxu0
  %v2454 = vadd.f32 0.0, %v2453
  %2455 = vmatmul.bf16.gmra.mxu0 %v2423
  %v2456 = vpop.f32.mrf.mxu0
  %v2457 = vadd.f32 0.0, %v2456
  %v2458 = vpop.f32.mrf.mxu0
  %v2459 = vadd.f32 0.0, %v2458
  %2460 = vmatmul.bf16.gmra.mxu0 %v2426
  %v2461 = vpop.f32.mrf.mxu0
  %v2462 = vadd.f32 0.0, %v2461
  %v2463 = vpop.f32.mrf.mxu0
  %v2464 = vadd.f32 0.0, %v2463
  %2465 = vmatmul.bf16.gmra.mxu0 %v2429
  %v2466 = vpop.f32.mrf.mxu0
  %v2467 = vadd.f32 0.0, %v2466
  %v2468 = vpop.f32.mrf.mxu0
  %v2469 = vadd.f32 0.0, %v2468
  %2470 = vmatmul.bf16.gmra.mxu0 %v2432
  %v2471 = vpop.f32.mrf.mxu0
  %v2472 = vadd.f32 0.0, %v2471
  %v2473 = vpop.f32.mrf.mxu0
  %v2474 = vadd.f32 0.0, %v2473
  %2475 = vmatmul.bf16.gmra.mxu0 %v2435
  %v2476 = vpop.f32.mrf.mxu0
  %v2477 = vadd.f32 0.0, %v2476
  %v2478 = vpop.f32.mrf.mxu0
  %2479 = vdwg.mxu0
  %v2480 = vadd.f32 %v2249, %v2447
  %v2481 = vadd.f32 %v2250, %v2449
  %v2482 = vadd.f32 %v2251, %v2452
  %v2483 = vadd.f32 %v2252, %v2454
  %v2484 = vadd.f32 %v2253, %v2457
  %v2485 = vadd.f32 %v2254, %v2459
  %v2486 = vadd.f32 %v2255, %v2462
  %v2487 = vadd.f32 %v2256, %v2464
  %v2488 = vadd.f32 %v2257, %v2467
  %v2489 = vadd.f32 %v2258, %v2469
  %v2490 = vadd.f32 %v2259, %v2472
  %v2491 = vadd.f32 %v2260, %v2474
  %v2492 = vadd.f32 %v2261, %v2477
  %v2493 = vrot.slane %v862, 5
  %v2494 = vrot.slane %v863, 5
  %v2495 = vsel %vm1041, %v2493, %v2494
  %v2496 = vrot.slane %v864, 5
  %v2497 = vsel %vm1041, %v2494, %v2496
  %v2498 = vrot.slane %v865, 5
  %v2499 = vsel %vm1041, %v2496, %v2498
  %v2500 = vrot.slane %v866, 5
  %v2501 = vsel %vm1041, %v2498, %v2500
  %v2502 = vrot.slane %v867, 5
  %v2503 = vsel %vm1041, %v2500, %v2502
  %v2504 = vrot.slane %v868, 5
  %v2505 = vsel %vm1041, %v2502, %v2504
  %v2506 = vrot.slane %v869, 5
  %v2507 = vsel %vm1041, %v2504, %v2506
  %v2508 = vrot.slane %v870, 5
  %v2509 = vsel %vm1041, %v2506, %v2508
  %v2510 = vrot.slane %v871, 5
  %v2511 = vsel %vm1041, %v2508, %v2510
  %v2512 = vrot.slane %v872, 5
  %v2513 = vsel %vm1041, %v2510, %v2512
  %v2514 = vrot.slane %v873, 5
  %v2515 = vsel %vm1041, %v2512, %v2514
  %v2516 = vrot.slane %v874, 5
  %v2517 = vsel %vm1041, %v2514, %v2516
  %v2531 = vsel %vm1337, 0.0, %v2495
  %2532 = vset.pattern.permute.xlu0 8
  %2533 = vperm.xlu0 %2532, %v923
  %v2534 = vpop.permute.xlu0 %2533
  %2536 = vset.pattern.permute.xlu0 8
  %2537 = vperm.xlu0 %2536, %v924
  %v2538 = vpop.permute.xlu0 %2537
  %2540 = vset.pattern.permute.xlu0 8
  %2541 = vperm.xlu0 %2540, %v925
  %v2542 = vpop.permute.xlu0 %2541
  %2544 = vset.pattern.permute.xlu0 8
  %2545 = vperm.xlu0 %2544, %v926
  %v2546 = vpop.permute.xlu0 %2545
  %2548 = vset.pattern.permute.xlu0 8
  %2549 = vperm.xlu0 %2548, %v927
  %v2550 = vpop.permute.xlu0 %2549
  %2552 = vset.pattern.permute.xlu0 8
  %2553 = vperm.xlu0 %2552, %v928
  %v2554 = vpop.permute.xlu0 %2553
  %2556 = vset.pattern.permute.xlu0 8
  %2557 = vperm.xlu0 %2556, %v929
  %v2558 = vpop.permute.xlu0 %2557
  %2560 = vset.pattern.permute.xlu0 8
  %2561 = vperm.xlu0 %2560, %v930
  %v2562 = vpop.permute.xlu0 %2561
  %2564 = vset.pattern.permute.xlu0 8
  %2565 = vperm.xlu0 %2564, %v931
  %v2566 = vpop.permute.xlu0 %2565
  %2568 = vset.pattern.permute.xlu0 8
  %2569 = vperm.xlu0 %2568, %v932
  %v2570 = vpop.permute.xlu0 %2569
  %2572 = vset.pattern.permute.xlu0 8
  %2573 = vperm.xlu0 %2572, %v933
  %v2574 = vpop.permute.xlu0 %2573
  %2576 = vset.pattern.permute.xlu0 8
  %2577 = vperm.xlu0 %2576, %v934
  %v2578 = vpop.permute.xlu0 %2577
  %2580 = vset.pattern.permute.xlu0 8
  %2581 = vperm.xlu0 %2580, %v935
  %v2582 = vpop.permute.xlu0 %2581
  %v2584 = vmul.f32 %v2531, %v2534
  %v2585 = vmul.f32 %v2497, %v2538
  %v2586 = vmul.f32 %v2499, %v2542
  %v2587 = vmul.f32 %v2501, %v2546
  %v2588 = vmul.f32 %v2503, %v2550
  %v2589 = vmul.f32 %v2505, %v2554
  %v2590 = vmul.f32 %v2507, %v2558
  %v2591 = vmul.f32 %v2509, %v2562
  %v2592 = vmul.f32 %v2511, %v2566
  %v2593 = vmul.f32 %v2513, %v2570
  %v2594 = vmul.f32 %v2515, %v2574
  %v2595 = vmul.f32 %v2517, %v2578
  %v2596 = vmul.f32 %v2516, %v2582
  %v2597 = vpack.c.bf16 %v2585, %v2584
  %v2598 = vpack.c.bf16 %v2587, %v2586
  %v2599 = vpack.c.bf16 %v2589, %v2588
  %v2600 = vpack.c.bf16 %v2591, %v2590
  %v2601 = vpack.c.bf16 %v2593, %v2592
  %v2602 = vpack.c.bf16 %v2595, %v2594
  %v2603 = vpack.c.bf16 %v2596, %v2596
  %v2604 = vld [vmem:[%s4 + $0x100] sm:$0xf]
  %v2605 = vld [vmem:[%s4 + $0x104] sm:$0xf]
  %v2606 = vld [vmem:[%s4 + $0x108] sm:$0xf]
  %v2607 = vld [vmem:[%s4 + $0x10c] sm:$0xf]
  %v2608 = vld [vmem:[%s4 + $0x110] sm:$0xf]
  %v2609 = vld [vmem:[%s4 + $0x114] sm:$0xf]
  %v2610 = vld [vmem:[%s4 + $0x118] sm:$0xf]
  %v2611 = vld [vmem:[%s4 + $0x11c] sm:$0xf]
  %v2620 = vunpack.c.l.b16 %v2604
  %v2621 = vunpack.c.l.b16 %v2605
  %v2622 = vunpack.c.l.b16 %v2606
  %v2623 = vunpack.c.l.b16 %v2607
  %v2624 = vunpack.c.l.b16 %v2608
  %v2625 = vunpack.c.l.b16 %v2609
  %v2626 = vunpack.c.l.b16 %v2610
  %v2627 = vunpack.c.l.b16 %v2611
  %v2628 = vpack.c.b16 %v2621, %v2620
  %v2629 = vpack.c.b16 %v2623, %v2622
  %v2630 = vpack.c.b16 %v2625, %v2624
  %v2631 = vpack.c.b16 %v2627, %v2626
  %v2637 = vsel %vm403, %v2597, 0
  %v2640 = vsel %vm403, %v2598, 0
  %v2643 = vsel %vm403, %v2599, 0
  %v2646 = vsel %vm403, %v2600, 0
  %v2649 = vsel %vm403, %v2601, 0
  %v2652 = vsel %vm403, %v2602, 0
  %v2655 = vsel %vm403, %v2603, 0
  %2657 = vmatpush.bf16.msra.mxu0 0
  %2658 = vmatpush.bf16.msra.mxu0 0
  %2659 = vmatpush.bf16.msra.mxu0 0
  %2660 = vmatpush.bf16.msra.mxu0 0
  %2661 = vmatpush.bf16.msra.mxu0 %v2631
  %2662 = vmatpush.bf16.msra.mxu0 %v2630
  %2663 = vmatpush.bf16.msra.mxu0 %v2629
  %2664 = vmatpush.bf16.msra.mxu0 %v2628
  %2665 = vmatmul.bf16.gmra.mxu0 %v2637
  %v2666 = vpop.f32.mrf.mxu0
  %v2667 = vadd.f32 0.0, %v2666
  %v2668 = vpop.f32.mrf.mxu0
  %v2669 = vadd.f32 0.0, %v2668
  %2670 = vmatmul.bf16.gmra.mxu0 %v2640
  %v2671 = vpop.f32.mrf.mxu0
  %v2672 = vadd.f32 0.0, %v2671
  %v2673 = vpop.f32.mrf.mxu0
  %v2674 = vadd.f32 0.0, %v2673
  %2675 = vmatmul.bf16.gmra.mxu0 %v2643
  %v2676 = vpop.f32.mrf.mxu0
  %v2677 = vadd.f32 0.0, %v2676
  %v2678 = vpop.f32.mrf.mxu0
  %v2679 = vadd.f32 0.0, %v2678
  %2680 = vmatmul.bf16.gmra.mxu0 %v2646
  %v2681 = vpop.f32.mrf.mxu0
  %v2682 = vadd.f32 0.0, %v2681
  %v2683 = vpop.f32.mrf.mxu0
  %v2684 = vadd.f32 0.0, %v2683
  %2685 = vmatmul.bf16.gmra.mxu0 %v2649
  %v2686 = vpop.f32.mrf.mxu0
  %v2687 = vadd.f32 0.0, %v2686
  %v2688 = vpop.f32.mrf.mxu0
  %v2689 = vadd.f32 0.0, %v2688
  %2690 = vmatmul.bf16.gmra.mxu0 %v2652
  %v2691 = vpop.f32.mrf.mxu0
  %v2692 = vadd.f32 0.0, %v2691
  %v2693 = vpop.f32.mrf.mxu0
  %v2694 = vadd.f32 0.0, %v2693
  %2695 = vmatmul.bf16.gmra.mxu0 %v2655
  %v2696 = vpop.f32.mrf.mxu0
  %v2697 = vadd.f32 0.0, %v2696
  %v2698 = vpop.f32.mrf.mxu0
  %2699 = vdwg.mxu0
  %v2700 = vadd.f32 %v2480, %v2667
  %v2701 = vadd.f32 %v2481, %v2669
  %v2702 = vadd.f32 %v2482, %v2672
  %v2703 = vadd.f32 %v2483, %v2674
  %v2704 = vadd.f32 %v2484, %v2677
  %v2705 = vadd.f32 %v2485, %v2679
  %v2706 = vadd.f32 %v2486, %v2682
  %v2707 = vadd.f32 %v2487, %v2684
  %v2708 = vadd.f32 %v2488, %v2687
  %v2709 = vadd.f32 %v2489, %v2689
  %v2710 = vadd.f32 %v2490, %v2692
  %v2711 = vadd.f32 %v2491, %v2694
  %v2712 = vadd.f32 %v2492, %v2697
  %v2713 = vpack.c.bf16 %v851, %v850
  %v2714 = vpack.c.bf16 %v853, %v852
  %v2715 = vpack.c.bf16 %v855, %v854
  %v2716 = vpack.c.bf16 %v857, %v856
  %v2717 = vpack.c.bf16 %v859, %v858
  %v2718 = vpack.c.bf16 %v861, %v860
  %v2719 = vpack.c.bf16 %v862, %v862
  %v2720 = vld [vmem:[%s4 + $0x120] sm:$0xf]
  %v2721 = vld [vmem:[%s4 + $0x124] sm:$0xf]
  %v2722 = vld [vmem:[%s4 + $0x128] sm:$0xf]
  %v2723 = vld [vmem:[%s4 + $0x12c] sm:$0xf]
  %v2724 = vld [vmem:[%s4 + $0x130] sm:$0xf]
  %v2725 = vld [vmem:[%s4 + $0x134] sm:$0xf]
  %v2726 = vld [vmem:[%s4 + $0x138] sm:$0xf]
  %v2727 = vld [vmem:[%s4 + $0x13c] sm:$0xf]
  %vm2735 = vcmask 1045504
  %v2736 = vrot.slane %v2713, 2
  %v2737 = vrot.slane %v2714, 2
  %v2738 = vsel %vm2735, %v2736, %v2737
  %v2739 = vrot.slane %v2715, 2
  %v2740 = vsel %vm2735, %v2737, %v2739
  %v2741 = vrot.slane %v2716, 2
  %v2742 = vsel %vm2735, %v2739, %v2741
  %v2743 = vrot.slane %v2717, 2
  %v2744 = vsel %vm2735, %v2741, %v2743
  %v2745 = vrot.slane %v2718, 2
  %v2746 = vsel %vm2735, %v2743, %v2745
  %v2747 = vrot.slane %v2719, 2
  %v2748 = vsel %vm2735, %v2745, %v2747
  %v2757 = vunpack.c.l.b16 %v2720
  %v2758 = vunpack.c.l.b16 %v2721
  %v2759 = vunpack.c.l.b16 %v2722
  %v2760 = vunpack.c.l.b16 %v2723
  %v2761 = vunpack.c.l.b16 %v2724
  %v2762 = vunpack.c.l.b16 %v2725
  %v2763 = vunpack.c.l.b16 %v2726
  %v2764 = vunpack.c.l.b16 %v2727
  %v2765 = vpack.c.b16 %v2758, %v2757
  %v2766 = vpack.c.b16 %v2760, %v2759
  %v2767 = vpack.c.b16 %v2762, %v2761
  %v2768 = vpack.c.b16 %v2764, %v2763
  %v2774 = vsel %vm403, %v2738, 0
  %v2777 = vsel %vm403, %v2740, 0
  %v2780 = vsel %vm403, %v2742, 0
  %v2783 = vsel %vm403, %v2744, 0
  %v2786 = vsel %vm403, %v2746, 0
  %v2789 = vsel %vm403, %v2748, 0
  %v2792 = vsel %vm403, %v2747, 0
  %2794 = vmatpush.bf16.msra.mxu0 0
  %2795 = vmatpush.bf16.msra.mxu0 0
  %2796 = vmatpush.bf16.msra.mxu0 0
  %2797 = vmatpush.bf16.msra.mxu0 0
  %2798 = vmatpush.bf16.msra.mxu0 %v2768
  %2799 = vmatpush.bf16.msra.mxu0 %v2767
  %2800 = vmatpush.bf16.msra.mxu0 %v2766
  %2801 = vmatpush.bf16.msra.mxu0 %v2765
  %2802 = vmatmul.bf16.gmra.mxu0 %v2774
  %v2803 = vpop.f32.mrf.mxu0
  %v2804 = vadd.f32 0.0, %v2803
  %v2805 = vpop.f32.mrf.mxu0
  %v2806 = vadd.f32 0.0, %v2805
  %2807 = vmatmul.bf16.gmra.mxu0 %v2777
  %v2808 = vpop.f32.mrf.mxu0
  %v2809 = vadd.f32 0.0, %v2808
  %v2810 = vpop.f32.mrf.mxu0
  %v2811 = vadd.f32 0.0, %v2810
  %2812 = vmatmul.bf16.gmra.mxu0 %v2780
  %v2813 = vpop.f32.mrf.mxu0
  %v2814 = vadd.f32 0.0, %v2813
  %v2815 = vpop.f32.mrf.mxu0
  %v2816 = vadd.f32 0.0, %v2815
  %2817 = vmatmul.bf16.gmra.mxu0 %v2783
  %v2818 = vpop.f32.mrf.mxu0
  %v2819 = vadd.f32 0.0, %v2818
  %v2820 = vpop.f32.mrf.mxu0
  %v2821 = vadd.f32 0.0, %v2820
  %2822 = vmatmul.bf16.gmra.mxu0 %v2786
  %v2823 = vpop.f32.mrf.mxu0
  %v2824 = vadd.f32 0.0, %v2823
  %v2825 = vpop.f32.mrf.mxu0
  %v2826 = vadd.f32 0.0, %v2825
  %2827 = vmatmul.bf16.gmra.mxu0 %v2789
  %v2828 = vpop.f32.mrf.mxu0
  %v2829 = vadd.f32 0.0, %v2828
  %v2830 = vpop.f32.mrf.mxu0
  %v2831 = vadd.f32 0.0, %v2830
  %2832 = vmatmul.bf16.gmra.mxu0 %v2792
  %v2833 = vpop.f32.mrf.mxu0
  %v2834 = vadd.f32 0.0, %v2833
  %v2835 = vpop.f32.mrf.mxu0
  %2836 = vdwg.mxu0
  %v2837 = vadd.f32 %v2700, %v2804
  %v2838 = vadd.f32 %v2701, %v2806
  %v2839 = vadd.f32 %v2702, %v2809
  %v2840 = vadd.f32 %v2703, %v2811
  %v2841 = vadd.f32 %v2704, %v2814
  %v2842 = vadd.f32 %v2705, %v2816
  %v2843 = vadd.f32 %v2706, %v2819
  %v2844 = vadd.f32 %v2707, %v2821
  %v2845 = vadd.f32 %v2708, %v2824
  %v2846 = vadd.f32 %v2709, %v2826
  %v2847 = vadd.f32 %v2710, %v2829
  %v2848 = vadd.f32 %v2711, %v2831
  %v2849 = vadd.f32 %v2712, %v2834
  %v2850 = vpack.c.bf16 %v863, %v862
  %v2851 = vpack.c.bf16 %v865, %v864
  %v2852 = vpack.c.bf16 %v867, %v866
  %v2853 = vpack.c.bf16 %v869, %v868
  %v2854 = vpack.c.bf16 %v871, %v870
  %v2855 = vpack.c.bf16 %v873, %v872
  %v2856 = vpack.c.bf16 %v874, %v874
  %v2857 = vld [vmem:[%s4 + $0x140] sm:$0xf]
  %v2858 = vld [vmem:[%s4 + $0x144] sm:$0xf]
  %v2859 = vld [vmem:[%s4 + $0x148] sm:$0xf]
  %v2860 = vld [vmem:[%s4 + $0x14c] sm:$0xf]
  %v2861 = vld [vmem:[%s4 + $0x150] sm:$0xf]
  %v2862 = vld [vmem:[%s4 + $0x154] sm:$0xf]
  %v2863 = vld [vmem:[%s4 + $0x158] sm:$0xf]
  %v2864 = vld [vmem:[%s4 + $0x15c] sm:$0xf]
  %vm2872 = vcmask 1044480
  %v2873 = vrot.slane %v2850, 3
  %v2874 = vrot.slane %v2851, 3
  %v2875 = vsel %vm2872, %v2873, %v2874
  %v2876 = vrot.slane %v2852, 3
  %v2877 = vsel %vm2872, %v2874, %v2876
  %v2878 = vrot.slane %v2853, 3
  %v2879 = vsel %vm2872, %v2876, %v2878
  %v2880 = vrot.slane %v2854, 3
  %v2881 = vsel %vm2872, %v2878, %v2880
  %v2882 = vrot.slane %v2855, 3
  %v2883 = vsel %vm2872, %v2880, %v2882
  %v2884 = vrot.slane %v2856, 3
  %v2885 = vsel %vm2872, %v2882, %v2884
  %v2894 = vunpack.c.l.b16 %v2857
  %v2895 = vunpack.c.l.b16 %v2858
  %v2896 = vunpack.c.l.b16 %v2859
  %v2897 = vunpack.c.l.b16 %v2860
  %v2898 = vunpack.c.l.b16 %v2861
  %v2899 = vunpack.c.l.b16 %v2862
  %v2900 = vunpack.c.l.b16 %v2863
  %v2901 = vunpack.c.l.b16 %v2864
  %v2902 = vpack.c.b16 %v2895, %v2894
  %v2903 = vpack.c.b16 %v2897, %v2896
  %v2904 = vpack.c.b16 %v2899, %v2898
  %v2905 = vpack.c.b16 %v2901, %v2900
  %v2911 = vsel %vm403, %v2875, 0
  %v2914 = vsel %vm403, %v2877, 0
  %v2917 = vsel %vm403, %v2879, 0
  %v2920 = vsel %vm403, %v2881, 0
  %v2923 = vsel %vm403, %v2883, 0
  %v2926 = vsel %vm403, %v2885, 0
  %v2929 = vsel %vm403, %v2884, 0
  %2931 = vmatpush.bf16.msra.mxu0 0
  %2932 = vmatpush.bf16.msra.mxu0 0
  %2933 = vmatpush.bf16.msra.mxu0 0
  %2934 = vmatpush.bf16.msra.mxu0 0
  %2935 = vmatpush.bf16.msra.mxu0 %v2905
  %2936 = vmatpush.bf16.msra.mxu0 %v2904
  %2937 = vmatpush.bf16.msra.mxu0 %v2903
  %2938 = vmatpush.bf16.msra.mxu0 %v2902
  %2939 = vmatmul.bf16.gmra.mxu0 %v2911
  %v2940 = vpop.f32.mrf.mxu0
  %v2941 = vadd.f32 0.0, %v2940
  %v2942 = vpop.f32.mrf.mxu0
  %v2943 = vadd.f32 0.0, %v2942
  %2944 = vmatmul.bf16.gmra.mxu0 %v2914
  %v2945 = vpop.f32.mrf.mxu0
  %v2946 = vadd.f32 0.0, %v2945
  %v2947 = vpop.f32.mrf.mxu0
  %v2948 = vadd.f32 0.0, %v2947
  %2949 = vmatmul.bf16.gmra.mxu0 %v2917
  %v2950 = vpop.f32.mrf.mxu0
  %v2951 = vadd.f32 0.0, %v2950
  %v2952 = vpop.f32.mrf.mxu0
  %v2953 = vadd.f32 0.0, %v2952
  %2954 = vmatmul.bf16.gmra.mxu0 %v2920
  %v2955 = vpop.f32.mrf.mxu0
  %v2956 = vadd.f32 0.0, %v2955
  %v2957 = vpop.f32.mrf.mxu0
  %v2958 = vadd.f32 0.0, %v2957
  %2959 = vmatmul.bf16.gmra.mxu0 %v2923
  %v2960 = vpop.f32.mrf.mxu0
  %v2961 = vadd.f32 0.0, %v2960
  %v2962 = vpop.f32.mrf.mxu0
  %v2963 = vadd.f32 0.0, %v2962
  %2964 = vmatmul.bf16.gmra.mxu0 %v2926
  %v2965 = vpop.f32.mrf.mxu0
  %v2966 = vadd.f32 0.0, %v2965
  %v2967 = vpop.f32.mrf.mxu0
  %v2968 = vadd.f32 0.0, %v2967
  %2969 = vmatmul.bf16.gmra.mxu0 %v2929
  %v2970 = vpop.f32.mrf.mxu0
  %v2971 = vadd.f32 0.0, %v2970
  %v2972 = vpop.f32.mrf.mxu0
  %2973 = vdwg.mxu0
  %v2974 = vadd.f32 %v2837, %v2941
  %v2975 = vadd.f32 %v2838, %v2943
  %v2976 = vadd.f32 %v2839, %v2946
  %v2977 = vadd.f32 %v2840, %v2948
  %v2978 = vadd.f32 %v2841, %v2951
  %v2979 = vadd.f32 %v2842, %v2953
  %v2980 = vadd.f32 %v2843, %v2956
  %v2981 = vadd.f32 %v2844, %v2958
  %v2982 = vadd.f32 %v2845, %v2961
  %v2983 = vadd.f32 %v2846, %v2963
  %v2984 = vadd.f32 %v2847, %v2966
  %v2985 = vadd.f32 %v2848, %v2968
  %v2986 = vadd.f32 %v2849, %v2971
  %v2987 = vsel %vm1041, %v1063, %v2493
  %v2990 = vsel %vm1337, %v2493, 0.0
  %2991 = vset.pattern.permute.xlu0 11
  %2992 = vperm.xlu0 %2991, %v923
  %v2993 = vpop.permute.xlu0 %2992
  %2995 = vset.pattern.permute.xlu0 11
  %2996 = vperm.xlu0 %2995, %v924
  %v2997 = vpop.permute.xlu0 %2996
  %2999 = vset.pattern.permute.xlu0 11
  %3000 = vperm.xlu0 %2999, %v925
  %v3001 = vpop.permute.xlu0 %3000
  %3003 = vset.pattern.permute.xlu0 11
  %3004 = vperm.xlu0 %3003, %v926
  %v3005 = vpop.permute.xlu0 %3004
  %3007 = vset.pattern.permute.xlu0 11
  %3008 = vperm.xlu0 %3007, %v927
  %v3009 = vpop.permute.xlu0 %3008
  %3011 = vset.pattern.permute.xlu0 11
  %3012 = vperm.xlu0 %3011, %v928
  %v3013 = vpop.permute.xlu0 %3012
  %3015 = vset.pattern.permute.xlu0 11
  %3016 = vperm.xlu0 %3015, %v929
  %v3017 = vpop.permute.xlu0 %3016
  %3019 = vset.pattern.permute.xlu0 11
  %3020 = vperm.xlu0 %3019, %v930
  %v3021 = vpop.permute.xlu0 %3020
  %3023 = vset.pattern.permute.xlu0 11
  %3024 = vperm.xlu0 %3023, %v931
  %v3025 = vpop.permute.xlu0 %3024
  %3027 = vset.pattern.permute.xlu0 11
  %3028 = vperm.xlu0 %3027, %v932
  %v3029 = vpop.permute.xlu0 %3028
  %3031 = vset.pattern.permute.xlu0 11
  %3032 = vperm.xlu0 %3031, %v933
  %v3033 = vpop.permute.xlu0 %3032
  %3035 = vset.pattern.permute.xlu0 11
  %3036 = vperm.xlu0 %3035, %v934
  %v3037 = vpop.permute.xlu0 %3036
  %3039 = vset.pattern.permute.xlu0 11
  %3040 = vperm.xlu0 %3039, %v935
  %v3041 = vpop.permute.xlu0 %3040
  %v3043 = vmul.f32 %v1044, %v2993
  %v3044 = vmul.f32 %v1046, %v2997
  %v3045 = vmul.f32 %v1048, %v3001
  %v3046 = vmul.f32 %v1050, %v3005
  %v3047 = vmul.f32 %v1052, %v3009
  %v3048 = vmul.f32 %v1054, %v3013
  %v3049 = vmul.f32 %v1056, %v3017
  %v3050 = vmul.f32 %v1058, %v3021
  %v3051 = vmul.f32 %v1060, %v3025
  %v3052 = vmul.f32 %v1062, %v3029
  %v3053 = vmul.f32 %v1064, %v3033
  %v3054 = vmul.f32 %v2987, %v3037
  %v3055 = vmul.f32 %v2990, %v3041
  %v3056 = vpack.c.bf16 %v3044, %v3043
  %v3057 = vpack.c.bf16 %v3046, %v3045
  %v3058 = vpack.c.bf16 %v3048, %v3047
  %v3059 = vpack.c.bf16 %v3050, %v3049
  %v3060 = vpack.c.bf16 %v3052, %v3051
  %v3061 = vpack.c.bf16 %v3054, %v3053
  %v3062 = vpack.c.bf16 %v3055, %v3055
  %v3063 = vld [vmem:[%s4 + $0x160] sm:$0xf]
  %v3064 = vld [vmem:[%s4 + $0x164] sm:$0xf]
  %v3065 = vld [vmem:[%s4 + $0x168] sm:$0xf]
  %v3066 = vld [vmem:[%s4 + $0x16c] sm:$0xf]
  %v3067 = vld [vmem:[%s4 + $0x170] sm:$0xf]
  %v3068 = vld [vmem:[%s4 + $0x174] sm:$0xf]
  %v3069 = vld [vmem:[%s4 + $0x178] sm:$0xf]
  %v3070 = vld [vmem:[%s4 + $0x17c] sm:$0xf]
  %v3079 = vunpack.c.l.b16 %v3063
  %v3080 = vunpack.c.l.b16 %v3064
  %v3081 = vunpack.c.l.b16 %v3065
  %v3082 = vunpack.c.l.b16 %v3066
  %v3083 = vunpack.c.l.b16 %v3067
  %v3084 = vunpack.c.l.b16 %v3068
  %v3085 = vunpack.c.l.b16 %v3069
  %v3086 = vunpack.c.l.b16 %v3070
  %v3087 = vpack.c.b16 %v3080, %v3079
  %v3088 = vpack.c.b16 %v3082, %v3081
  %v3089 = vpack.c.b16 %v3084, %v3083
  %v3090 = vpack.c.b16 %v3086, %v3085
  %v3096 = vsel %vm403, %v3056, 0
  %v3099 = vsel %vm403, %v3057, 0
  %v3102 = vsel %vm403, %v3058, 0
  %v3105 = vsel %vm403, %v3059, 0
  %v3108 = vsel %vm403, %v3060, 0
  %v3111 = vsel %vm403, %v3061, 0
  %v3114 = vsel %vm403, %v3062, 0
  %3116 = vmatpush.bf16.msra.mxu0 0
  %3117 = vmatpush.bf16.msra.mxu0 0
  %3118 = vmatpush.bf16.msra.mxu0 0
  %3119 = vmatpush.bf16.msra.mxu0 0
  %3120 = vmatpush.bf16.msra.mxu0 %v3090
  %3121 = vmatpush.bf16.msra.mxu0 %v3089
  %3122 = vmatpush.bf16.msra.mxu0 %v3088
  %3123 = vmatpush.bf16.msra.mxu0 %v3087
  %3124 = vmatmul.bf16.gmra.mxu0 %v3096
  %v3125 = vpop.f32.mrf.mxu0
  %v3126 = vadd.f32 0.0, %v3125
  %v3127 = vpop.f32.mrf.mxu0
  %v3128 = vadd.f32 0.0, %v3127
  %3129 = vmatmul.bf16.gmra.mxu0 %v3099
  %v3130 = vpop.f32.mrf.mxu0
  %v3131 = vadd.f32 0.0, %v3130
  %v3132 = vpop.f32.mrf.mxu0
  %v3133 = vadd.f32 0.0, %v3132
  %3134 = vmatmul.bf16.gmra.mxu0 %v3102
  %v3135 = vpop.f32.mrf.mxu0
  %v3136 = vadd.f32 0.0, %v3135
  %v3137 = vpop.f32.mrf.mxu0
  %v3138 = vadd.f32 0.0, %v3137
  %3139 = vmatmul.bf16.gmra.mxu0 %v3105
  %v3140 = vpop.f32.mrf.mxu0
  %v3141 = vadd.f32 0.0, %v3140
  %v3142 = vpop.f32.mrf.mxu0
  %v3143 = vadd.f32 0.0, %v3142
  %3144 = vmatmul.bf16.gmra.mxu0 %v3108
  %v3145 = vpop.f32.mrf.mxu0
  %v3146 = vadd.f32 0.0, %v3145
  %v3147 = vpop.f32.mrf.mxu0
  %v3148 = vadd.f32 0.0, %v3147
  %3149 = vmatmul.bf16.gmra.mxu0 %v3111
  %v3150 = vpop.f32.mrf.mxu0
  %v3151 = vadd.f32 0.0, %v3150
  %v3152 = vpop.f32.mrf.mxu0
  %v3153 = vadd.f32 0.0, %v3152
  %3154 = vmatmul.bf16.gmra.mxu0 %v3114
  %v3155 = vpop.f32.mrf.mxu0
  %v3156 = vadd.f32 0.0, %v3155
  %v3157 = vpop.f32.mrf.mxu0
  %3158 = vdwg.mxu0
  %v3159 = vadd.f32 %v2974, %v3126
  %v3160 = vadd.f32 %v2975, %v3128
  %v3161 = vadd.f32 %v2976, %v3131
  %v3162 = vadd.f32 %v2977, %v3133
  %v3163 = vadd.f32 %v2978, %v3136
  %v3164 = vadd.f32 %v2979, %v3138
  %v3165 = vadd.f32 %v2980, %v3141
  %v3166 = vadd.f32 %v2981, %v3143
  %v3167 = vadd.f32 %v2982, %v3146
  %v3168 = vadd.f32 %v2983, %v3148
  %v3169 = vadd.f32 %v2984, %v3151
  %v3170 = vadd.f32 %v2985, %v3153
  %v3171 = vadd.f32 %v2986, %v3156
  %vm3172 = vcmask 1043456
  %v3173 = vsel %vm3172, %v850, 0.0
  %3174 = vset.pattern.permute.xlu0 12
  %3175 = vperm.xlu0 %3174, %v923
  %v3176 = vpop.permute.xlu0 %3175
  %3178 = vset.pattern.permute.xlu0 12
  %3179 = vperm.xlu0 %3178, %v924
  %v3180 = vpop.permute.xlu0 %3179
  %3182 = vset.pattern.permute.xlu0 12
  %3183 = vperm.xlu0 %3182, %v925
  %v3184 = vpop.permute.xlu0 %3183
  %3186 = vset.pattern.permute.xlu0 12
  %3187 = vperm.xlu0 %3186, %v926
  %v3188 = vpop.permute.xlu0 %3187
  %3190 = vset.pattern.permute.xlu0 12
  %3191 = vperm.xlu0 %3190, %v927
  %v3192 = vpop.permute.xlu0 %3191
  %3194 = vset.pattern.permute.xlu0 12
  %3195 = vperm.xlu0 %3194, %v928
  %v3196 = vpop.permute.xlu0 %3195
  %3198 = vset.pattern.permute.xlu0 12
  %3199 = vperm.xlu0 %3198, %v929
  %v3200 = vpop.permute.xlu0 %3199
  %3202 = vset.pattern.permute.xlu0 12
  %3203 = vperm.xlu0 %3202, %v930
  %v3204 = vpop.permute.xlu0 %3203
  %3206 = vset.pattern.permute.xlu0 12
  %3207 = vperm.xlu0 %3206, %v931
  %v3208 = vpop.permute.xlu0 %3207
  %3210 = vset.pattern.permute.xlu0 12
  %3211 = vperm.xlu0 %3210, %v932
  %v3212 = vpop.permute.xlu0 %3211
  %3214 = vset.pattern.permute.xlu0 12
  %3215 = vperm.xlu0 %3214, %v933
  %v3216 = vpop.permute.xlu0 %3215
  %3218 = vset.pattern.permute.xlu0 12
  %3219 = vperm.xlu0 %3218, %v934
  %v3220 = vpop.permute.xlu0 %3219
  %3222 = vset.pattern.permute.xlu0 12
  %3223 = vperm.xlu0 %3222, %v935
  %v3224 = vpop.permute.xlu0 %3223
  %v3226 = vmul.f32 %v839, %v3176
  %v3227 = vmul.f32 %v840, %v3180
  %v3228 = vmul.f32 %v841, %v3184
  %v3229 = vmul.f32 %v842, %v3188
  %v3230 = vmul.f32 %v843, %v3192
  %v3231 = vmul.f32 %v844, %v3196
  %v3232 = vmul.f32 %v845, %v3200
  %v3233 = vmul.f32 %v846, %v3204
  %v3234 = vmul.f32 %v847, %v3208
  %v3235 = vmul.f32 %v848, %v3212
  %v3236 = vmul.f32 %v849, %v3216
  %v3237 = vmul.f32 %v3173, %v3220
  %v3238 = vmul.f32 %v3224, 0.0
  %v3239 = vpack.c.bf16 %v3227, %v3226
  %v3240 = vpack.c.bf16 %v3229, %v3228
  %v3241 = vpack.c.bf16 %v3231, %v3230
  %v3242 = vpack.c.bf16 %v3233, %v3232
  %v3243 = vpack.c.bf16 %v3235, %v3234
  %v3244 = vpack.c.bf16 %v3237, %v3236
  %v3245 = vpack.c.bf16 %v3238, %v3238
  %v3246 = vld [vmem:[%s4 + $0x180] sm:$0xf]
  %v3247 = vld [vmem:[%s4 + $0x184] sm:$0xf]
  %v3248 = vld [vmem:[%s4 + $0x188] sm:$0xf]
  %v3249 = vld [vmem:[%s4 + $0x18c] sm:$0xf]
  %v3250 = vld [vmem:[%s4 + $0x190] sm:$0xf]
  %v3251 = vld [vmem:[%s4 + $0x194] sm:$0xf]
  %v3252 = vld [vmem:[%s4 + $0x198] sm:$0xf]
  %v3253 = vld [vmem:[%s4 + $0x19c] sm:$0xf]
  %v3262 = vunpack.c.l.b16 %v3246
  %v3263 = vunpack.c.l.b16 %v3247
  %v3264 = vunpack.c.l.b16 %v3248
  %v3265 = vunpack.c.l.b16 %v3249
  %v3266 = vunpack.c.l.b16 %v3250
  %v3267 = vunpack.c.l.b16 %v3251
  %v3268 = vunpack.c.l.b16 %v3252
  %v3269 = vunpack.c.l.b16 %v3253
  %v3270 = vpack.c.b16 %v3263, %v3262
  %v3271 = vpack.c.b16 %v3265, %v3264
  %v3272 = vpack.c.b16 %v3267, %v3266
  %v3273 = vpack.c.b16 %v3269, %v3268
  %v3279 = vsel %vm403, %v3239, 0
  %v3282 = vsel %vm403, %v3240, 0
  %v3285 = vsel %vm403, %v3241, 0
  %v3288 = vsel %vm403, %v3242, 0
  %v3291 = vsel %vm403, %v3243, 0
  %v3294 = vsel %vm403, %v3244, 0
  %v3297 = vsel %vm403, %v3245, 0
  %3299 = vmatpush.bf16.msra.mxu0 0
  %3300 = vmatpush.bf16.msra.mxu0 0
  %3301 = vmatpush.bf16.msra.mxu0 0
  %3302 = vmatpush.bf16.msra.mxu0 0
  %3303 = vmatpush.bf16.msra.mxu0 %v3273
  %3304 = vmatpush.bf16.msra.mxu0 %v3272
  %3305 = vmatpush.bf16.msra.mxu0 %v3271
  %3306 = vmatpush.bf16.msra.mxu0 %v3270
  %3307 = vmatmul.bf16.gmra.mxu0 %v3279
  %v3308 = vpop.f32.mrf.mxu0
  %v3309 = vadd.f32 0.0, %v3308
  %v3310 = vpop.f32.mrf.mxu0
  %v3311 = vadd.f32 0.0, %v3310
  %3312 = vmatmul.bf16.gmra.mxu0 %v3282
  %v3313 = vpop.f32.mrf.mxu0
  %v3314 = vadd.f32 0.0, %v3313
  %v3315 = vpop.f32.mrf.mxu0
  %v3316 = vadd.f32 0.0, %v3315
  %3317 = vmatmul.bf16.gmra.mxu0 %v3285
  %v3318 = vpop.f32.mrf.mxu0
  %v3319 = vadd.f32 0.0, %v3318
  %v3320 = vpop.f32.mrf.mxu0
  %v3321 = vadd.f32 0.0, %v3320
  %3322 = vmatmul.bf16.gmra.mxu0 %v3288
  %v3323 = vpop.f32.mrf.mxu0
  %v3324 = vadd.f32 0.0, %v3323
  %v3325 = vpop.f32.mrf.mxu0
  %v3326 = vadd.f32 0.0, %v3325
  %3327 = vmatmul.bf16.gmra.mxu0 %v3291
  %v3328 = vpop.f32.mrf.mxu0
  %v3329 = vadd.f32 0.0, %v3328
  %v3330 = vpop.f32.mrf.mxu0
  %v3331 = vadd.f32 0.0, %v3330
  %3332 = vmatmul.bf16.gmra.mxu0 %v3294
  %v3333 = vpop.f32.mrf.mxu0
  %v3334 = vadd.f32 0.0, %v3333
  %v3335 = vpop.f32.mrf.mxu0
  %v3336 = vadd.f32 0.0, %v3335
  %3337 = vmatmul.bf16.gmra.mxu0 %v3297
  %v3338 = vpop.f32.mrf.mxu0
  %v3339 = vadd.f32 0.0, %v3338
  %v3340 = vpop.f32.mrf.mxu0
  %3341 = vdwg.mxu0
  %v3342 = vadd.f32 %v3159, %v3309
  %v3343 = vadd.f32 %v3160, %v3311
  %v3344 = vadd.f32 %v3161, %v3314
  %v3345 = vadd.f32 %v3162, %v3316
  %v3346 = vadd.f32 %v3163, %v3319
  %v3347 = vadd.f32 %v3164, %v3321
  %v3348 = vadd.f32 %v3165, %v3324
  %v3349 = vadd.f32 %v3166, %v3326
  %v3350 = vadd.f32 %v3167, %v3329
  %v3351 = vadd.f32 %v3168, %v3331
  %v3352 = vadd.f32 %v3169, %v3334
  %v3353 = vadd.f32 %v3170, %v3336
  %v3354 = vadd.f32 %v3171, %v3339
  %v3355 = vrot.slane %v826, 7
  %v3356 = vrot.slane %v827, 7
  %v3357 = vsel %vm1337, %v3355, %v3356
  %v3358 = vrot.slane %v828, 7
  %v3359 = vsel %vm1337, %v3356, %v3358
  %v3360 = vrot.slane %v829, 7
  %v3361 = vsel %vm1337, %v3358, %v3360
  %v3362 = vrot.slane %v830, 7
  %v3363 = vsel %vm1337, %v3360, %v3362
  %v3364 = vrot.slane %v831, 7
  %v3365 = vsel %vm1337, %v3362, %v3364
  %v3366 = vrot.slane %v832, 7
  %v3367 = vsel %vm1337, %v3364, %v3366
  %v3368 = vrot.slane %v833, 7
  %v3369 = vsel %vm1337, %v3366, %v3368
  %v3370 = vrot.slane %v834, 7
  %v3371 = vsel %vm1337, %v3368, %v3370
  %v3372 = vrot.slane %v835, 7
  %v3373 = vsel %vm1337, %v3370, %v3372
  %v3374 = vrot.slane %v836, 7
  %v3375 = vsel %vm1337, %v3372, %v3374
  %v3376 = vrot.slane %v837, 7
  %v3377 = vsel %vm1337, %v3374, %v3376
  %v3378 = vrot.slane %v838, 7
  %v3379 = vsel %vm1337, %v3376, %v3378
  %v3392 = vsel %vm1041, %v3379, 0.0
  %3393 = vset.pattern.permute.xlu0 13
  %3394 = vperm.xlu0 %3393, %v923
  %v3395 = vpop.permute.xlu0 %3394
  %3397 = vset.pattern.permute.xlu0 13
  %3398 = vperm.xlu0 %3397, %v924
  %v3399 = vpop.permute.xlu0 %3398
  %3401 = vset.pattern.permute.xlu0 13
  %3402 = vperm.xlu0 %3401, %v925
  %v3403 = vpop.permute.xlu0 %3402
  %3405 = vset.pattern.permute.xlu0 13
  %3406 = vperm.xlu0 %3405, %v926
  %v3407 = vpop.permute.xlu0 %3406
  %3409 = vset.pattern.permute.xlu0 13
  %3410 = vperm.xlu0 %3409, %v927
  %v3411 = vpop.permute.xlu0 %3410
  %3413 = vset.pattern.permute.xlu0 13
  %3414 = vperm.xlu0 %3413, %v928
  %v3415 = vpop.permute.xlu0 %3414
  %3417 = vset.pattern.permute.xlu0 13
  %3418 = vperm.xlu0 %3417, %v929
  %v3419 = vpop.permute.xlu0 %3418
  %3421 = vset.pattern.permute.xlu0 13
  %3422 = vperm.xlu0 %3421, %v930
  %v3423 = vpop.permute.xlu0 %3422
  %3425 = vset.pattern.permute.xlu0 13
  %3426 = vperm.xlu0 %3425, %v931
  %v3427 = vpop.permute.xlu0 %3426
  %3429 = vset.pattern.permute.xlu0 13
  %3430 = vperm.xlu0 %3429, %v932
  %v3431 = vpop.permute.xlu0 %3430
  %3433 = vset.pattern.permute.xlu0 13
  %3434 = vperm.xlu0 %3433, %v933
  %v3435 = vpop.permute.xlu0 %3434
  %3437 = vset.pattern.permute.xlu0 13
  %3438 = vperm.xlu0 %3437, %v934
  %v3439 = vpop.permute.xlu0 %3438
  %3441 = vset.pattern.permute.xlu0 13
  %3442 = vperm.xlu0 %3441, %v935
  %v3443 = vpop.permute.xlu0 %3442
  %v3445 = vmul.f32 %v3357, %v3395
  %v3446 = vmul.f32 %v3359, %v3399
  %v3447 = vmul.f32 %v3361, %v3403
  %v3448 = vmul.f32 %v3363, %v3407
  %v3449 = vmul.f32 %v3365, %v3411
  %v3450 = vmul.f32 %v3367, %v3415
  %v3451 = vmul.f32 %v3369, %v3419
  %v3452 = vmul.f32 %v3371, %v3423
  %v3453 = vmul.f32 %v3373, %v3427
  %v3454 = vmul.f32 %v3375, %v3431
  %v3455 = vmul.f32 %v3377, %v3435
  %v3456 = vmul.f32 %v3392, %v3439
  %v3457 = vmul.f32 %v3443, 0.0
  %v3458 = vpack.c.bf16 %v3446, %v3445
  %v3459 = vpack.c.bf16 %v3448, %v3447
  %v3460 = vpack.c.bf16 %v3450, %v3449
  %v3461 = vpack.c.bf16 %v3452, %v3451
  %v3462 = vpack.c.bf16 %v3454, %v3453
  %v3463 = vpack.c.bf16 %v3456, %v3455
  %v3464 = vpack.c.bf16 %v3457, %v3457
  %v3465 = vld [vmem:[%s4 + $0x1a0] sm:$0xf]
  %v3466 = vld [vmem:[%s4 + $0x1a4] sm:$0xf]
  %v3467 = vld [vmem:[%s4 + $0x1a8] sm:$0xf]
  %v3468 = vld [vmem:[%s4 + $0x1ac] sm:$0xf]
  %v3469 = vld [vmem:[%s4 + $0x1b0] sm:$0xf]
  %v3470 = vld [vmem:[%s4 + $0x1b4] sm:$0xf]
  %v3471 = vld [vmem:[%s4 + $0x1b8] sm:$0xf]
  %v3472 = vld [vmem:[%s4 + $0x1bc] sm:$0xf]
  %v3481 = vunpack.c.l.b16 %v3465
  %v3482 = vunpack.c.l.b16 %v3466
  %v3483 = vunpack.c.l.b16 %v3467
  %v3484 = vunpack.c.l.b16 %v3468
  %v3485 = vunpack.c.l.b16 %v3469
  %v3486 = vunpack.c.l.b16 %v3470
  %v3487 = vunpack.c.l.b16 %v3471
  %v3488 = vunpack.c.l.b16 %v3472
  %v3489 = vpack.c.b16 %v3482, %v3481
  %v3490 = vpack.c.b16 %v3484, %v3483
  %v3491 = vpack.c.b16 %v3486, %v3485
  %v3492 = vpack.c.b16 %v3488, %v3487
  %v3498 = vsel %vm403, %v3458, 0
  %v3501 = vsel %vm403, %v3459, 0
  %v3504 = vsel %vm403, %v3460, 0
  %v3507 = vsel %vm403, %v3461, 0
  %v3510 = vsel %vm403, %v3462, 0
  %v3513 = vsel %vm403, %v3463, 0
  %v3516 = vsel %vm403, %v3464, 0
  %3518 = vmatpush.bf16.msra.mxu0 0
  %3519 = vmatpush.bf16.msra.mxu0 0
  %3520 = vmatpush.bf16.msra.mxu0 0
  %3521 = vmatpush.bf16.msra.mxu0 0
  %3522 = vmatpush.bf16.msra.mxu0 %v3492
  %3523 = vmatpush.bf16.msra.mxu0 %v3491
  %3524 = vmatpush.bf16.msra.mxu0 %v3490
  %3525 = vmatpush.bf16.msra.mxu0 %v3489
  %3526 = vmatmul.bf16.gmra.mxu0 %v3498
  %v3527 = vpop.f32.mrf.mxu0
  %v3528 = vadd.f32 0.0, %v3527
  %v3529 = vpop.f32.mrf.mxu0
  %v3530 = vadd.f32 0.0, %v3529
  %3531 = vmatmul.bf16.gmra.mxu0 %v3501
  %v3532 = vpop.f32.mrf.mxu0
  %v3533 = vadd.f32 0.0, %v3532
  %v3534 = vpop.f32.mrf.mxu0
  %v3535 = vadd.f32 0.0, %v3534
  %3536 = vmatmul.bf16.gmra.mxu0 %v3504
  %v3537 = vpop.f32.mrf.mxu0
  %v3538 = vadd.f32 0.0, %v3537
  %v3539 = vpop.f32.mrf.mxu0
  %v3540 = vadd.f32 0.0, %v3539
  %3541 = vmatmul.bf16.gmra.mxu0 %v3507
  %v3542 = vpop.f32.mrf.mxu0
  %v3543 = vadd.f32 0.0, %v3542
  %v3544 = vpop.f32.mrf.mxu0
  %v3545 = vadd.f32 0.0, %v3544
  %3546 = vmatmul.bf16.gmra.mxu0 %v3510
  %v3547 = vpop.f32.mrf.mxu0
  %v3548 = vadd.f32 0.0, %v3547
  %v3549 = vpop.f32.mrf.mxu0
  %v3550 = vadd.f32 0.0, %v3549
  %3551 = vmatmul.bf16.gmra.mxu0 %v3513
  %v3552 = vpop.f32.mrf.mxu0
  %v3553 = vadd.f32 0.0, %v3552
  %v3554 = vpop.f32.mrf.mxu0
  %v3555 = vadd.f32 0.0, %v3554
  %3556 = vmatmul.bf16.gmra.mxu0 %v3516
  %v3557 = vpop.f32.mrf.mxu0
  %v3558 = vadd.f32 0.0, %v3557
  %v3559 = vpop.f32.mrf.mxu0
  %3560 = vdwg.mxu0
  %v3561 = vadd.f32 %v3342, %v3528
  %v3562 = vadd.f32 %v3343, %v3530
  %v3563 = vadd.f32 %v3344, %v3533
  %v3564 = vadd.f32 %v3345, %v3535
  %v3565 = vadd.f32 %v3346, %v3538
  %v3566 = vadd.f32 %v3347, %v3540
  %v3567 = vadd.f32 %v3348, %v3543
  %v3568 = vadd.f32 %v3349, %v3545
  %v3569 = vadd.f32 %v3350, %v3548
  %v3570 = vadd.f32 %v3351, %v3550
  %v3571 = vadd.f32 %v3352, %v3553
  %v3572 = vadd.f32 %v3353, %v3555
  %v3573 = vadd.f32 %v3354, %v3558
  %v3574 = vsel %vm1041, %v1812, 0.0
  %3575 = vset.pattern.permute.xlu0 14
  %3576 = vperm.xlu0 %3575, %v923
  %v3577 = vpop.permute.xlu0 %3576
  %3579 = vset.pattern.permute.xlu0 14
  %3580 = vperm.xlu0 %3579, %v924
  %v3581 = vpop.permute.xlu0 %3580
  %3583 = vset.pattern.permute.xlu0 14
  %3584 = vperm.xlu0 %3583, %v925
  %v3585 = vpop.permute.xlu0 %3584
  %3587 = vset.pattern.permute.xlu0 14
  %3588 = vperm.xlu0 %3587, %v926
  %v3589 = vpop.permute.xlu0 %3588
  %3591 = vset.pattern.permute.xlu0 14
  %3592 = vperm.xlu0 %3591, %v927
  %v3593 = vpop.permute.xlu0 %3592
  %3595 = vset.pattern.permute.xlu0 14
  %3596 = vperm.xlu0 %3595, %v928
  %v3597 = vpop.permute.xlu0 %3596
  %3599 = vset.pattern.permute.xlu0 14
  %3600 = vperm.xlu0 %3599, %v929
  %v3601 = vpop.permute.xlu0 %3600
  %3603 = vset.pattern.permute.xlu0 14
  %3604 = vperm.xlu0 %3603, %v930
  %v3605 = vpop.permute.xlu0 %3604
  %3607 = vset.pattern.permute.xlu0 14
  %3608 = vperm.xlu0 %3607, %v931
  %v3609 = vpop.permute.xlu0 %3608
  %3611 = vset.pattern.permute.xlu0 14
  %3612 = vperm.xlu0 %3611, %v932
  %v3613 = vpop.permute.xlu0 %3612
  %3615 = vset.pattern.permute.xlu0 14
  %3616 = vperm.xlu0 %3615, %v933
  %v3617 = vpop.permute.xlu0 %3616
  %3619 = vset.pattern.permute.xlu0 14
  %3620 = vperm.xlu0 %3619, %v934
  %v3621 = vpop.permute.xlu0 %3620
  %3623 = vset.pattern.permute.xlu0 14
  %3624 = vperm.xlu0 %3623, %v935
  %v3625 = vpop.permute.xlu0 %3624
  %v3627 = vmul.f32 %v1793, %v3577
  %v3628 = vmul.f32 %v1795, %v3581
  %v3629 = vmul.f32 %v1797, %v3585
  %v3630 = vmul.f32 %v1799, %v3589
  %v3631 = vmul.f32 %v1801, %v3593
  %v3632 = vmul.f32 %v1803, %v3597
  %v3633 = vmul.f32 %v1805, %v3601
  %v3634 = vmul.f32 %v1807, %v3605
  %v3635 = vmul.f32 %v1809, %v3609
  %v3636 = vmul.f32 %v1811, %v3613
  %v3637 = vmul.f32 %v1813, %v3617
  %v3638 = vmul.f32 %v3574, %v3621
  %v3639 = vmul.f32 %v3625, 0.0
  %v3640 = vpack.c.bf16 %v3628, %v3627
  %v3641 = vpack.c.bf16 %v3630, %v3629
  %v3642 = vpack.c.bf16 %v3632, %v3631
  %v3643 = vpack.c.bf16 %v3634, %v3633
  %v3644 = vpack.c.bf16 %v3636, %v3635
  %v3645 = vpack.c.bf16 %v3638, %v3637
  %v3646 = vpack.c.bf16 %v3639, %v3639
  %v3647 = vld [vmem:[%s4 + $0x1c0] sm:$0xf]
  %v3648 = vld [vmem:[%s4 + $0x1c4] sm:$0xf]
  %v3649 = vld [vmem:[%s4 + $0x1c8] sm:$0xf]
  %v3650 = vld [vmem:[%s4 + $0x1cc] sm:$0xf]
  %v3651 = vld [vmem:[%s4 + $0x1d0] sm:$0xf]
  %v3652 = vld [vmem:[%s4 + $0x1d4] sm:$0xf]
  %v3653 = vld [vmem:[%s4 + $0x1d8] sm:$0xf]
  %v3654 = vld [vmem:[%s4 + $0x1dc] sm:$0xf]
  %v3663 = vunpack.c.l.b16 %v3647
  %v3664 = vunpack.c.l.b16 %v3648
  %v3665 = vunpack.c.l.b16 %v3649
  %v3666 = vunpack.c.l.b16 %v3650
  %v3667 = vunpack.c.l.b16 %v3651
  %v3668 = vunpack.c.l.b16 %v3652
  %v3669 = vunpack.c.l.b16 %v3653
  %v3670 = vunpack.c.l.b16 %v3654
  %v3671 = vpack.c.b16 %v3664, %v3663
  %v3672 = vpack.c.b16 %v3666, %v3665
  %v3673 = vpack.c.b16 %v3668, %v3667
  %v3674 = vpack.c.b16 %v3670, %v3669
  %v3680 = vsel %vm403, %v3640, 0
  %v3683 = vsel %vm403, %v3641, 0
  %v3686 = vsel %vm403, %v3642, 0
  %v3689 = vsel %vm403, %v3643, 0
  %v3692 = vsel %vm403, %v3644, 0
  %v3695 = vsel %vm403, %v3645, 0
  %v3698 = vsel %vm403, %v3646, 0
  %3700 = vmatpush.bf16.msra.mxu0 0
  %3701 = vmatpush.bf16.msra.mxu0 0
  %3702 = vmatpush.bf16.msra.mxu0 0
  %3703 = vmatpush.bf16.msra.mxu0 0
  %3704 = vmatpush.bf16.msra.mxu0 %v3674
  %3705 = vmatpush.bf16.msra.mxu0 %v3673
  %3706 = vmatpush.bf16.msra.mxu0 %v3672
  %3707 = vmatpush.bf16.msra.mxu0 %v3671
  %3708 = vmatmul.bf16.gmra.mxu0 %v3680
  %v3709 = vpop.f32.mrf.mxu0
  %v3710 = vadd.f32 0.0, %v3709
  %v3711 = vpop.f32.mrf.mxu0
  %v3712 = vadd.f32 0.0, %v3711
  %3713 = vmatmul.bf16.gmra.mxu0 %v3683
  %v3714 = vpop.f32.mrf.mxu0
  %v3715 = vadd.f32 0.0, %v3714
  %v3716 = vpop.f32.mrf.mxu0
  %v3717 = vadd.f32 0.0, %v3716
  %3718 = vmatmul.bf16.gmra.mxu0 %v3686
  %v3719 = vpop.f32.mrf.mxu0
  %v3720 = vadd.f32 0.0, %v3719
  %v3721 = vpop.f32.mrf.mxu0
  %v3722 = vadd.f32 0.0, %v3721
  %3723 = vmatmul.bf16.gmra.mxu0 %v3689
  %v3724 = vpop.f32.mrf.mxu0
  %v3725 = vadd.f32 0.0, %v3724
  %v3726 = vpop.f32.mrf.mxu0
  %v3727 = vadd.f32 0.0, %v3726
  %3728 = vmatmul.bf16.gmra.mxu0 %v3692
  %v3729 = vpop.f32.mrf.mxu0
  %v3730 = vadd.f32 0.0, %v3729
  %v3731 = vpop.f32.mrf.mxu0
  %v3732 = vadd.f32 0.0, %v3731
  %3733 = vmatmul.bf16.gmra.mxu0 %v3695
  %v3734 = vpop.f32.mrf.mxu0
  %v3735 = vadd.f32 0.0, %v3734
  %v3736 = vpop.f32.mrf.mxu0
  %v3737 = vadd.f32 0.0, %v3736
  %3738 = vmatmul.bf16.gmra.mxu0 %v3698
  %v3739 = vpop.f32.mrf.mxu0
  %v3740 = vadd.f32 0.0, %v3739
  %v3741 = vpop.f32.mrf.mxu0
  %3742 = vdwg.mxu0
  %v3743 = vadd.f32 %v3561, %v3710
  %v3744 = vadd.f32 %v3562, %v3712
  %v3745 = vadd.f32 %v3563, %v3715
  %v3746 = vadd.f32 %v3564, %v3717
  %v3747 = vadd.f32 %v3565, %v3720
  %v3748 = vadd.f32 %v3566, %v3722
  %v3749 = vadd.f32 %v3567, %v3725
  %v3750 = vadd.f32 %v3568, %v3727
  %v3751 = vadd.f32 %v3569, %v3730
  %v3752 = vadd.f32 %v3570, %v3732
  %v3753 = vadd.f32 %v3571, %v3735
  %v3754 = vadd.f32 %v3572, %v3737
  %v3755 = vadd.f32 %v3573, %v3740
  %v3756 = vsel %vm887, %v838, 0.0
  %3757 = vset.pattern.permute.xlu0 15
  %3758 = vperm.xlu0 %3757, %v923
  %v3759 = vpop.permute.xlu0 %3758
  %3761 = vset.pattern.permute.xlu0 15
  %3762 = vperm.xlu0 %3761, %v924
  %v3763 = vpop.permute.xlu0 %3762
  %3765 = vset.pattern.permute.xlu0 15
  %3766 = vperm.xlu0 %3765, %v925
  %v3767 = vpop.permute.xlu0 %3766
  %3769 = vset.pattern.permute.xlu0 15
  %3770 = vperm.xlu0 %3769, %v926
  %v3771 = vpop.permute.xlu0 %3770
  %3773 = vset.pattern.permute.xlu0 15
  %3774 = vperm.xlu0 %3773, %v927
  %v3775 = vpop.permute.xlu0 %3774
  %3777 = vset.pattern.permute.xlu0 15
  %3778 = vperm.xlu0 %3777, %v928
  %v3779 = vpop.permute.xlu0 %3778
  %3781 = vset.pattern.permute.xlu0 15
  %3782 = vperm.xlu0 %3781, %v929
  %v3783 = vpop.permute.xlu0 %3782
  %3785 = vset.pattern.permute.xlu0 15
  %3786 = vperm.xlu0 %3785, %v930
  %v3787 = vpop.permute.xlu0 %3786
  %3789 = vset.pattern.permute.xlu0 15
  %3790 = vperm.xlu0 %3789, %v931
  %v3791 = vpop.permute.xlu0 %3790
  %3793 = vset.pattern.permute.xlu0 15
  %3794 = vperm.xlu0 %3793, %v932
  %v3795 = vpop.permute.xlu0 %3794
  %3797 = vset.pattern.permute.xlu0 15
  %3798 = vperm.xlu0 %3797, %v933
  %v3799 = vpop.permute.xlu0 %3798
  %3801 = vset.pattern.permute.xlu0 15
  %3802 = vperm.xlu0 %3801, %v934
  %v3803 = vpop.permute.xlu0 %3802
  %3805 = vset.pattern.permute.xlu0 15
  %3806 = vperm.xlu0 %3805, %v935
  %v3807 = vpop.permute.xlu0 %3806
  %v3809 = vmul.f32 %v827, %v3759
  %v3810 = vmul.f32 %v828, %v3763
  %v3811 = vmul.f32 %v829, %v3767
  %v3812 = vmul.f32 %v830, %v3771
  %v3813 = vmul.f32 %v831, %v3775
  %v3814 = vmul.f32 %v832, %v3779
  %v3815 = vmul.f32 %v833, %v3783
  %v3816 = vmul.f32 %v834, %v3787
  %v3817 = vmul.f32 %v835, %v3791
  %v3818 = vmul.f32 %v836, %v3795
  %v3819 = vmul.f32 %v837, %v3799
  %v3820 = vmul.f32 %v3756, %v3803
  %v3821 = vmul.f32 %v3807, 0.0
  %v3822 = vpack.c.bf16 %v3810, %v3809
  %v3823 = vpack.c.bf16 %v3812, %v3811
  %v3824 = vpack.c.bf16 %v3814, %v3813
  %v3825 = vpack.c.bf16 %v3816, %v3815
  %v3826 = vpack.c.bf16 %v3818, %v3817
  %v3827 = vpack.c.bf16 %v3820, %v3819
  %v3828 = vpack.c.bf16 %v3821, %v3821
  %v3829 = vld [vmem:[%s4 + $0x1e0] sm:$0xf]
  %v3830 = vld [vmem:[%s4 + $0x1e4] sm:$0xf]
  %v3831 = vld [vmem:[%s4 + $0x1e8] sm:$0xf]
  %v3832 = vld [vmem:[%s4 + $0x1ec] sm:$0xf]
  %v3833 = vld [vmem:[%s4 + $0x1f0] sm:$0xf]
  %v3834 = vld [vmem:[%s4 + $0x1f4] sm:$0xf]
  %v3835 = vld [vmem:[%s4 + $0x1f8] sm:$0xf]
  %v3836 = vld [vmem:[%s4 + $0x1fc] sm:$0xf]
  %v3845 = vunpack.c.l.b16 %v3829
  %v3846 = vunpack.c.l.b16 %v3830
  %v3847 = vunpack.c.l.b16 %v3831
  %v3848 = vunpack.c.l.b16 %v3832
  %v3849 = vunpack.c.l.b16 %v3833
  %v3850 = vunpack.c.l.b16 %v3834
  %v3851 = vunpack.c.l.b16 %v3835
  %v3852 = vunpack.c.l.b16 %v3836
  %v3853 = vpack.c.b16 %v3846, %v3845
  %v3854 = vpack.c.b16 %v3848, %v3847
  %v3855 = vpack.c.b16 %v3850, %v3849
  %v3856 = vpack.c.b16 %v3852, %v3851
  %v3862 = vsel %vm403, %v3822, 0
  %v3865 = vsel %vm403, %v3823, 0
  %v3868 = vsel %vm403, %v3824, 0
  %v3871 = vsel %vm403, %v3825, 0
  %v3874 = vsel %vm403, %v3826, 0
  %v3877 = vsel %vm403, %v3827, 0
  %v3880 = vsel %vm403, %v3828, 0
  %3882 = vmatpush.bf16.msra.mxu0 0
  %3883 = vmatpush.bf16.msra.mxu0 0
  %3884 = vmatpush.bf16.msra.mxu0 0
  %3885 = vmatpush.bf16.msra.mxu0 0
  %3886 = vmatpush.bf16.msra.mxu0 %v3856
  %3887 = vmatpush.bf16.msra.mxu0 %v3855
  %3888 = vmatpush.bf16.msra.mxu0 %v3854
  %3889 = vmatpush.bf16.msra.mxu0 %v3853
  %3890 = vmatmul.bf16.gmra.mxu0 %v3862
  %v3891 = vpop.f32.mrf.mxu0
  %v3892 = vadd.f32 0.0, %v3891
  %v3893 = vpop.f32.mrf.mxu0
  %v3894 = vadd.f32 0.0, %v3893
  %3895 = vmatmul.bf16.gmra.mxu0 %v3865
  %v3896 = vpop.f32.mrf.mxu0
  %v3897 = vadd.f32 0.0, %v3896
  %v3898 = vpop.f32.mrf.mxu0
  %v3899 = vadd.f32 0.0, %v3898
  %3900 = vmatmul.bf16.gmra.mxu0 %v3868
  %v3901 = vpop.f32.mrf.mxu0
  %v3902 = vadd.f32 0.0, %v3901
  %v3903 = vpop.f32.mrf.mxu0
  %v3904 = vadd.f32 0.0, %v3903
  %3905 = vmatmul.bf16.gmra.mxu0 %v3871
  %v3906 = vpop.f32.mrf.mxu0
  %v3907 = vadd.f32 0.0, %v3906
  %v3908 = vpop.f32.mrf.mxu0
  %v3909 = vadd.f32 0.0, %v3908
  %3910 = vmatmul.bf16.gmra.mxu0 %v3874
  %v3911 = vpop.f32.mrf.mxu0
  %v3912 = vadd.f32 0.0, %v3911
  %v3913 = vpop.f32.mrf.mxu0
  %v3914 = vadd.f32 0.0, %v3913
  %3915 = vmatmul.bf16.gmra.mxu0 %v3877
  %v3916 = vpop.f32.mrf.mxu0
  %v3917 = vadd.f32 0.0, %v3916
  %v3918 = vpop.f32.mrf.mxu0
  %v3919 = vadd.f32 0.0, %v3918
  %3920 = vmatmul.bf16.gmra.mxu0 %v3880
  %v3921 = vpop.f32.mrf.mxu0
  %v3922 = vadd.f32 0.0, %v3921
  %v3923 = vpop.f32.mrf.mxu0
  %3924 = vdwg.mxu0
  %v3925 = vadd.f32 %v3743, %v3892
  %v3926 = vadd.f32 %v3744, %v3894
  %v3927 = vadd.f32 %v3745, %v3897
  %v3928 = vadd.f32 %v3746, %v3899
  %v3929 = vadd.f32 %v3747, %v3902
  %v3930 = vadd.f32 %v3748, %v3904
  %v3931 = vadd.f32 %v3749, %v3907
  %v3932 = vadd.f32 %v3750, %v3909
  %v3933 = vadd.f32 %v3751, %v3912
  %v3934 = vadd.f32 %v3752, %v3914
  %v3935 = vadd.f32 %v3753, %v3917
  %v3936 = vadd.f32 %v3754, %v3919
  %v3937 = vadd.f32 %v3755, %v3922
  %v3938 = vld [vmem:[%s5] sm:$0x1]
  %v3939 = vld [vmem:[%s6] sm:$0x1]
  %v3940 = vadd.f32 %v3925, %v3926
  %v3941 = vadd.f32 %v3940, %v3927
  %v3942 = vadd.f32 %v3941, %v3928
  %v3943 = vadd.f32 %v3942, %v3929
  %v3944 = vadd.f32 %v3943, %v3930
  %v3945 = vadd.f32 %v3944, %v3931
  %v3946 = vadd.f32 %v3945, %v3932
  %v3947 = vadd.f32 %v3946, %v3933
  %v3948 = vadd.f32 %v3947, %v3934
  %v3949 = vadd.f32 %v3948, %v3935
  %v3950 = vadd.f32 %v3949, %v3936
  %v3951 = vsel %vm887, %v3937, 0.0
  %v3952 = vadd.f32 %v3950, %v3951
  %v3953 = vrot.slane %v3952, 4
  %v3954 = vadd.f32 %v3952, %v3953
  %v3955 = vrot.slane %v3954, 2
  %v3956 = vadd.f32 %v3954, %v3955
  %v3957 = vrot.slane %v3956, 1
  %v3958 = vadd.f32 %v3956, %v3957
  %v3959 = vmul.f32 %v3958, 0.010204081
  %v3960 = vsub.f32 %v3925, %v3959
  %v3961 = vsub.f32 %v3926, %v3959
  %v3962 = vsub.f32 %v3927, %v3959
  %v3963 = vsub.f32 %v3928, %v3959
  %v3964 = vsub.f32 %v3929, %v3959
  %v3965 = vsub.f32 %v3930, %v3959
  %v3966 = vsub.f32 %v3931, %v3959
  %v3967 = vsub.f32 %v3932, %v3959
  %v3968 = vsub.f32 %v3933, %v3959
  %v3969 = vsub.f32 %v3934, %v3959
  %v3970 = vsub.f32 %v3935, %v3959
  %v3971 = vsub.f32 %v3936, %v3959
  %v3972 = vsub.f32 %v3937, %v3959
  %v3973 = vmul.f32 %v3960, %v3960
  %v3974 = vmul.f32 %v3961, %v3961
  %v3975 = vmul.f32 %v3962, %v3962
  %v3976 = vmul.f32 %v3963, %v3963
  %v3977 = vmul.f32 %v3964, %v3964
  %v3978 = vmul.f32 %v3965, %v3965
  %v3979 = vmul.f32 %v3966, %v3966
  %v3980 = vmul.f32 %v3967, %v3967
  %v3981 = vmul.f32 %v3968, %v3968
  %v3982 = vmul.f32 %v3969, %v3969
  %v3983 = vmul.f32 %v3970, %v3970
  %v3984 = vmul.f32 %v3971, %v3971
  %v3985 = vmul.f32 %v3972, %v3972
  %v3986 = vadd.f32 %v3973, %v3974
  %v3987 = vadd.f32 %v3986, %v3975
  %v3988 = vadd.f32 %v3987, %v3976
  %v3989 = vadd.f32 %v3988, %v3977
  %v3990 = vadd.f32 %v3989, %v3978
  %v3991 = vadd.f32 %v3990, %v3979
  %v3992 = vadd.f32 %v3991, %v3980
  %v3993 = vadd.f32 %v3992, %v3981
  %v3994 = vadd.f32 %v3993, %v3982
  %v3995 = vadd.f32 %v3994, %v3983
  %v3996 = vadd.f32 %v3995, %v3984
  %v3997 = vsel %vm887, %v3985, 0.0
  %v3998 = vadd.f32 %v3996, %v3997
  %v3999 = vrot.slane %v3998, 4
  %v4000 = vadd.f32 %v3998, %v3999
  %v4001 = vrot.slane %v4000, 2
  %v4002 = vadd.f32 %v4000, %v4001
  %v4003 = vrot.slane %v4002, 1
  %v4004 = vadd.f32 %v4002, %v4003
  %v4005 = vmul.f32 %v4004, 0.010204081
  %v4006 = vadd.f32 %v4005, 1e-05
  %v4007 = vrsqrt.pop %v4006
  %v4008 = vmul.f32 %v4007, %v4006
  %v4009 = vmul.f32 %v4008, %v4007
  %v4010 = vmul.f32 0.5, %v4009
  %v4011 = vsub.f32 1.5, %v4010
  %v4012 = vmul.f32 %v4007, %v4011
  %vm4013 = vweird.f32 %v4006
  %vm4014 = vweird.f32 %v4007
  %vm4015 = vmor %vm4013, %vm4014
  %v4016 = vsel %vm4015, %v4007, %v4012
  %v4017 = vmul.f32 %v3938, %v4016
  %v4019 = vperm.slane %v4017, 0
  %v4021 = vmul.f32 %v3960, %v4019
  %v4022 = vmul.f32 %v3961, %v4019
  %v4023 = vmul.f32 %v3962, %v4019
  %v4024 = vmul.f32 %v3963, %v4019
  %v4025 = vmul.f32 %v3964, %v4019
  %v4026 = vmul.f32 %v3965, %v4019
  %v4027 = vmul.f32 %v3966, %v4019
  %v4028 = vmul.f32 %v3967, %v4019
  %v4029 = vmul.f32 %v3968, %v4019
  %v4030 = vmul.f32 %v3969, %v4019
  %v4031 = vmul.f32 %v3970, %v4019
  %v4032 = vmul.f32 %v3971, %v4019
  %v4033 = vmul.f32 %v3972, %v4019
  %v4035 = vperm.slane %v3939, 0
  %v4037 = vadd.f32 %v4021, %v4035
  %v4038 = vadd.f32 %v4022, %v4035
  %v4039 = vadd.f32 %v4023, %v4035
  %v4040 = vadd.f32 %v4024, %v4035
  %v4041 = vadd.f32 %v4025, %v4035
  %v4042 = vadd.f32 %v4026, %v4035
  %v4043 = vadd.f32 %v4027, %v4035
  %v4044 = vadd.f32 %v4028, %v4035
  %v4045 = vadd.f32 %v4029, %v4035
  %v4046 = vadd.f32 %v4030, %v4035
  %v4047 = vadd.f32 %v4031, %v4035
  %v4048 = vadd.f32 %v4032, %v4035
  %v4049 = vadd.f32 %v4033, %v4035
  %v4050 = vmax.f32 %v4037, 0.0
  %v4051 = vmax.f32 %v4038, 0.0
  %v4052 = vmax.f32 %v4039, 0.0
  %v4053 = vmax.f32 %v4040, 0.0
  %v4054 = vmax.f32 %v4041, 0.0
  %v4055 = vmax.f32 %v4042, 0.0
  %v4056 = vmax.f32 %v4043, 0.0
  %v4057 = vmax.f32 %v4044, 0.0
  %v4058 = vmax.f32 %v4045, 0.0
  %v4059 = vmax.f32 %v4046, 0.0
  %v4060 = vmax.f32 %v4047, 0.0
  %v4061 = vmax.f32 %v4048, 0.0
  %v4062 = vmax.f32 %v4049, 0.0
  %v4063 = vld [vmem:[%s7] sm:$0xff]
  %v4064 = vld [vmem:[%s7 + $0x8] sm:$0xff]
  %v4065 = vld [vmem:[%s7 + $0x10] sm:$0xff]
  %v4066 = vld [vmem:[%s7 + $0x18] sm:$0xff]
  %v4067 = vld [vmem:[%s7 + $0x20] sm:$0xff]
  %v4068 = vld [vmem:[%s7 + $0x28] sm:$0xff]
  %v4069 = vld [vmem:[%s7 + $0x30] sm:$0x1]
  %v4070 = vmul.f32 %v4050, %v4063
  %v4071 = vmul.f32 %v4051, %v4064
  %v4072 = vmul.f32 %v4052, %v4065
  %v4073 = vmul.f32 %v4053, %v4066
  %v4074 = vmul.f32 %v4054, %v4067
  %v4075 = vmul.f32 %v4055, %v4068
  %v4076 = vmul.f32 %v4056, %v4069
  %4077 = vadd.xlane.f32.xlu0 %v4070
  %v4078 = vpop.xlane.xlu0 %4077
  %4079 = vadd.xlane.f32.xlu0 %v4071
  %v4080 = vpop.xlane.xlu0 %4079
  %4081 = vadd.xlane.f32.xlu0 %v4072
  %v4082 = vpop.xlane.xlu0 %4081
  %4083 = vadd.xlane.f32.xlu0 %v4073
  %v4084 = vpop.xlane.xlu0 %4083
  %4085 = vadd.xlane.f32.xlu0 %v4074
  %v4086 = vpop.xlane.xlu0 %4085
  %4087 = vadd.xlane.f32.xlu0 %v4075
  %v4088 = vpop.xlane.xlu0 %4087
  %v4089 = vsel %vm1337, %v4076, 0.0
  %4090 = vadd.xlane.f32.xlu0 %v4089
  %v4091 = vpop.xlane.xlu0 %4090
  %v4092 = vadd.f32 %v4078, %v4080
  %v4093 = vadd.f32 %v4092, %v4082
  %v4094 = vadd.f32 %v4093, %v4084
  %v4095 = vadd.f32 %v4094, %v4086
  %v4096 = vadd.f32 %v4095, %v4088
  %v4097 = vsel %vm1337, %v4091, 0.0
  %v4098 = vadd.f32 %v4096, %v4097
  %v4099 = vrot.slane %v4098, 4
  %v4100 = vadd.f32 %v4098, %v4099
  %v4101 = vrot.slane %v4100, 2
  %v4102 = vadd.f32 %v4100, %v4101
  %v4103 = vrot.slane %v4102, 1
  %v4104 = vadd.f32 %v4102, %v4103
  %v4112 = vrot.slane %v4063, 7
  %v4113 = vrot.slane %v4064, 7
  %v4114 = vsel %vm1337, %v4112, %v4113
  %v4115 = vrot.slane %v4065, 7
  %v4116 = vsel %vm1337, %v4113, %v4115
  %v4117 = vrot.slane %v4066, 7
  %v4118 = vsel %vm1337, %v4115, %v4117
  %v4119 = vrot.slane %v4067, 7
  %v4120 = vsel %vm1337, %v4117, %v4119
  %v4121 = vrot.slane %v4068, 7
  %v4122 = vsel %vm1337, %v4119, %v4121
  %v4123 = vrot.slane %v4069, 7
  %v4124 = vsel %vm1337, %v4121, %v4123
  %v4132 = vmul.f32 %v4056, %v4112
  %v4133 = vmul.f32 %v4057, %v4114
  %v4134 = vmul.f32 %v4058, %v4116
  %v4135 = vmul.f32 %v4059, %v4118
  %v4136 = vmul.f32 %v4060, %v4120
  %v4137 = vmul.f32 %v4061, %v4122
  %v4138 = vmul.f32 %v4062, %v4124
  %vm4139 = vcmask 1047553
  %v4140 = vsel %vm4139, %v4132, 0.0
  %4141 = vadd.xlane.f32.xlu0 %v4140
  %v4142 = vpop.xlane.xlu0 %4141
  %4143 = vadd.xlane.f32.xlu0 %v4133
  %v4144 = vpop.xlane.xlu0 %4143
  %4145 = vadd.xlane.f32.xlu0 %v4134
  %v4146 = vpop.xlane.xlu0 %4145
  %4147 = vadd.xlane.f32.xlu0 %v4135
  %v4148 = vpop.xlane.xlu0 %4147
  %4149 = vadd.xlane.f32.xlu0 %v4136
  %v4150 = vpop.xlane.xlu0 %4149
  %4151 = vadd.xlane.f32.xlu0 %v4137
  %v4152 = vpop.xlane.xlu0 %4151
  %v4153 = vsel %vm887, %v4138, 0.0
  %4154 = vadd.xlane.f32.xlu0 %v4153
  %v4155 = vpop.xlane.xlu0 %4154
  %v4163 = vrot.slane %v4142, 1
  %v4164 = vrot.slane %v4144, 1
  %v4165 = vsel %vm1078, %v4163, %v4164
  %v4166 = vrot.slane %v4146, 1
  %v4167 = vsel %vm1078, %v4164, %v4166
  %v4168 = vrot.slane %v4148, 1
  %v4169 = vsel %vm1078, %v4166, %v4168
  %v4170 = vrot.slane %v4150, 1
  %v4171 = vsel %vm1078, %v4168, %v4170
  %v4172 = vrot.slane %v4152, 1
  %v4173 = vsel %vm1078, %v4170, %v4172
  %v4174 = vrot.slane %v4155, 1
  %v4175 = vsel %vm1078, %v4172, %v4174
  %v4183 = vadd.f32 %v4165, %v4167
  %v4184 = vadd.f32 %v4183, %v4169
  %v4185 = vadd.f32 %v4184, %v4171
  %v4186 = vadd.f32 %v4185, %v4173
  %v4187 = vadd.f32 %v4186, %v4175
  %v4188 = vsel %vm1337, %v4174, 0.0
  %v4189 = vadd.f32 %v4187, %v4188
  %v4190 = vrot.slane %v4189, 4
  %v4191 = vadd.f32 %v4189, %v4190
  %v4192 = vrot.slane %v4191, 2
  %v4193 = vadd.f32 %v4191, %v4192
  %v4194 = vrot.slane %v4193, 1
  %v4195 = vadd.f32 %v4193, %v4194
  %v4196 = vsel %vm1337, %v4104, %v4195
  %v4197 = vld [vmem:[#allocation2] sm:$0x1]
  %v4199 = vperm.slane %v4197, 0
  %v4201 = vadd.f32 %v4196, %v4199
  %v4202 = vxor.u32 %v4201, 2147483648
  %v4203 = vmul.f32 %v4202, 1.442695
  %v4204 = vpow.pop %v4203
  %v4205 = vadd.f32 %v4204, 1.0
  %v4206 = vrcp.pop %v4205
  %v4207 = vmul.f32 %v4205, %v4206
  %v4208 = vsub.f32 1.0, %v4207
  %v4209 = vmul.f32 %v4206, %v4208
  %v4210 = vadd.f32 %v4206, %v4209
  %vm4211 = vweird.f32 %v4205
  %vm4212 = vweird.f32 %v4206
  %vm4213 = vmor %vm4211, %vm4212
  %v4214 = vsel %vm4213, %v4206, %v4210
  %v4215 = vand.u32 2147483647, %v4205
  %vm4216 = vcmp.eq.f32.partialorder %v4215, 8.507059e+37
  %v4217 = vand.u32 %v4205, 2147483648
  %v4218 = vor.u32 1.1754944e-38, %v4217
  %v4219 = vsel %vm4216, %v4218, %v4214
  %v4220 = vmul.f32 1.0, %v4219
  %vm4221 = vcmask 1024
  %4222 = vst.msk [vmem:[%s10] sm:$0x3] %vm4221, %v4220
  // Predicated region
  $region42: #{discriminator_forward.1} parent=0 // pred_check
    _
  $region43: #{discriminator_forward.1} parent=0 // pred_check_branch
    %4224 = sbr.rel (0) target = $region45
  $region44: #{discriminator_forward.1} parent=0 // pred_region
    _
  $region45: #{discriminator_forward.1} parent=0 // pred_fallthru
    _
  // Predicated region
  $region46: #{discriminator_forward.1} parent=0 // pred_check
    _
  $region47: #{discriminator_forward.1} parent=0 // pred_check_branch
    %4226 = sbr.rel (0) target = $region49
  $region48: #{discriminator_forward.1} parent=0 // pred_region
    _
  $region49: #{discriminator_forward.1} parent=0 // pred_fallthru
    _

</llo_original>
